<compile_context>
chip_gen: v7x
topology: tpu7x:2x2x1
jax: 0.10.0
libtpu: 0.0.40
codegen_flags: <defaults>
</compile_context>

<pallas_src>
import math
import functools

import jax
import jax.numpy as jnp
from jax import lax
from jax.experimental import pallas as pl
from jax.experimental.pallas import tpu as pltpu

LN_EPS = 1e-5          # PyTorch default eps for nn.LayerNorm


def _layernorm(h, g, b):
    mu = jnp.mean(h, axis=-1, keepdims=True)
    var = jnp.mean((h - mu) ** 2, axis=-1, keepdims=True)
    return (h - mu) * lax.rsqrt(var + LN_EPS) * g + b


# -----------------------------------------------------------------------------
# One fused kernel: input_projection -> (+pe) -> N encoder layers -> classifier
# Operates on the single (S, ·) sequence that drives the module output.
# All weights are (in, out); per-layer weights are stacked along a leading L dim.
# -----------------------------------------------------------------------------
def fused_forward_kernel(
        src_ref, pe_ref, ip_alpha_ref,
        ip_w1_ref, ip_b1_ref, ip_g_ref, ip_bt_ref, ip_w2_ref, ip_b2_ref,
        wqkv_ref, bqkv_ref, wo_ref, bo_ref, g1_ref, bt1_ref,
        w1_ref, b1_ref, w2_ref, b2_ref, g2_ref, bt2_ref,
        cl_w1_ref, cl_b1_ref, cl_g_ref, cl_bt_ref, cl_alpha_ref,
        cl_w2_ref, cl_b2_ref,
        o_ref, *, num_layers, nhead, d_model, proj_scale):
    hd = d_model // nhead
    inv_sqrt_hd = 1.0 / math.sqrt(hd)

    # --- input_projection: Linear -> LayerNorm -> PReLU(seq channel) ->
    #     (Dropout=id) -> Linear, then * sqrt(d_model), fused pos-enc add ------
    x = src_ref[...]                                                  # (S, din)
    h = jnp.dot(x, ip_w1_ref[...], preferred_element_type=jnp.float32) + ip_b1_ref[...]
    h = _layernorm(h, ip_g_ref[...], ip_bt_ref[...])
    h = jnp.where(h >= 0.0, h, ip_alpha_ref[...] * h)                 # PReLU, alpha per row (seq pos)
    x = jnp.dot(h, ip_w2_ref[...], preferred_element_type=jnp.float32) + ip_b2_ref[...]
    x = x * proj_scale + pe_ref[...]                                  # (S, d); pe row of this batch idx

    for l in range(num_layers):
        # ---- multi-head self attention (nn.MultiheadAttention, post-norm) ----
        qkv = jnp.dot(x, wqkv_ref[l], preferred_element_type=jnp.float32) + bqkv_ref[l]
        ctx_heads = []
        for hh in range(nhead):
            qh = qkv[:, hh * hd:(hh + 1) * hd]                        # (S, hd)
            kh = qkv[:, d_model + hh * hd:d_model + (hh + 1) * hd]
            vh = qkv[:, 2 * d_model + hh * hd:2 * d_model + (hh + 1) * hd]
            # q @ k^T via dot_general dimension numbers (no materialized .T)
            s = lax.dot_general(qh, kh, (((1,), (1,)), ((), ())),
                                preferred_element_type=jnp.float32) * inv_sqrt_hd
            s = s - jnp.max(s, axis=-1, keepdims=True)
            p = jnp.exp(s)
            p = p / jnp.sum(p, axis=-1, keepdims=True)                # exact softmax
            ctx_heads.append(jnp.dot(p, vh, preferred_element_type=jnp.float32))
        ctx = jnp.concatenate(ctx_heads, axis=-1)                     # (S, d) lane-concat of heads
        attn = jnp.dot(ctx, wo_ref[l], preferred_element_type=jnp.float32) + bo_ref[l]
        x = _layernorm(x + attn, g1_ref[l], bt1_ref[l])               # dropout = id

        # ---- feed forward: Linear -> ReLU -> Linear ----
        ff = jnp.dot(x, w1_ref[l], preferred_element_type=jnp.float32) + b1_ref[l]
        ff = jnp.maximum(ff, 0.0)
        ff = jnp.dot(ff, w2_ref[l], preferred_element_type=jnp.float32) + b2_ref[l]
        x = _layernorm(x + ff, g2_ref[l], bt2_ref[l])

    # ---- classifier on this (last batch element's) sequence: (S, d) -> (S, C)
    h = jnp.dot(x, cl_w1_ref[...], preferred_element_type=jnp.float32) + cl_b1_ref[...]
    h = _layernorm(h, cl_g_ref[...], cl_bt_ref[...])
    h = jnp.where(h >= 0.0, h, cl_alpha_ref[...] * h)                 # PReLU, alpha per feature
    logits = jnp.dot(h, cl_w2_ref[...], preferred_element_type=jnp.float32) + cl_b2_ref[...]
    o_ref[...] = logits.astype(o_ref.dtype)


def _full_spec(arr):
    n = arr.ndim
    return pl.BlockSpec(arr.shape, lambda i, _n=n: (0,) * _n)


def forward(params, src, *, d_model, nhead, num_classes, pe2d):
    B, S, input_dim = src.shape
    assert S == d_model, "PReLU(num_parameters=d_model) on 3-D input needs seq_len == d_model"
    assert B == S, "PositionalEncoding (S,1,d)+(B,S,d) broadcast needs batch == seq_len"
    assert d_model % nhead == 0
    num_layers = params['wqkv'].shape[0]

    # Only the last batch element's sequence determines the module output; all
    # ops are per-sequence independent, so slice host-side (free) and run a
    # single grid block over S rows.
    src_last = src[B - 1]                                    # (S, input_dim)
    pe_last = pe2d[B - 1][None, :]                           # (1, d): pe indexed by batch idx (quirk)
    ip_alpha = params['ip_alpha']                            # (S, 1): PReLU channel = seq dim

    operands = [
        src_last, pe_last, ip_alpha,
        params['ip_w1'], params['ip_b1'], params['ip_g'], params['ip_bt'],
        params['ip_w2'], params['ip_b2'],
        params['wqkv'], params['bqkv'], params['wo'], params['bo'],
        params['g1'], params['bt1'], params['w1'], params['b1'],
        params['w2'], params['b2'], params['g2'], params['bt2'],
        params['cl_w1'], params['cl_b1'], params['cl_g'], params['cl_bt'],
        params['cl_alpha'], params['cl_w2'], params['cl_b2'],
    ]
    in_specs = [_full_spec(a) for a in operands]
    kernel = functools.partial(
        fused_forward_kernel, num_layers=num_layers, nhead=nhead,
        d_model=d_model, proj_scale=math.sqrt(d_model))

    out = pl.pallas_call(
        kernel,
        out_shape=jax.ShapeDtypeStruct((S, num_classes), src.dtype),
        grid=(1,),
        in_specs=in_specs,
        out_specs=pl.BlockSpec((S, num_classes), lambda i: (0, 0)),
        compiler_params=pltpu.CompilerParams(dimension_semantics=("arbitrary",)),
    )(*operands)
    return out                                               # (S, num_classes)


# -----------------------------------------------------------------------------
# Parameters (deterministic, PyTorch-default-style init), pre-transposed (in,out)
# and stacked (L, ...) per encoder layer. Positional-encoding table.
# -----------------------------------------------------------------------------
def init_params(key, input_dim, d_model, nhead, num_layers, num_classes, dff):
    def lin(k, in_f, out_f):
        k1, k2 = jax.random.split(k)
        bound = 1.0 / math.sqrt(in_f)
        w = jax.random.uniform(k1, (in_f, out_f), jnp.float32, -bound, bound)
        b = jax.random.uniform(k2, (1, out_f), jnp.float32, -bound, bound)
        return w, b

    keys = iter(jax.random.split(key, 4 + 4 * num_layers))
    p = {}
    # input_projection
    p['ip_w1'], p['ip_b1'] = lin(next(keys), input_dim, d_model)
    p['ip_g'] = jnp.ones((1, d_model), jnp.float32)
    p['ip_bt'] = jnp.zeros((1, d_model), jnp.float32)
    p['ip_alpha'] = jnp.full((d_model, 1), 0.25, jnp.float32)  # 3-D PReLU: channel = seq dim
    p['ip_w2'], p['ip_b2'] = lin(next(keys), d_model, d_model)
    # encoder layers (stacked along leading L axis)
    wqkv, bqkv, wo, bo, w1, b1, w2, b2 = ([] for _ in range(8))
    for _ in range(num_layers):
        w_, b_ = lin(next(keys), d_model, 3 * d_model)
        wqkv.append(w_); bqkv.append(b_)
        w_, b_ = lin(next(keys), d_model, d_model)
        wo.append(w_); bo.append(b_)                       # full (d, d): single fused out-proj matmul
        w_, b_ = lin(next(keys), d_model, dff)
        w1.append(w_); b1.append(b_)
        w_, b_ = lin(next(keys), dff, d_model)
        w2.append(w_); b2.append(b_)
    p['wqkv'] = jnp.stack(wqkv); p['bqkv'] = jnp.stack(bqkv)
    p['wo'] = jnp.stack(wo);     p['bo'] = jnp.stack(bo)
    p['w1'] = jnp.stack(w1);     p['b1'] = jnp.stack(b1)
    p['w2'] = jnp.stack(w2);     p['b2'] = jnp.stack(b2)
    p['g1'] = jnp.ones((num_layers, 1, d_model), jnp.float32)
    p['bt1'] = jnp.zeros((num_layers, 1, d_model), jnp.float32)
    p['g2'] = jnp.ones((num_layers, 1, d_model), jnp.float32)
    p['bt2'] = jnp.zeros((num_layers, 1, d_model), jnp.float32)
    # classifier
    p['cl_w1'], p['cl_b1'] = lin(next(keys), d_model, d_model)
    p['cl_g'] = jnp.ones((1, d_model), jnp.float32)
    p['cl_bt'] = jnp.zeros((1, d_model), jnp.float32)
    p['cl_alpha'] = jnp.full((1, d_model), 0.25, jnp.float32)  # 2-D PReLU: channel = feature dim
    p['cl_w2'], p['cl_b2'] = lin(next(keys), d_model, num_classes)
    return p


def positional_encoding(d_model, max_len=5000):
    position = jnp.arange(max_len, dtype=jnp.float32)[:, None]
    div_term = jnp.exp(jnp.arange(0, d_model, 2, dtype=jnp.float32)
                       * (-math.log(10000.0) / d_model))
    pe = jnp.zeros((max_len, d_model), jnp.float32)
    pe = pe.at[:, 0::2].set(jnp.sin(position * div_term))
    pe = pe.at[:, 1::2].set(jnp.cos(position * div_term))
    return pe                                              # (max_len, d_model)


if __name__ == "__main__":
    INPUT_DIM, D_MODEL, NHEAD = 8, 16, 4
    NUM_LAYERS, NUM_CLASSES, DFF = 2, 5, 32
    # The PyTorch module only runs when S == d_model (3-D PReLU channel dim)
    # and B == S (PositionalEncoding broadcast). Reproduce that regime.
    B = S = D_MODEL

    key = jax.random.PRNGKey(0)
    pkey, xkey = jax.random.split(key)
    params = init_params(pkey, INPUT_DIM, D_MODEL, NHEAD, NUM_LAYERS,
                         NUM_CLASSES, DFF)
    src = jax.random.normal(xkey, (B, S, INPUT_DIM), jnp.float32)
    pe2d = positional_encoding(D_MODEL)

    out = forward(params, src, d_model=D_MODEL, nhead=NHEAD,
                  num_classes=NUM_CLASSES, pe2d=pe2d)
    out = jax.block_until_ready(out)
    assert out.shape == (S, NUM_CLASSES), out.shape
    assert bool(jnp.all(jnp.isfinite(out)))
    print("KERNEL_OK")
</pallas_src>

<mosaic_0001>
module attributes {stable_mosaic.version = 11 : i64} {
  func.func @fused_forward_kernel(%arg0: i32, %arg1: memref<16x8xf32, #tpu.memory_space<vmem>>, %arg2: memref<1x16xf32, #tpu.memory_space<vmem>>, %arg3: memref<16x1xf32, #tpu.memory_space<vmem>>, %arg4: memref<8x16xf32, #tpu.memory_space<vmem>>, %arg5: memref<1x16xf32, #tpu.memory_space<vmem>>, %arg6: memref<1x16xf32, #tpu.memory_space<vmem>>, %arg7: memref<1x16xf32, #tpu.memory_space<vmem>>, %arg8: memref<16x16xf32, #tpu.memory_space<vmem>>, %arg9: memref<1x16xf32, #tpu.memory_space<vmem>>, %arg10: memref<2x16x48xf32, #tpu.memory_space<vmem>>, %arg11: memref<2x1x48xf32, #tpu.memory_space<vmem>>, %arg12: memref<2x16x16xf32, #tpu.memory_space<vmem>>, %arg13: memref<2x1x16xf32, #tpu.memory_space<vmem>>, %arg14: memref<2x1x16xf32, #tpu.memory_space<vmem>>, %arg15: memref<2x1x16xf32, #tpu.memory_space<vmem>>, %arg16: memref<2x16x32xf32, #tpu.memory_space<vmem>>, %arg17: memref<2x1x32xf32, #tpu.memory_space<vmem>>, %arg18: memref<2x32x16xf32, #tpu.memory_space<vmem>>, %arg19: memref<2x1x16xf32, #tpu.memory_space<vmem>>, %arg20: memref<2x1x16xf32, #tpu.memory_space<vmem>>, %arg21: memref<2x1x16xf32, #tpu.memory_space<vmem>>, %arg22: memref<16x16xf32, #tpu.memory_space<vmem>>, %arg23: memref<1x16xf32, #tpu.memory_space<vmem>>, %arg24: memref<1x16xf32, #tpu.memory_space<vmem>>, %arg25: memref<1x16xf32, #tpu.memory_space<vmem>>, %arg26: memref<1x16xf32, #tpu.memory_space<vmem>>, %arg27: memref<16x5xf32, #tpu.memory_space<vmem>>, %arg28: memref<1x5xf32, #tpu.memory_space<vmem>>, %arg29: memref<16x5xf32, #tpu.memory_space<vmem>>) attributes {dimension_semantics = [#tpu.dimension_semantics<arbitrary>], iteration_bounds = array<i64: 1>, scalar_prefetch = 0 : i64, scratch_operands = 0 : i64, tpu.core_type = #tpu.core_type<tc>, window_params = [{pipeline_mode = #tpu.pipeline_mode<synchronous>, transform_indices = @transform_0, window_bounds = array<i64: 16, 8>}, {pipeline_mode = #tpu.pipeline_mode<synchronous>, transform_indices = @transform_1, window_bounds = array<i64: 1, 16>}, {pipeline_mode = #tpu.pipeline_mode<synchronous>, transform_indices = @transform_2, window_bounds = array<i64: 16, 1>}, {pipeline_mode = #tpu.pipeline_mode<synchronous>, transform_indices = @transform_3, window_bounds = array<i64: 8, 16>}, {pipeline_mode = #tpu.pipeline_mode<synchronous>, transform_indices = @transform_4, window_bounds = array<i64: 1, 16>}, {pipeline_mode = #tpu.pipeline_mode<synchronous>, transform_indices = @transform_5, window_bounds = array<i64: 1, 16>}, {pipeline_mode = #tpu.pipeline_mode<synchronous>, transform_indices = @transform_6, window_bounds = array<i64: 1, 16>}, {pipeline_mode = #tpu.pipeline_mode<synchronous>, transform_indices = @transform_7, window_bounds = array<i64: 16, 16>}, {pipeline_mode = #tpu.pipeline_mode<synchronous>, transform_indices = @transform_8, window_bounds = array<i64: 1, 16>}, {pipeline_mode = #tpu.pipeline_mode<synchronous>, transform_indices = @transform_9, window_bounds = array<i64: 2, 16, 48>}, {pipeline_mode = #tpu.pipeline_mode<synchronous>, transform_indices = @transform_10, window_bounds = array<i64: 2, 1, 48>}, {pipeline_mode = #tpu.pipeline_mode<synchronous>, transform_indices = @transform_11, window_bounds = array<i64: 2, 16, 16>}, {pipeline_mode = #tpu.pipeline_mode<synchronous>, transform_indices = @transform_12, window_bounds = array<i64: 2, 1, 16>}, {pipeline_mode = #tpu.pipeline_mode<synchronous>, transform_indices = @transform_13, window_bounds = array<i64: 2, 1, 16>}, {pipeline_mode = #tpu.pipeline_mode<synchronous>, transform_indices = @transform_14, window_bounds = array<i64: 2, 1, 16>}, {pipeline_mode = #tpu.pipeline_mode<synchronous>, transform_indices = @transform_15, window_bounds = array<i64: 2, 16, 32>}, {pipeline_mode = #tpu.pipeline_mode<synchronous>, transform_indices = @transform_16, window_bounds = array<i64: 2, 1, 32>}, {pipeline_mode = #tpu.pipeline_mode<synchronous>, transform_indices = @transform_17, window_bounds = array<i64: 2, 32, 16>}, {pipeline_mode = #tpu.pipeline_mode<synchronous>, transform_indices = @transform_18, window_bounds = array<i64: 2, 1, 16>}, {pipeline_mode = #tpu.pipeline_mode<synchronous>, transform_indices = @transform_19, window_bounds = array<i64: 2, 1, 16>}, {pipeline_mode = #tpu.pipeline_mode<synchronous>, transform_indices = @transform_20, window_bounds = array<i64: 2, 1, 16>}, {pipeline_mode = #tpu.pipeline_mode<synchronous>, transform_indices = @transform_21, window_bounds = array<i64: 16, 16>}, {pipeline_mode = #tpu.pipeline_mode<synchronous>, transform_indices = @transform_22, window_bounds = array<i64: 1, 16>}, {pipeline_mode = #tpu.pipeline_mode<synchronous>, transform_indices = @transform_23, window_bounds = array<i64: 1, 16>}, {pipeline_mode = #tpu.pipeline_mode<synchronous>, transform_indices = @transform_24, window_bounds = array<i64: 1, 16>}, {pipeline_mode = #tpu.pipeline_mode<synchronous>, transform_indices = @transform_25, window_bounds = array<i64: 1, 16>}, {pipeline_mode = #tpu.pipeline_mode<synchronous>, transform_indices = @transform_26, window_bounds = array<i64: 16, 5>}, {pipeline_mode = #tpu.pipeline_mode<synchronous>, transform_indices = @transform_27, window_bounds = array<i64: 1, 5>}, {pipeline_mode = #tpu.pipeline_mode<synchronous>, transform_indices = @transform_28, window_bounds = array<i64: 16, 5>}]} {
    %c0 = arith.constant 0 : index
    %c0_0 = arith.constant 0 : index
    %0 = vector.load %arg1[%c0, %c0_0] : memref<16x8xf32, #tpu.memory_space<vmem>>, vector<16x8xf32>
    %c0_1 = arith.constant 0 : index
    %c0_2 = arith.constant 0 : index
    %1 = vector.load %arg4[%c0_1, %c0_2] : memref<8x16xf32, #tpu.memory_space<vmem>>, vector<8x16xf32>
    %cst = arith.constant dense<0.000000e+00> : vector<16x16xf32>
    %2 = tpu.matmul %0, %1, %cst {dimension_numbers = #tpu.dot_dimension_numbers<[1], [0], [0], [1], [0, 0, 1, 1], [], []>} : vector<16x8xf32>, vector<8x16xf32>, vector<16x16xf32> -> vector<16x16xf32>
    %c0_3 = arith.constant 0 : index
    %c0_4 = arith.constant 0 : index
    %3 = vector.load %arg5[%c0_3, %c0_4] : memref<1x16xf32, #tpu.memory_space<vmem>>, vector<1x16xf32>
    %4 = vector.broadcast %3 : vector<1x16xf32> to vector<16x16xf32>
    %5 = arith.addf %2, %4 : vector<16x16xf32>
    %c0_5 = arith.constant 0 : index
    %c0_6 = arith.constant 0 : index
    %6 = vector.load %arg6[%c0_5, %c0_6] : memref<1x16xf32, #tpu.memory_space<vmem>>, vector<1x16xf32>
    %c0_7 = arith.constant 0 : index
    %c0_8 = arith.constant 0 : index
    %7 = vector.load %arg7[%c0_7, %c0_8] : memref<1x16xf32, #tpu.memory_space<vmem>>, vector<1x16xf32>
    %cst_9 = arith.constant dense<0.000000e+00> : vector<16xf32>
    %8 = vector.multi_reduction <add>, %5, %cst_9 [1] : vector<16x16xf32> to vector<16xf32>
    %9 = vector.shape_cast %8 : vector<16xf32> to vector<16x1xf32>
    %cst_10 = arith.constant 1.600000e+01 : f32
    %10 = vector.broadcast %cst_10 : f32 to vector<16x1xf32>
    %11 = arith.divf %9, %10 : vector<16x1xf32>
    %12 = vector.broadcast %11 : vector<16x1xf32> to vector<16x16xf32>
    %13 = arith.subf %5, %12 : vector<16x16xf32>
    %14 = arith.mulf %13, %13 : vector<16x16xf32>
    %cst_11 = arith.constant dense<0.000000e+00> : vector<16xf32>
    %15 = vector.multi_reduction <add>, %14, %cst_11 [1] : vector<16x16xf32> to vector<16xf32>
    %16 = vector.shape_cast %15 : vector<16xf32> to vector<16x1xf32>
    %cst_12 = arith.constant 1.600000e+01 : f32
    %17 = vector.broadcast %cst_12 : f32 to vector<16x1xf32>
    %18 = arith.divf %16, %17 : vector<16x1xf32>
    %19 = vector.broadcast %11 : vector<16x1xf32> to vector<16x16xf32>
    %20 = arith.subf %5, %19 : vector<16x16xf32>
    %cst_13 = arith.constant 9.99999974E-6 : f32
    %21 = vector.broadcast %cst_13 : f32 to vector<16x1xf32>
    %22 = arith.addf %18, %21 : vector<16x1xf32>
    %23 = math.rsqrt %22 : vector<16x1xf32>
    %24 = vector.broadcast %23 : vector<16x1xf32> to vector<16x16xf32>
    %25 = arith.mulf %20, %24 : vector<16x16xf32>
    %26 = vector.broadcast %6 : vector<1x16xf32> to vector<16x16xf32>
    %27 = arith.mulf %25, %26 : vector<16x16xf32>
    %28 = vector.broadcast %7 : vector<1x16xf32> to vector<16x16xf32>
    %29 = arith.addf %27, %28 : vector<16x16xf32>
    %cst_14 = arith.constant 0.000000e+00 : f32
    %30 = vector.broadcast %cst_14 : f32 to vector<16x16xf32>
    %31 = arith.cmpf oge, %29, %30 : vector<16x16xf32>
    %c0_15 = arith.constant 0 : index
    %c0_16 = arith.constant 0 : index
    %32 = vector.load %arg3[%c0_15, %c0_16] : memref<16x1xf32, #tpu.memory_space<vmem>>, vector<16x1xf32>
    %33 = vector.broadcast %32 : vector<16x1xf32> to vector<16x16xf32>
    %34 = arith.mulf %33, %29 : vector<16x16xf32>
    %35 = arith.select %31, %29, %34 : vector<16x16xi1>, vector<16x16xf32>
    %c0_17 = arith.constant 0 : index
    %c0_18 = arith.constant 0 : index
    %36 = vector.load %arg8[%c0_17, %c0_18] : memref<16x16xf32, #tpu.memory_space<vmem>>, vector<16x16xf32>
    %cst_19 = arith.constant dense<0.000000e+00> : vector<16x16xf32>
    %37 = tpu.matmul %35, %36, %cst_19 {dimension_numbers = #tpu.dot_dimension_numbers<[1], [0], [0], [1], [0, 0, 1, 1], [], []>} : vector<16x16xf32>, vector<16x16xf32>, vector<16x16xf32> -> vector<16x16xf32>
    %c0_20 = arith.constant 0 : index
    %c0_21 = arith.constant 0 : index
    %38 = vector.load %arg9[%c0_20, %c0_21] : memref<1x16xf32, #tpu.memory_space<vmem>>, vector<1x16xf32>
    %39 = vector.broadcast %38 : vector<1x16xf32> to vector<16x16xf32>
    %40 = arith.addf %37, %39 : vector<16x16xf32>
    %cst_22 = arith.constant 4.000000e+00 : f32
    %41 = vector.broadcast %cst_22 : f32 to vector<16x16xf32>
    %42 = arith.mulf %40, %41 : vector<16x16xf32>
    %c0_23 = arith.constant 0 : index
    %c0_24 = arith.constant 0 : index
    %43 = vector.load %arg2[%c0_23, %c0_24] : memref<1x16xf32, #tpu.memory_space<vmem>>, vector<1x16xf32>
    %44 = vector.broadcast %43 : vector<1x16xf32> to vector<16x16xf32>
    %45 = arith.addf %42, %44 : vector<16x16xf32>
    %c0_25 = arith.constant 0 : index
    %c0_26 = arith.constant 0 : index
    %c0_27 = arith.constant 0 : index
    %46 = vector.load %arg10[%c0_25, %c0_26, %c0_27] : memref<2x16x48xf32, #tpu.memory_space<vmem>>, vector<1x16x48xf32>
    %47 = vector.shape_cast %46 : vector<1x16x48xf32> to vector<16x48xf32>
    %cst_28 = arith.constant dense<0.000000e+00> : vector<16x48xf32>
    %48 = tpu.matmul %45, %47, %cst_28 {dimension_numbers = #tpu.dot_dimension_numbers<[1], [0], [0], [1], [0, 0, 1, 1], [], []>} : vector<16x16xf32>, vector<16x48xf32>, vector<16x48xf32> -> vector<16x48xf32>
    %c0_29 = arith.constant 0 : index
    %c0_30 = arith.constant 0 : index
    %c0_31 = arith.constant 0 : index
    %49 = vector.load %arg11[%c0_29, %c0_30, %c0_31] : memref<2x1x48xf32, #tpu.memory_space<vmem>>, vector<1x1x48xf32>
    %50 = vector.shape_cast %49 : vector<1x1x48xf32> to vector<1x48xf32>
    %51 = vector.broadcast %50 : vector<1x48xf32> to vector<16x48xf32>
    %52 = arith.addf %48, %51 : vector<16x48xf32>
    %53 = vector.extract_strided_slice %52 {offsets = [0, 0], sizes = [16, 4], strides = [1, 1]} : vector<16x48xf32> to vector<16x4xf32>
    %54 = vector.extract_strided_slice %52 {offsets = [0, 16], sizes = [16, 4], strides = [1, 1]} : vector<16x48xf32> to vector<16x4xf32>
    %55 = vector.extract_strided_slice %52 {offsets = [0, 32], sizes = [16, 4], strides = [1, 1]} : vector<16x48xf32> to vector<16x4xf32>
    %cst_32 = arith.constant dense<0.000000e+00> : vector<16x16xf32>
    %56 = tpu.matmul %53, %54, %cst_32 {dimension_numbers = #tpu.dot_dimension_numbers<[1], [1], [0], [0], [0, 0, 1, 0], [], []>} : vector<16x4xf32>, vector<16x4xf32>, vector<16x16xf32> -> vector<16x16xf32>
    %cst_33 = arith.constant 5.000000e-01 : f32
    %57 = vector.broadcast %cst_33 : f32 to vector<16x16xf32>
    %58 = arith.mulf %56, %57 : vector<16x16xf32>
    %cst_34 = arith.constant dense<0xFF800000> : vector<16xf32>
    %59 = vector.multi_reduction <maximumf>, %58, %cst_34 [1] : vector<16x16xf32> to vector<16xf32>
    %60 = vector.shape_cast %59 : vector<16xf32> to vector<16x1xf32>
    %61 = vector.broadcast %60 : vector<16x1xf32> to vector<16x16xf32>
    %62 = arith.subf %58, %61 : vector<16x16xf32>
    %63 = math.exp %62 : vector<16x16xf32>
    %cst_35 = arith.constant dense<0.000000e+00> : vector<16xf32>
    %64 = vector.multi_reduction <add>, %63, %cst_35 [1] : vector<16x16xf32> to vector<16xf32>
    %65 = vector.shape_cast %64 : vector<16xf32> to vector<16x1xf32>
    %66 = vector.broadcast %65 : vector<16x1xf32> to vector<16x16xf32>
    %67 = arith.divf %63, %66 : vector<16x16xf32>
    %cst_36 = arith.constant dense<0.000000e+00> : vector<16x4xf32>
    %68 = tpu.matmul %67, %55, %cst_36 {dimension_numbers = #tpu.dot_dimension_numbers<[1], [0], [0], [1], [0, 0, 1, 1], [], []>} : vector<16x16xf32>, vector<16x4xf32>, vector<16x4xf32> -> vector<16x4xf32>
    %69 = vector.extract_strided_slice %52 {offsets = [0, 4], sizes = [16, 4], strides = [1, 1]} : vector<16x48xf32> to vector<16x4xf32>
    %70 = vector.extract_strided_slice %52 {offsets = [0, 20], sizes = [16, 4], strides = [1, 1]} : vector<16x48xf32> to vector<16x4xf32>
    %71 = vector.extract_strided_slice %52 {offsets = [0, 36], sizes = [16, 4], strides = [1, 1]} : vector<16x48xf32> to vector<16x4xf32>
    %cst_37 = arith.constant dense<0.000000e+00> : vector<16x16xf32>
    %72 = tpu.matmul %69, %70, %cst_37 {dimension_numbers = #tpu.dot_dimension_numbers<[1], [1], [0], [0], [0, 0, 1, 0], [], []>} : vector<16x4xf32>, vector<16x4xf32>, vector<16x16xf32> -> vector<16x16xf32>
    %cst_38 = arith.constant 5.000000e-01 : f32
    %73 = vector.broadcast %cst_38 : f32 to vector<16x16xf32>
    %74 = arith.mulf %72, %73 : vector<16x16xf32>
    %cst_39 = arith.constant dense<0xFF800000> : vector<16xf32>
    %75 = vector.multi_reduction <maximumf>, %74, %cst_39 [1] : vector<16x16xf32> to vector<16xf32>
    %76 = vector.shape_cast %75 : vector<16xf32> to vector<16x1xf32>
    %77 = vector.broadcast %76 : vector<16x1xf32> to vector<16x16xf32>
    %78 = arith.subf %74, %77 : vector<16x16xf32>
    %79 = math.exp %78 : vector<16x16xf32>
    %cst_40 = arith.constant dense<0.000000e+00> : vector<16xf32>
    %80 = vector.multi_reduction <add>, %79, %cst_40 [1] : vector<16x16xf32> to vector<16xf32>
    %81 = vector.shape_cast %80 : vector<16xf32> to vector<16x1xf32>
    %82 = vector.broadcast %81 : vector<16x1xf32> to vector<16x16xf32>
    %83 = arith.divf %79, %82 : vector<16x16xf32>
    %cst_41 = arith.constant dense<0.000000e+00> : vector<16x4xf32>
    %84 = tpu.matmul %83, %71, %cst_41 {dimension_numbers = #tpu.dot_dimension_numbers<[1], [0], [0], [1], [0, 0, 1, 1], [], []>} : vector<16x16xf32>, vector<16x4xf32>, vector<16x4xf32> -> vector<16x4xf32>
    %85 = vector.extract_strided_slice %52 {offsets = [0, 8], sizes = [16, 4], strides = [1, 1]} : vector<16x48xf32> to vector<16x4xf32>
    %86 = vector.extract_strided_slice %52 {offsets = [0, 24], sizes = [16, 4], strides = [1, 1]} : vector<16x48xf32> to vector<16x4xf32>
    %87 = vector.extract_strided_slice %52 {offsets = [0, 40], sizes = [16, 4], strides = [1, 1]} : vector<16x48xf32> to vector<16x4xf32>
    %cst_42 = arith.constant dense<0.000000e+00> : vector<16x16xf32>
    %88 = tpu.matmul %85, %86, %cst_42 {dimension_numbers = #tpu.dot_dimension_numbers<[1], [1], [0], [0], [0, 0, 1, 0], [], []>} : vector<16x4xf32>, vector<16x4xf32>, vector<16x16xf32> -> vector<16x16xf32>
    %cst_43 = arith.constant 5.000000e-01 : f32
    %89 = vector.broadcast %cst_43 : f32 to vector<16x16xf32>
    %90 = arith.mulf %88, %89 : vector<16x16xf32>
    %cst_44 = arith.constant dense<0xFF800000> : vector<16xf32>
    %91 = vector.multi_reduction <maximumf>, %90, %cst_44 [1] : vector<16x16xf32> to vector<16xf32>
    %92 = vector.shape_cast %91 : vector<16xf32> to vector<16x1xf32>
    %93 = vector.broadcast %92 : vector<16x1xf32> to vector<16x16xf32>
    %94 = arith.subf %90, %93 : vector<16x16xf32>
    %95 = math.exp %94 : vector<16x16xf32>
    %cst_45 = arith.constant dense<0.000000e+00> : vector<16xf32>
    %96 = vector.multi_reduction <add>, %95, %cst_45 [1] : vector<16x16xf32> to vector<16xf32>
    %97 = vector.shape_cast %96 : vector<16xf32> to vector<16x1xf32>
    %98 = vector.broadcast %97 : vector<16x1xf32> to vector<16x16xf32>
    %99 = arith.divf %95, %98 : vector<16x16xf32>
    %cst_46 = arith.constant dense<0.000000e+00> : vector<16x4xf32>
    %100 = tpu.matmul %99, %87, %cst_46 {dimension_numbers = #tpu.dot_dimension_numbers<[1], [0], [0], [1], [0, 0, 1, 1], [], []>} : vector<16x16xf32>, vector<16x4xf32>, vector<16x4xf32> -> vector<16x4xf32>
    %101 = vector.extract_strided_slice %52 {offsets = [0, 12], sizes = [16, 4], strides = [1, 1]} : vector<16x48xf32> to vector<16x4xf32>
    %102 = vector.extract_strided_slice %52 {offsets = [0, 28], sizes = [16, 4], strides = [1, 1]} : vector<16x48xf32> to vector<16x4xf32>
    %103 = vector.extract_strided_slice %52 {offsets = [0, 44], sizes = [16, 4], strides = [1, 1]} : vector<16x48xf32> to vector<16x4xf32>
    %cst_47 = arith.constant dense<0.000000e+00> : vector<16x16xf32>
    %104 = tpu.matmul %101, %102, %cst_47 {dimension_numbers = #tpu.dot_dimension_numbers<[1], [1], [0], [0], [0, 0, 1, 0], [], []>} : vector<16x4xf32>, vector<16x4xf32>, vector<16x16xf32> -> vector<16x16xf32>
    %cst_48 = arith.constant 5.000000e-01 : f32
    %105 = vector.broadcast %cst_48 : f32 to vector<16x16xf32>
    %106 = arith.mulf %104, %105 : vector<16x16xf32>
    %cst_49 = arith.constant dense<0xFF800000> : vector<16xf32>
    %107 = vector.multi_reduction <maximumf>, %106, %cst_49 [1] : vector<16x16xf32> to vector<16xf32>
    %108 = vector.shape_cast %107 : vector<16xf32> to vector<16x1xf32>
    %109 = vector.broadcast %108 : vector<16x1xf32> to vector<16x16xf32>
    %110 = arith.subf %106, %109 : vector<16x16xf32>
    %111 = math.exp %110 : vector<16x16xf32>
    %cst_50 = arith.constant dense<0.000000e+00> : vector<16xf32>
    %112 = vector.multi_reduction <add>, %111, %cst_50 [1] : vector<16x16xf32> to vector<16xf32>
    %113 = vector.shape_cast %112 : vector<16xf32> to vector<16x1xf32>
    %114 = vector.broadcast %113 : vector<16x1xf32> to vector<16x16xf32>
    %115 = arith.divf %111, %114 : vector<16x16xf32>
    %cst_51 = arith.constant dense<0.000000e+00> : vector<16x4xf32>
    %116 = tpu.matmul %115, %103, %cst_51 {dimension_numbers = #tpu.dot_dimension_numbers<[1], [0], [0], [1], [0, 0, 1, 1], [], []>} : vector<16x16xf32>, vector<16x4xf32>, vector<16x4xf32> -> vector<16x4xf32>
    %117 = tpu.concatenate %68, %84, %100, %116 in 1 : vector<16x4xf32>, vector<16x4xf32>, vector<16x4xf32>, vector<16x4xf32> -> vector<16x16xf32>
    %c0_52 = arith.constant 0 : index
    %c0_53 = arith.constant 0 : index
    %c0_54 = arith.constant 0 : index
    %118 = vector.load %arg12[%c0_52, %c0_53, %c0_54] : memref<2x16x16xf32, #tpu.memory_space<vmem>>, vector<1x16x16xf32>
    %119 = vector.shape_cast %118 : vector<1x16x16xf32> to vector<16x16xf32>
    %cst_55 = arith.constant dense<0.000000e+00> : vector<16x16xf32>
    %120 = tpu.matmul %117, %119, %cst_55 {dimension_numbers = #tpu.dot_dimension_numbers<[1], [0], [0], [1], [0, 0, 1, 1], [], []>} : vector<16x16xf32>, vector<16x16xf32>, vector<16x16xf32> -> vector<16x16xf32>
    %c0_56 = arith.constant 0 : index
    %c0_57 = arith.constant 0 : index
    %c0_58 = arith.constant 0 : index
    %121 = vector.load %arg13[%c0_56, %c0_57, %c0_58] : memref<2x1x16xf32, #tpu.memory_space<vmem>>, vector<1x1x16xf32>
    %122 = vector.shape_cast %121 : vector<1x1x16xf32> to vector<1x16xf32>
    %123 = vector.broadcast %122 : vector<1x16xf32> to vector<16x16xf32>
    %124 = arith.addf %120, %123 : vector<16x16xf32>
    %125 = arith.addf %45, %124 : vector<16x16xf32>
    %c0_59 = arith.constant 0 : index
    %c0_60 = arith.constant 0 : index
    %c0_61 = arith.constant 0 : index
    %126 = vector.load %arg14[%c0_59, %c0_60, %c0_61] : memref<2x1x16xf32, #tpu.memory_space<vmem>>, vector<1x1x16xf32>
    %127 = vector.shape_cast %126 : vector<1x1x16xf32> to vector<1x16xf32>
    %c0_62 = arith.constant 0 : index
    %c0_63 = arith.constant 0 : index
    %c0_64 = arith.constant 0 : index
    %128 = vector.load %arg15[%c0_62, %c0_63, %c0_64] : memref<2x1x16xf32, #tpu.memory_space<vmem>>, vector<1x1x16xf32>
    %129 = vector.shape_cast %128 : vector<1x1x16xf32> to vector<1x16xf32>
    %cst_65 = arith.constant dense<0.000000e+00> : vector<16xf32>
    %130 = vector.multi_reduction <add>, %125, %cst_65 [1] : vector<16x16xf32> to vector<16xf32>
    %131 = vector.shape_cast %130 : vector<16xf32> to vector<16x1xf32>
    %cst_66 = arith.constant 1.600000e+01 : f32
    %132 = vector.broadcast %cst_66 : f32 to vector<16x1xf32>
    %133 = arith.divf %131, %132 : vector<16x1xf32>
    %134 = vector.broadcast %133 : vector<16x1xf32> to vector<16x16xf32>
    %135 = arith.subf %125, %134 : vector<16x16xf32>
    %136 = arith.mulf %135, %135 : vector<16x16xf32>
    %cst_67 = arith.constant dense<0.000000e+00> : vector<16xf32>
    %137 = vector.multi_reduction <add>, %136, %cst_67 [1] : vector<16x16xf32> to vector<16xf32>
    %138 = vector.shape_cast %137 : vector<16xf32> to vector<16x1xf32>
    %cst_68 = arith.constant 1.600000e+01 : f32
    %139 = vector.broadcast %cst_68 : f32 to vector<16x1xf32>
    %140 = arith.divf %138, %139 : vector<16x1xf32>
    %141 = vector.broadcast %133 : vector<16x1xf32> to vector<16x16xf32>
    %142 = arith.subf %125, %141 : vector<16x16xf32>
    %cst_69 = arith.constant 9.99999974E-6 : f32
    %143 = vector.broadcast %cst_69 : f32 to vector<16x1xf32>
    %144 = arith.addf %140, %143 : vector<16x1xf32>
    %145 = math.rsqrt %144 : vector<16x1xf32>
    %146 = vector.broadcast %145 : vector<16x1xf32> to vector<16x16xf32>
    %147 = arith.mulf %142, %146 : vector<16x16xf32>
    %148 = vector.broadcast %127 : vector<1x16xf32> to vector<16x16xf32>
    %149 = arith.mulf %147, %148 : vector<16x16xf32>
    %150 = vector.broadcast %129 : vector<1x16xf32> to vector<16x16xf32>
    %151 = arith.addf %149, %150 : vector<16x16xf32>
    %c0_70 = arith.constant 0 : index
    %c0_71 = arith.constant 0 : index
    %c0_72 = arith.constant 0 : index
    %152 = vector.load %arg16[%c0_70, %c0_71, %c0_72] : memref<2x16x32xf32, #tpu.memory_space<vmem>>, vector<1x16x32xf32>
    %153 = vector.shape_cast %152 : vector<1x16x32xf32> to vector<16x32xf32>
    %cst_73 = arith.constant dense<0.000000e+00> : vector<16x32xf32>
    %154 = tpu.matmul %151, %153, %cst_73 {dimension_numbers = #tpu.dot_dimension_numbers<[1], [0], [0], [1], [0, 0, 1, 1], [], []>} : vector<16x16xf32>, vector<16x32xf32>, vector<16x32xf32> -> vector<16x32xf32>
    %c0_74 = arith.constant 0 : index
    %c0_75 = arith.constant 0 : index
    %c0_76 = arith.constant 0 : index
    %155 = vector.load %arg17[%c0_74, %c0_75, %c0_76] : memref<2x1x32xf32, #tpu.memory_space<vmem>>, vector<1x1x32xf32>
    %156 = vector.shape_cast %155 : vector<1x1x32xf32> to vector<1x32xf32>
    %157 = vector.broadcast %156 : vector<1x32xf32> to vector<16x32xf32>
    %158 = arith.addf %154, %157 : vector<16x32xf32>
    %cst_77 = arith.constant 0.000000e+00 : f32
    %159 = vector.broadcast %cst_77 : f32 to vector<16x32xf32>
    %160 = arith.maximumf %158, %159 : vector<16x32xf32>
    %c0_78 = arith.constant 0 : index
    %c0_79 = arith.constant 0 : index
    %c0_80 = arith.constant 0 : index
    %161 = vector.load %arg18[%c0_78, %c0_79, %c0_80] : memref<2x32x16xf32, #tpu.memory_space<vmem>>, vector<1x32x16xf32>
    %162 = vector.shape_cast %161 : vector<1x32x16xf32> to vector<32x16xf32>
    %cst_81 = arith.constant dense<0.000000e+00> : vector<16x16xf32>
    %163 = tpu.matmul %160, %162, %cst_81 {dimension_numbers = #tpu.dot_dimension_numbers<[1], [0], [0], [1], [0, 0, 1, 1], [], []>} : vector<16x32xf32>, vector<32x16xf32>, vector<16x16xf32> -> vector<16x16xf32>
    %c0_82 = arith.constant 0 : index
    %c0_83 = arith.constant 0 : index
    %c0_84 = arith.constant 0 : index
    %164 = vector.load %arg19[%c0_82, %c0_83, %c0_84] : memref<2x1x16xf32, #tpu.memory_space<vmem>>, vector<1x1x16xf32>
    %165 = vector.shape_cast %164 : vector<1x1x16xf32> to vector<1x16xf32>
    %166 = vector.broadcast %165 : vector<1x16xf32> to vector<16x16xf32>
    %167 = arith.addf %163, %166 : vector<16x16xf32>
    %168 = arith.addf %151, %167 : vector<16x16xf32>
    %c0_85 = arith.constant 0 : index
    %c0_86 = arith.constant 0 : index
    %c0_87 = arith.constant 0 : index
    %169 = vector.load %arg20[%c0_85, %c0_86, %c0_87] : memref<2x1x16xf32, #tpu.memory_space<vmem>>, vector<1x1x16xf32>
    %170 = vector.shape_cast %169 : vector<1x1x16xf32> to vector<1x16xf32>
    %c0_88 = arith.constant 0 : index
    %c0_89 = arith.constant 0 : index
    %c0_90 = arith.constant 0 : index
    %171 = vector.load %arg21[%c0_88, %c0_89, %c0_90] : memref<2x1x16xf32, #tpu.memory_space<vmem>>, vector<1x1x16xf32>
    %172 = vector.shape_cast %171 : vector<1x1x16xf32> to vector<1x16xf32>
    %cst_91 = arith.constant dense<0.000000e+00> : vector<16xf32>
    %173 = vector.multi_reduction <add>, %168, %cst_91 [1] : vector<16x16xf32> to vector<16xf32>
    %174 = vector.shape_cast %173 : vector<16xf32> to vector<16x1xf32>
    %cst_92 = arith.constant 1.600000e+01 : f32
    %175 = vector.broadcast %cst_92 : f32 to vector<16x1xf32>
    %176 = arith.divf %174, %175 : vector<16x1xf32>
    %177 = vector.broadcast %176 : vector<16x1xf32> to vector<16x16xf32>
    %178 = arith.subf %168, %177 : vector<16x16xf32>
    %179 = arith.mulf %178, %178 : vector<16x16xf32>
    %cst_93 = arith.constant dense<0.000000e+00> : vector<16xf32>
    %180 = vector.multi_reduction <add>, %179, %cst_93 [1] : vector<16x16xf32> to vector<16xf32>
    %181 = vector.shape_cast %180 : vector<16xf32> to vector<16x1xf32>
    %cst_94 = arith.constant 1.600000e+01 : f32
    %182 = vector.broadcast %cst_94 : f32 to vector<16x1xf32>
    %183 = arith.divf %181, %182 : vector<16x1xf32>
    %184 = vector.broadcast %176 : vector<16x1xf32> to vector<16x16xf32>
    %185 = arith.subf %168, %184 : vector<16x16xf32>
    %cst_95 = arith.constant 9.99999974E-6 : f32
    %186 = vector.broadcast %cst_95 : f32 to vector<16x1xf32>
    %187 = arith.addf %183, %186 : vector<16x1xf32>
    %188 = math.rsqrt %187 : vector<16x1xf32>
    %189 = vector.broadcast %188 : vector<16x1xf32> to vector<16x16xf32>
    %190 = arith.mulf %185, %189 : vector<16x16xf32>
    %191 = vector.broadcast %170 : vector<1x16xf32> to vector<16x16xf32>
    %192 = arith.mulf %190, %191 : vector<16x16xf32>
    %193 = vector.broadcast %172 : vector<1x16xf32> to vector<16x16xf32>
    %194 = arith.addf %192, %193 : vector<16x16xf32>
    %c1 = arith.constant 1 : index
    %c0_96 = arith.constant 0 : index
    %c0_97 = arith.constant 0 : index
    %195 = vector.load %arg10[%c1, %c0_96, %c0_97] : memref<2x16x48xf32, #tpu.memory_space<vmem>>, vector<1x16x48xf32>
    %196 = vector.shape_cast %195 : vector<1x16x48xf32> to vector<16x48xf32>
    %cst_98 = arith.constant dense<0.000000e+00> : vector<16x48xf32>
    %197 = tpu.matmul %194, %196, %cst_98 {dimension_numbers = #tpu.dot_dimension_numbers<[1], [0], [0], [1], [0, 0, 1, 1], [], []>} : vector<16x16xf32>, vector<16x48xf32>, vector<16x48xf32> -> vector<16x48xf32>
    %c1_99 = arith.constant 1 : index
    %c0_100 = arith.constant 0 : index
    %c0_101 = arith.constant 0 : index
    %198 = vector.load %arg11[%c1_99, %c0_100, %c0_101] : memref<2x1x48xf32, #tpu.memory_space<vmem>>, vector<1x1x48xf32>
    %199 = vector.shape_cast %198 : vector<1x1x48xf32> to vector<1x48xf32>
    %200 = vector.broadcast %199 : vector<1x48xf32> to vector<16x48xf32>
    %201 = arith.addf %197, %200 : vector<16x48xf32>
    %202 = vector.extract_strided_slice %201 {offsets = [0, 0], sizes = [16, 4], strides = [1, 1]} : vector<16x48xf32> to vector<16x4xf32>
    %203 = vector.extract_strided_slice %201 {offsets = [0, 16], sizes = [16, 4], strides = [1, 1]} : vector<16x48xf32> to vector<16x4xf32>
    %204 = vector.extract_strided_slice %201 {offsets = [0, 32], sizes = [16, 4], strides = [1, 1]} : vector<16x48xf32> to vector<16x4xf32>
    %cst_102 = arith.constant dense<0.000000e+00> : vector<16x16xf32>
    %205 = tpu.matmul %202, %203, %cst_102 {dimension_numbers = #tpu.dot_dimension_numbers<[1], [1], [0], [0], [0, 0, 1, 0], [], []>} : vector<16x4xf32>, vector<16x4xf32>, vector<16x16xf32> -> vector<16x16xf32>
    %cst_103 = arith.constant 5.000000e-01 : f32
    %206 = vector.broadcast %cst_103 : f32 to vector<16x16xf32>
    %207 = arith.mulf %205, %206 : vector<16x16xf32>
    %cst_104 = arith.constant dense<0xFF800000> : vector<16xf32>
    %208 = vector.multi_reduction <maximumf>, %207, %cst_104 [1] : vector<16x16xf32> to vector<16xf32>
    %209 = vector.shape_cast %208 : vector<16xf32> to vector<16x1xf32>
    %210 = vector.broadcast %209 : vector<16x1xf32> to vector<16x16xf32>
    %211 = arith.subf %207, %210 : vector<16x16xf32>
    %212 = math.exp %211 : vector<16x16xf32>
    %cst_105 = arith.constant dense<0.000000e+00> : vector<16xf32>
    %213 = vector.multi_reduction <add>, %212, %cst_105 [1] : vector<16x16xf32> to vector<16xf32>
    %214 = vector.shape_cast %213 : vector<16xf32> to vector<16x1xf32>
    %215 = vector.broadcast %214 : vector<16x1xf32> to vector<16x16xf32>
    %216 = arith.divf %212, %215 : vector<16x16xf32>
    %cst_106 = arith.constant dense<0.000000e+00> : vector<16x4xf32>
    %217 = tpu.matmul %216, %204, %cst_106 {dimension_numbers = #tpu.dot_dimension_numbers<[1], [0], [0], [1], [0, 0, 1, 1], [], []>} : vector<16x16xf32>, vector<16x4xf32>, vector<16x4xf32> -> vector<16x4xf32>
    %218 = vector.extract_strided_slice %201 {offsets = [0, 4], sizes = [16, 4], strides = [1, 1]} : vector<16x48xf32> to vector<16x4xf32>
    %219 = vector.extract_strided_slice %201 {offsets = [0, 20], sizes = [16, 4], strides = [1, 1]} : vector<16x48xf32> to vector<16x4xf32>
    %220 = vector.extract_strided_slice %201 {offsets = [0, 36], sizes = [16, 4], strides = [1, 1]} : vector<16x48xf32> to vector<16x4xf32>
    %cst_107 = arith.constant dense<0.000000e+00> : vector<16x16xf32>
    %221 = tpu.matmul %218, %219, %cst_107 {dimension_numbers = #tpu.dot_dimension_numbers<[1], [1], [0], [0], [0, 0, 1, 0], [], []>} : vector<16x4xf32>, vector<16x4xf32>, vector<16x16xf32> -> vector<16x16xf32>
    %cst_108 = arith.constant 5.000000e-01 : f32
    %222 = vector.broadcast %cst_108 : f32 to vector<16x16xf32>
    %223 = arith.mulf %221, %222 : vector<16x16xf32>
    %cst_109 = arith.constant dense<0xFF800000> : vector<16xf32>
    %224 = vector.multi_reduction <maximumf>, %223, %cst_109 [1] : vector<16x16xf32> to vector<16xf32>
    %225 = vector.shape_cast %224 : vector<16xf32> to vector<16x1xf32>
    %226 = vector.broadcast %225 : vector<16x1xf32> to vector<16x16xf32>
    %227 = arith.subf %223, %226 : vector<16x16xf32>
    %228 = math.exp %227 : vector<16x16xf32>
    %cst_110 = arith.constant dense<0.000000e+00> : vector<16xf32>
    %229 = vector.multi_reduction <add>, %228, %cst_110 [1] : vector<16x16xf32> to vector<16xf32>
    %230 = vector.shape_cast %229 : vector<16xf32> to vector<16x1xf32>
    %231 = vector.broadcast %230 : vector<16x1xf32> to vector<16x16xf32>
    %232 = arith.divf %228, %231 : vector<16x16xf32>
    %cst_111 = arith.constant dense<0.000000e+00> : vector<16x4xf32>
    %233 = tpu.matmul %232, %220, %cst_111 {dimension_numbers = #tpu.dot_dimension_numbers<[1], [0], [0], [1], [0, 0, 1, 1], [], []>} : vector<16x16xf32>, vector<16x4xf32>, vector<16x4xf32> -> vector<16x4xf32>
    %234 = vector.extract_strided_slice %201 {offsets = [0, 8], sizes = [16, 4], strides = [1, 1]} : vector<16x48xf32> to vector<16x4xf32>
    %235 = vector.extract_strided_slice %201 {offsets = [0, 24], sizes = [16, 4], strides = [1, 1]} : vector<16x48xf32> to vector<16x4xf32>
    %236 = vector.extract_strided_slice %201 {offsets = [0, 40], sizes = [16, 4], strides = [1, 1]} : vector<16x48xf32> to vector<16x4xf32>
    %cst_112 = arith.constant dense<0.000000e+00> : vector<16x16xf32>
    %237 = tpu.matmul %234, %235, %cst_112 {dimension_numbers = #tpu.dot_dimension_numbers<[1], [1], [0], [0], [0, 0, 1, 0], [], []>} : vector<16x4xf32>, vector<16x4xf32>, vector<16x16xf32> -> vector<16x16xf32>
    %cst_113 = arith.constant 5.000000e-01 : f32
    %238 = vector.broadcast %cst_113 : f32 to vector<16x16xf32>
    %239 = arith.mulf %237, %238 : vector<16x16xf32>
    %cst_114 = arith.constant dense<0xFF800000> : vector<16xf32>
    %240 = vector.multi_reduction <maximumf>, %239, %cst_114 [1] : vector<16x16xf32> to vector<16xf32>
    %241 = vector.shape_cast %240 : vector<16xf32> to vector<16x1xf32>
    %242 = vector.broadcast %241 : vector<16x1xf32> to vector<16x16xf32>
    %243 = arith.subf %239, %242 : vector<16x16xf32>
    %244 = math.exp %243 : vector<16x16xf32>
    %cst_115 = arith.constant dense<0.000000e+00> : vector<16xf32>
    %245 = vector.multi_reduction <add>, %244, %cst_115 [1] : vector<16x16xf32> to vector<16xf32>
    %246 = vector.shape_cast %245 : vector<16xf32> to vector<16x1xf32>
    %247 = vector.broadcast %246 : vector<16x1xf32> to vector<16x16xf32>
    %248 = arith.divf %244, %247 : vector<16x16xf32>
    %cst_116 = arith.constant dense<0.000000e+00> : vector<16x4xf32>
    %249 = tpu.matmul %248, %236, %cst_116 {dimension_numbers = #tpu.dot_dimension_numbers<[1], [0], [0], [1], [0, 0, 1, 1], [], []>} : vector<16x16xf32>, vector<16x4xf32>, vector<16x4xf32> -> vector<16x4xf32>
    %250 = vector.extract_strided_slice %201 {offsets = [0, 12], sizes = [16, 4], strides = [1, 1]} : vector<16x48xf32> to vector<16x4xf32>
    %251 = vector.extract_strided_slice %201 {offsets = [0, 28], sizes = [16, 4], strides = [1, 1]} : vector<16x48xf32> to vector<16x4xf32>
    %252 = vector.extract_strided_slice %201 {offsets = [0, 44], sizes = [16, 4], strides = [1, 1]} : vector<16x48xf32> to vector<16x4xf32>
    %cst_117 = arith.constant dense<0.000000e+00> : vector<16x16xf32>
    %253 = tpu.matmul %250, %251, %cst_117 {dimension_numbers = #tpu.dot_dimension_numbers<[1], [1], [0], [0], [0, 0, 1, 0], [], []>} : vector<16x4xf32>, vector<16x4xf32>, vector<16x16xf32> -> vector<16x16xf32>
    %cst_118 = arith.constant 5.000000e-01 : f32
    %254 = vector.broadcast %cst_118 : f32 to vector<16x16xf32>
    %255 = arith.mulf %253, %254 : vector<16x16xf32>
    %cst_119 = arith.constant dense<0xFF800000> : vector<16xf32>
    %256 = vector.multi_reduction <maximumf>, %255, %cst_119 [1] : vector<16x16xf32> to vector<16xf32>
    %257 = vector.shape_cast %256 : vector<16xf32> to vector<16x1xf32>
    %258 = vector.broadcast %257 : vector<16x1xf32> to vector<16x16xf32>
    %259 = arith.subf %255, %258 : vector<16x16xf32>
    %260 = math.exp %259 : vector<16x16xf32>
    %cst_120 = arith.constant dense<0.000000e+00> : vector<16xf32>
    %261 = vector.multi_reduction <add>, %260, %cst_120 [1] : vector<16x16xf32> to vector<16xf32>
    %262 = vector.shape_cast %261 : vector<16xf32> to vector<16x1xf32>
    %263 = vector.broadcast %262 : vector<16x1xf32> to vector<16x16xf32>
    %264 = arith.divf %260, %263 : vector<16x16xf32>
    %cst_121 = arith.constant dense<0.000000e+00> : vector<16x4xf32>
    %265 = tpu.matmul %264, %252, %cst_121 {dimension_numbers = #tpu.dot_dimension_numbers<[1], [0], [0], [1], [0, 0, 1, 1], [], []>} : vector<16x16xf32>, vector<16x4xf32>, vector<16x4xf32> -> vector<16x4xf32>
    %266 = tpu.concatenate %217, %233, %249, %265 in 1 : vector<16x4xf32>, vector<16x4xf32>, vector<16x4xf32>, vector<16x4xf32> -> vector<16x16xf32>
    %c1_122 = arith.constant 1 : index
    %c0_123 = arith.constant 0 : index
    %c0_124 = arith.constant 0 : index
    %267 = vector.load %arg12[%c1_122, %c0_123, %c0_124] : memref<2x16x16xf32, #tpu.memory_space<vmem>>, vector<1x16x16xf32>
    %268 = vector.shape_cast %267 : vector<1x16x16xf32> to vector<16x16xf32>
    %cst_125 = arith.constant dense<0.000000e+00> : vector<16x16xf32>
    %269 = tpu.matmul %266, %268, %cst_125 {dimension_numbers = #tpu.dot_dimension_numbers<[1], [0], [0], [1], [0, 0, 1, 1], [], []>} : vector<16x16xf32>, vector<16x16xf32>, vector<16x16xf32> -> vector<16x16xf32>
    %c1_126 = arith.constant 1 : index
    %c0_127 = arith.constant 0 : index
    %c0_128 = arith.constant 0 : index
    %270 = vector.load %arg13[%c1_126, %c0_127, %c0_128] : memref<2x1x16xf32, #tpu.memory_space<vmem>>, vector<1x1x16xf32>
    %271 = vector.shape_cast %270 : vector<1x1x16xf32> to vector<1x16xf32>
    %272 = vector.broadcast %271 : vector<1x16xf32> to vector<16x16xf32>
    %273 = arith.addf %269, %272 : vector<16x16xf32>
    %274 = arith.addf %194, %273 : vector<16x16xf32>
    %c1_129 = arith.constant 1 : index
    %c0_130 = arith.constant 0 : index
    %c0_131 = arith.constant 0 : index
    %275 = vector.load %arg14[%c1_129, %c0_130, %c0_131] : memref<2x1x16xf32, #tpu.memory_space<vmem>>, vector<1x1x16xf32>
    %276 = vector.shape_cast %275 : vector<1x1x16xf32> to vector<1x16xf32>
    %c1_132 = arith.constant 1 : index
    %c0_133 = arith.constant 0 : index
    %c0_134 = arith.constant 0 : index
    %277 = vector.load %arg15[%c1_132, %c0_133, %c0_134] : memref<2x1x16xf32, #tpu.memory_space<vmem>>, vector<1x1x16xf32>
    %278 = vector.shape_cast %277 : vector<1x1x16xf32> to vector<1x16xf32>
    %cst_135 = arith.constant dense<0.000000e+00> : vector<16xf32>
    %279 = vector.multi_reduction <add>, %274, %cst_135 [1] : vector<16x16xf32> to vector<16xf32>
    %280 = vector.shape_cast %279 : vector<16xf32> to vector<16x1xf32>
    %cst_136 = arith.constant 1.600000e+01 : f32
    %281 = vector.broadcast %cst_136 : f32 to vector<16x1xf32>
    %282 = arith.divf %280, %281 : vector<16x1xf32>
    %283 = vector.broadcast %282 : vector<16x1xf32> to vector<16x16xf32>
    %284 = arith.subf %274, %283 : vector<16x16xf32>
    %285 = arith.mulf %284, %284 : vector<16x16xf32>
    %cst_137 = arith.constant dense<0.000000e+00> : vector<16xf32>
    %286 = vector.multi_reduction <add>, %285, %cst_137 [1] : vector<16x16xf32> to vector<16xf32>
    %287 = vector.shape_cast %286 : vector<16xf32> to vector<16x1xf32>
    %cst_138 = arith.constant 1.600000e+01 : f32
    %288 = vector.broadcast %cst_138 : f32 to vector<16x1xf32>
    %289 = arith.divf %287, %288 : vector<16x1xf32>
    %290 = vector.broadcast %282 : vector<16x1xf32> to vector<16x16xf32>
    %291 = arith.subf %274, %290 : vector<16x16xf32>
    %cst_139 = arith.constant 9.99999974E-6 : f32
    %292 = vector.broadcast %cst_139 : f32 to vector<16x1xf32>
    %293 = arith.addf %289, %292 : vector<16x1xf32>
    %294 = math.rsqrt %293 : vector<16x1xf32>
    %295 = vector.broadcast %294 : vector<16x1xf32> to vector<16x16xf32>
    %296 = arith.mulf %291, %295 : vector<16x16xf32>
    %297 = vector.broadcast %276 : vector<1x16xf32> to vector<16x16xf32>
    %298 = arith.mulf %296, %297 : vector<16x16xf32>
    %299 = vector.broadcast %278 : vector<1x16xf32> to vector<16x16xf32>
    %300 = arith.addf %298, %299 : vector<16x16xf32>
    %c1_140 = arith.constant 1 : index
    %c0_141 = arith.constant 0 : index
    %c0_142 = arith.constant 0 : index
    %301 = vector.load %arg16[%c1_140, %c0_141, %c0_142] : memref<2x16x32xf32, #tpu.memory_space<vmem>>, vector<1x16x32xf32>
    %302 = vector.shape_cast %301 : vector<1x16x32xf32> to vector<16x32xf32>
    %cst_143 = arith.constant dense<0.000000e+00> : vector<16x32xf32>
    %303 = tpu.matmul %300, %302, %cst_143 {dimension_numbers = #tpu.dot_dimension_numbers<[1], [0], [0], [1], [0, 0, 1, 1], [], []>} : vector<16x16xf32>, vector<16x32xf32>, vector<16x32xf32> -> vector<16x32xf32>
    %c1_144 = arith.constant 1 : index
    %c0_145 = arith.constant 0 : index
    %c0_146 = arith.constant 0 : index
    %304 = vector.load %arg17[%c1_144, %c0_145, %c0_146] : memref<2x1x32xf32, #tpu.memory_space<vmem>>, vector<1x1x32xf32>
    %305 = vector.shape_cast %304 : vector<1x1x32xf32> to vector<1x32xf32>
    %306 = vector.broadcast %305 : vector<1x32xf32> to vector<16x32xf32>
    %307 = arith.addf %303, %306 : vector<16x32xf32>
    %cst_147 = arith.constant 0.000000e+00 : f32
    %308 = vector.broadcast %cst_147 : f32 to vector<16x32xf32>
    %309 = arith.maximumf %307, %308 : vector<16x32xf32>
    %c1_148 = arith.constant 1 : index
    %c0_149 = arith.constant 0 : index
    %c0_150 = arith.constant 0 : index
    %310 = vector.load %arg18[%c1_148, %c0_149, %c0_150] : memref<2x32x16xf32, #tpu.memory_space<vmem>>, vector<1x32x16xf32>
    %311 = vector.shape_cast %310 : vector<1x32x16xf32> to vector<32x16xf32>
    %cst_151 = arith.constant dense<0.000000e+00> : vector<16x16xf32>
    %312 = tpu.matmul %309, %311, %cst_151 {dimension_numbers = #tpu.dot_dimension_numbers<[1], [0], [0], [1], [0, 0, 1, 1], [], []>} : vector<16x32xf32>, vector<32x16xf32>, vector<16x16xf32> -> vector<16x16xf32>
    %c1_152 = arith.constant 1 : index
    %c0_153 = arith.constant 0 : index
    %c0_154 = arith.constant 0 : index
    %313 = vector.load %arg19[%c1_152, %c0_153, %c0_154] : memref<2x1x16xf32, #tpu.memory_space<vmem>>, vector<1x1x16xf32>
    %314 = vector.shape_cast %313 : vector<1x1x16xf32> to vector<1x16xf32>
    %315 = vector.broadcast %314 : vector<1x16xf32> to vector<16x16xf32>
    %316 = arith.addf %312, %315 : vector<16x16xf32>
    %317 = arith.addf %300, %316 : vector<16x16xf32>
    %c1_155 = arith.constant 1 : index
    %c0_156 = arith.constant 0 : index
    %c0_157 = arith.constant 0 : index
    %318 = vector.load %arg20[%c1_155, %c0_156, %c0_157] : memref<2x1x16xf32, #tpu.memory_space<vmem>>, vector<1x1x16xf32>
    %319 = vector.shape_cast %318 : vector<1x1x16xf32> to vector<1x16xf32>
    %c1_158 = arith.constant 1 : index
    %c0_159 = arith.constant 0 : index
    %c0_160 = arith.constant 0 : index
    %320 = vector.load %arg21[%c1_158, %c0_159, %c0_160] : memref<2x1x16xf32, #tpu.memory_space<vmem>>, vector<1x1x16xf32>
    %321 = vector.shape_cast %320 : vector<1x1x16xf32> to vector<1x16xf32>
    %cst_161 = arith.constant dense<0.000000e+00> : vector<16xf32>
    %322 = vector.multi_reduction <add>, %317, %cst_161 [1] : vector<16x16xf32> to vector<16xf32>
    %323 = vector.shape_cast %322 : vector<16xf32> to vector<16x1xf32>
    %cst_162 = arith.constant 1.600000e+01 : f32
    %324 = vector.broadcast %cst_162 : f32 to vector<16x1xf32>
    %325 = arith.divf %323, %324 : vector<16x1xf32>
    %326 = vector.broadcast %325 : vector<16x1xf32> to vector<16x16xf32>
    %327 = arith.subf %317, %326 : vector<16x16xf32>
    %328 = arith.mulf %327, %327 : vector<16x16xf32>
    %cst_163 = arith.constant dense<0.000000e+00> : vector<16xf32>
    %329 = vector.multi_reduction <add>, %328, %cst_163 [1] : vector<16x16xf32> to vector<16xf32>
    %330 = vector.shape_cast %329 : vector<16xf32> to vector<16x1xf32>
    %cst_164 = arith.constant 1.600000e+01 : f32
    %331 = vector.broadcast %cst_164 : f32 to vector<16x1xf32>
    %332 = arith.divf %330, %331 : vector<16x1xf32>
    %333 = vector.broadcast %325 : vector<16x1xf32> to vector<16x16xf32>
    %334 = arith.subf %317, %333 : vector<16x16xf32>
    %cst_165 = arith.constant 9.99999974E-6 : f32
    %335 = vector.broadcast %cst_165 : f32 to vector<16x1xf32>
    %336 = arith.addf %332, %335 : vector<16x1xf32>
    %337 = math.rsqrt %336 : vector<16x1xf32>
    %338 = vector.broadcast %337 : vector<16x1xf32> to vector<16x16xf32>
    %339 = arith.mulf %334, %338 : vector<16x16xf32>
    %340 = vector.broadcast %319 : vector<1x16xf32> to vector<16x16xf32>
    %341 = arith.mulf %339, %340 : vector<16x16xf32>
    %342 = vector.broadcast %321 : vector<1x16xf32> to vector<16x16xf32>
    %343 = arith.addf %341, %342 : vector<16x16xf32>
    %c0_166 = arith.constant 0 : index
    %c0_167 = arith.constant 0 : index
    %344 = vector.load %arg22[%c0_166, %c0_167] : memref<16x16xf32, #tpu.memory_space<vmem>>, vector<16x16xf32>
    %cst_168 = arith.constant dense<0.000000e+00> : vector<16x16xf32>
    %345 = tpu.matmul %343, %344, %cst_168 {dimension_numbers = #tpu.dot_dimension_numbers<[1], [0], [0], [1], [0, 0, 1, 1], [], []>} : vector<16x16xf32>, vector<16x16xf32>, vector<16x16xf32> -> vector<16x16xf32>
    %c0_169 = arith.constant 0 : index
    %c0_170 = arith.constant 0 : index
    %346 = vector.load %arg23[%c0_169, %c0_170] : memref<1x16xf32, #tpu.memory_space<vmem>>, vector<1x16xf32>
    %347 = vector.broadcast %346 : vector<1x16xf32> to vector<16x16xf32>
    %348 = arith.addf %345, %347 : vector<16x16xf32>
    %c0_171 = arith.constant 0 : index
    %c0_172 = arith.constant 0 : index
    %349 = vector.load %arg24[%c0_171, %c0_172] : memref<1x16xf32, #tpu.memory_space<vmem>>, vector<1x16xf32>
    %c0_173 = arith.constant 0 : index
    %c0_174 = arith.constant 0 : index
    %350 = vector.load %arg25[%c0_173, %c0_174] : memref<1x16xf32, #tpu.memory_space<vmem>>, vector<1x16xf32>
    %cst_175 = arith.constant dense<0.000000e+00> : vector<16xf32>
    %351 = vector.multi_reduction <add>, %348, %cst_175 [1] : vector<16x16xf32> to vector<16xf32>
    %352 = vector.shape_cast %351 : vector<16xf32> to vector<16x1xf32>
    %cst_176 = arith.constant 1.600000e+01 : f32
    %353 = vector.broadcast %cst_176 : f32 to vector<16x1xf32>
    %354 = arith.divf %352, %353 : vector<16x1xf32>
    %355 = vector.broadcast %354 : vector<16x1xf32> to vector<16x16xf32>
    %356 = arith.subf %348, %355 : vector<16x16xf32>
    %357 = arith.mulf %356, %356 : vector<16x16xf32>
    %cst_177 = arith.constant dense<0.000000e+00> : vector<16xf32>
    %358 = vector.multi_reduction <add>, %357, %cst_177 [1] : vector<16x16xf32> to vector<16xf32>
    %359 = vector.shape_cast %358 : vector<16xf32> to vector<16x1xf32>
    %cst_178 = arith.constant 1.600000e+01 : f32
    %360 = vector.broadcast %cst_178 : f32 to vector<16x1xf32>
    %361 = arith.divf %359, %360 : vector<16x1xf32>
    %362 = vector.broadcast %354 : vector<16x1xf32> to vector<16x16xf32>
    %363 = arith.subf %348, %362 : vector<16x16xf32>
    %cst_179 = arith.constant 9.99999974E-6 : f32
    %364 = vector.broadcast %cst_179 : f32 to vector<16x1xf32>
    %365 = arith.addf %361, %364 : vector<16x1xf32>
    %366 = math.rsqrt %365 : vector<16x1xf32>
    %367 = vector.broadcast %366 : vector<16x1xf32> to vector<16x16xf32>
    %368 = arith.mulf %363, %367 : vector<16x16xf32>
    %369 = vector.broadcast %349 : vector<1x16xf32> to vector<16x16xf32>
    %370 = arith.mulf %368, %369 : vector<16x16xf32>
    %371 = vector.broadcast %350 : vector<1x16xf32> to vector<16x16xf32>
    %372 = arith.addf %370, %371 : vector<16x16xf32>
    %cst_180 = arith.constant 0.000000e+00 : f32
    %373 = vector.broadcast %cst_180 : f32 to vector<16x16xf32>
    %374 = arith.cmpf oge, %372, %373 : vector<16x16xf32>
    %c0_181 = arith.constant 0 : index
    %c0_182 = arith.constant 0 : index
    %375 = vector.load %arg26[%c0_181, %c0_182] : memref<1x16xf32, #tpu.memory_space<vmem>>, vector<1x16xf32>
    %376 = vector.broadcast %375 : vector<1x16xf32> to vector<16x16xf32>
    %377 = arith.mulf %376, %372 : vector<16x16xf32>
    %378 = arith.select %374, %372, %377 : vector<16x16xi1>, vector<16x16xf32>
    %c0_183 = arith.constant 0 : index
    %c0_184 = arith.constant 0 : index
    %379 = vector.load %arg27[%c0_183, %c0_184] : memref<16x5xf32, #tpu.memory_space<vmem>>, vector<16x5xf32>
    %cst_185 = arith.constant dense<0.000000e+00> : vector<16x5xf32>
    %380 = tpu.matmul %378, %379, %cst_185 {dimension_numbers = #tpu.dot_dimension_numbers<[1], [0], [0], [1], [0, 0, 1, 1], [], []>} : vector<16x16xf32>, vector<16x5xf32>, vector<16x5xf32> -> vector<16x5xf32>
    %c0_186 = arith.constant 0 : index
    %c0_187 = arith.constant 0 : index
    %381 = vector.load %arg28[%c0_186, %c0_187] : memref<1x5xf32, #tpu.memory_space<vmem>>, vector<1x5xf32>
    %382 = vector.broadcast %381 : vector<1x5xf32> to vector<16x5xf32>
    %383 = arith.addf %380, %382 : vector<16x5xf32>
    %c0_188 = arith.constant 0 : index
    %c0_189 = arith.constant 0 : index
    %384 = vector.load %arg29[%c0_188, %c0_189] : memref<16x5xf32, #tpu.memory_space<vmem>>, vector<16x5xf32>
    tpu.vector_store %arg29[%c0_188, %c0_189], %383 {strides = array<i32>} : memref<16x5xf32, #tpu.memory_space<vmem>>, vector<16x5xf32>,
    return
  }
  func.func @transform_0(%arg0: i32) -> (i32, i32) {
    %c0_i32 = arith.constant 0 : i32
    %c0_i32_0 = arith.constant 0 : i32
    %c0_i32_1 = arith.constant 0 : i32
    return %c0_i32, %c0_i32_0 : i32, i32
  }
  func.func @transform_1(%arg0: i32) -> (i32, i32) {
    %c0_i32 = arith.constant 0 : i32
    %c0_i32_0 = arith.constant 0 : i32
    %c0_i32_1 = arith.constant 0 : i32
    return %c0_i32, %c0_i32_0 : i32, i32
  }
  func.func @transform_2(%arg0: i32) -> (i32, i32) {
    %c0_i32 = arith.constant 0 : i32
    %c0_i32_0 = arith.constant 0 : i32
    %c0_i32_1 = arith.constant 0 : i32
    return %c0_i32, %c0_i32_0 : i32, i32
  }
  func.func @transform_3(%arg0: i32) -> (i32, i32) {
    %c0_i32 = arith.constant 0 : i32
    %c0_i32_0 = arith.constant 0 : i32
    %c0_i32_1 = arith.constant 0 : i32
    return %c0_i32, %c0_i32_0 : i32, i32
  }
  func.func @transform_4(%arg0: i32) -> (i32, i32) {
    %c0_i32 = arith.constant 0 : i32
    %c0_i32_0 = arith.constant 0 : i32
    %c0_i32_1 = arith.constant 0 : i32
    return %c0_i32, %c0_i32_0 : i32, i32
  }
  func.func @transform_5(%arg0: i32) -> (i32, i32) {
    %c0_i32 = arith.constant 0 : i32
    %c0_i32_0 = arith.constant 0 : i32
    %c0_i32_1 = arith.constant 0 : i32
    return %c0_i32, %c0_i32_0 : i32, i32
  }
  func.func @transform_6(%arg0: i32) -> (i32, i32) {
    %c0_i32 = arith.constant 0 : i32
    %c0_i32_0 = arith.constant 0 : i32
    %c0_i32_1 = arith.constant 0 : i32
    return %c0_i32, %c0_i32_0 : i32, i32
  }
  func.func @transform_7(%arg0: i32) -> (i32, i32) {
    %c0_i32 = arith.constant 0 : i32
    %c0_i32_0 = arith.constant 0 : i32
    %c0_i32_1 = arith.constant 0 : i32
    return %c0_i32, %c0_i32_0 : i32, i32
  }
  func.func @transform_8(%arg0: i32) -> (i32, i32) {
    %c0_i32 = arith.constant 0 : i32
    %c0_i32_0 = arith.constant 0 : i32
    %c0_i32_1 = arith.constant 0 : i32
    return %c0_i32, %c0_i32_0 : i32, i32
  }
  func.func @transform_9(%arg0: i32) -> (i32, i32, i32) {
    %c0_i32 = arith.constant 0 : i32
    %c0_i32_0 = arith.constant 0 : i32
    %c0_i32_1 = arith.constant 0 : i32
    %c0_i32_2 = arith.constant 0 : i32
    return %c0_i32, %c0_i32_0, %c0_i32_1 : i32, i32, i32
  }
  func.func @transform_10(%arg0: i32) -> (i32, i32, i32) {
    %c0_i32 = arith.constant 0 : i32
    %c0_i32_0 = arith.constant 0 : i32
    %c0_i32_1 = arith.constant 0 : i32
    %c0_i32_2 = arith.constant 0 : i32
    return %c0_i32, %c0_i32_0, %c0_i32_1 : i32, i32, i32
  }
  func.func @transform_11(%arg0: i32) -> (i32, i32, i32) {
    %c0_i32 = arith.constant 0 : i32
    %c0_i32_0 = arith.constant 0 : i32
    %c0_i32_1 = arith.constant 0 : i32
    %c0_i32_2 = arith.constant 0 : i32
    return %c0_i32, %c0_i32_0, %c0_i32_1 : i32, i32, i32
  }
  func.func @transform_12(%arg0: i32) -> (i32, i32, i32) {
    %c0_i32 = arith.constant 0 : i32
    %c0_i32_0 = arith.constant 0 : i32
    %c0_i32_1 = arith.constant 0 : i32
    %c0_i32_2 = arith.constant 0 : i32
    return %c0_i32, %c0_i32_0, %c0_i32_1 : i32, i32, i32
  }
  func.func @transform_13(%arg0: i32) -> (i32, i32, i32) {
    %c0_i32 = arith.constant 0 : i32
    %c0_i32_0 = arith.constant 0 : i32
    %c0_i32_1 = arith.constant 0 : i32
    %c0_i32_2 = arith.constant 0 : i32
    return %c0_i32, %c0_i32_0, %c0_i32_1 : i32, i32, i32
  }
  func.func @transform_14(%arg0: i32) -> (i32, i32, i32) {
    %c0_i32 = arith.constant 0 : i32
    %c0_i32_0 = arith.constant 0 : i32
    %c0_i32_1 = arith.constant 0 : i32
    %c0_i32_2 = arith.constant 0 : i32
    return %c0_i32, %c0_i32_0, %c0_i32_1 : i32, i32, i32
  }
  func.func @transform_15(%arg0: i32) -> (i32, i32, i32) {
    %c0_i32 = arith.constant 0 : i32
    %c0_i32_0 = arith.constant 0 : i32
    %c0_i32_1 = arith.constant 0 : i32
    %c0_i32_2 = arith.constant 0 : i32
    return %c0_i32, %c0_i32_0, %c0_i32_1 : i32, i32, i32
  }
  func.func @transform_16(%arg0: i32) -> (i32, i32, i32) {
    %c0_i32 = arith.constant 0 : i32
    %c0_i32_0 = arith.constant 0 : i32
    %c0_i32_1 = arith.constant 0 : i32
    %c0_i32_2 = arith.constant 0 : i32
    return %c0_i32, %c0_i32_0, %c0_i32_1 : i32, i32, i32
  }
  func.func @transform_17(%arg0: i32) -> (i32, i32, i32) {
    %c0_i32 = arith.constant 0 : i32
    %c0_i32_0 = arith.constant 0 : i32
    %c0_i32_1 = arith.constant 0 : i32
    %c0_i32_2 = arith.constant 0 : i32
    return %c0_i32, %c0_i32_0, %c0_i32_1 : i32, i32, i32
  }
  func.func @transform_18(%arg0: i32) -> (i32, i32, i32) {
    %c0_i32 = arith.constant 0 : i32
    %c0_i32_0 = arith.constant 0 : i32
    %c0_i32_1 = arith.constant 0 : i32
    %c0_i32_2 = arith.constant 0 : i32
    return %c0_i32, %c0_i32_0, %c0_i32_1 : i32, i32, i32
  }
  func.func @transform_19(%arg0: i32) -> (i32, i32, i32) {
    %c0_i32 = arith.constant 0 : i32
    %c0_i32_0 = arith.constant 0 : i32
    %c0_i32_1 = arith.constant 0 : i32
    %c0_i32_2 = arith.constant 0 : i32
    return %c0_i32, %c0_i32_0, %c0_i32_1 : i32, i32, i32
  }
  func.func @transform_20(%arg0: i32) -> (i32, i32, i32) {
    %c0_i32 = arith.constant 0 : i32
    %c0_i32_0 = arith.constant 0 : i32
    %c0_i32_1 = arith.constant 0 : i32
    %c0_i32_2 = arith.constant 0 : i32
    return %c0_i32, %c0_i32_0, %c0_i32_1 : i32, i32, i32
  }
  func.func @transform_21(%arg0: i32) -> (i32, i32) {
    %c0_i32 = arith.constant 0 : i32
    %c0_i32_0 = arith.constant 0 : i32
    %c0_i32_1 = arith.constant 0 : i32
    return %c0_i32, %c0_i32_0 : i32, i32
  }
  func.func @transform_22(%arg0: i32) -> (i32, i32) {
    %c0_i32 = arith.constant 0 : i32
    %c0_i32_0 = arith.constant 0 : i32
    %c0_i32_1 = arith.constant 0 : i32
    return %c0_i32, %c0_i32_0 : i32, i32
  }
  func.func @transform_23(%arg0: i32) -> (i32, i32) {
    %c0_i32 = arith.constant 0 : i32
    %c0_i32_0 = arith.constant 0 : i32
    %c0_i32_1 = arith.constant 0 : i32
    return %c0_i32, %c0_i32_0 : i32, i32
  }
  func.func @transform_24(%arg0: i32) -> (i32, i32) {
    %c0_i32 = arith.constant 0 : i32
    %c0_i32_0 = arith.constant 0 : i32
    %c0_i32_1 = arith.constant 0 : i32
    return %c0_i32, %c0_i32_0 : i32, i32
  }
  func.func @transform_25(%arg0: i32) -> (i32, i32) {
    %c0_i32 = arith.constant 0 : i32
    %c0_i32_0 = arith.constant 0 : i32
    %c0_i32_1 = arith.constant 0 : i32
    return %c0_i32, %c0_i32_0 : i32, i32
  }
  func.func @transform_26(%arg0: i32) -> (i32, i32) {
    %c0_i32 = arith.constant 0 : i32
    %c0_i32_0 = arith.constant 0 : i32
    %c0_i32_1 = arith.constant 0 : i32
    return %c0_i32, %c0_i32_0 : i32, i32
  }
  func.func @transform_27(%arg0: i32) -> (i32, i32) {
    %c0_i32 = arith.constant 0 : i32
    %c0_i32_0 = arith.constant 0 : i32
    %c0_i32_1 = arith.constant 0 : i32
    return %c0_i32, %c0_i32_0 : i32, i32
  }
  func.func @transform_28(%arg0: i32) -> (i32, i32) {
    %c0_i32 = arith.constant 0 : i32
    %c0_i32_0 = arith.constant 0 : i32
    %c0_i32_1 = arith.constant 0 : i32
    return %c0_i32, %c0_i32_0 : i32, i32
  }
}

</mosaic_0001>

<llo_original>
// kernel: tpu_custom_call.1
$region0: #{tpu_custom_call.1}
  #allocation0 [shape = 'u32[]', space=smem, size = 0x4, offset = 0x4, fixed_abs, tag = 'smem constant byte address 0x4 - core index']
  #allocation1 [shape = 'u32[144,128]{1,0:T(1,128)}', space=vmem, size = 0x12000, scoped, tag = 'internal scratch']
  %s0 = inlined_call_operand.vmem [shape: f32[16,8], index: 0, kind: input, shape index: {}]
  %s1 = inlined_call_operand.hbm [shape: f32[1,16], index: 1, kind: input, shape index: {}]
  %s2 = inlined_call_operand.vmem [shape: f32[16,1], index: 2, kind: input, shape index: {}]
  %s3 = inlined_call_operand.hbm [shape: f32[8,16], index: 3, kind: input, shape index: {}]
  %s4 = inlined_call_operand.hbm [shape: f32[1,16], index: 4, kind: input, shape index: {}]
  %s5 = inlined_call_operand.vmem [shape: f32[1,16], index: 5, kind: input, shape index: {}]
  %s6 = inlined_call_operand.hbm [shape: f32[1,16], index: 6, kind: input, shape index: {}]
  %s7 = inlined_call_operand.vmem [shape: f32[16,16], index: 7, kind: input, shape index: {}]
  %s8 = inlined_call_operand.vmem [shape: f32[1,16], index: 8, kind: input, shape index: {}]
  %s9 = inlined_call_operand.vmem [shape: f32[2,16,48], index: 9, kind: input, shape index: {}]
  %s10 = inlined_call_operand.vmem [shape: f32[2,1,48], index: 10, kind: input, shape index: {}]
  %s11 = inlined_call_operand.vmem [shape: f32[2,16,16], index: 11, kind: input, shape index: {}]
  %s12 = inlined_call_operand.vmem [shape: f32[2,1,16], index: 12, kind: input, shape index: {}]
  %s13 = inlined_call_operand.vmem [shape: f32[2,1,16], index: 13, kind: input, shape index: {}]
  %s14 = inlined_call_operand.vmem [shape: f32[2,1,16], index: 14, kind: input, shape index: {}]
  %s15 = inlined_call_operand.vmem [shape: f32[2,16,32], index: 15, kind: input, shape index: {}]
  %s16 = inlined_call_operand.vmem [shape: f32[2,1,32], index: 16, kind: input, shape index: {}]
  %s17 = inlined_call_operand.vmem [shape: f32[2,32,16], index: 17, kind: input, shape index: {}]
  %s18 = inlined_call_operand.vmem [shape: f32[2,1,16], index: 18, kind: input, shape index: {}]
  %s19 = inlined_call_operand.vmem [shape: f32[2,1,16], index: 19, kind: input, shape index: {}]
  %s20 = inlined_call_operand.vmem [shape: f32[2,1,16], index: 20, kind: input, shape index: {}]
  %s21 = inlined_call_operand.vmem [shape: f32[16,16], index: 21, kind: input, shape index: {}]
  %s22 = inlined_call_operand.vmem [shape: f32[1,16], index: 22, kind: input, shape index: {}]
  %s23 = inlined_call_operand.vmem [shape: f32[1,16], index: 23, kind: input, shape index: {}]
  %s24 = inlined_call_operand.vmem [shape: f32[1,16], index: 24, kind: input, shape index: {}]
  %s25 = inlined_call_operand.vmem [shape: f32[1,16], index: 25, kind: input, shape index: {}]
  %s26 = inlined_call_operand.vmem [shape: f32[16,5], index: 26, kind: input, shape index: {}]
  %s27 = inlined_call_operand.vmem [shape: f32[1,5], index: 27, kind: input, shape index: {}]
  %s28 = inlined_call_operand.vmem [shape: f32[16,5], index: 28, kind: output, shape index: {}]
  %s29 = sld [smem:[#allocation0]]
  $region138: #{tpu_custom_call.1} parent=0
    _
  %s31 = ssub.s32 1, %s29
  %s32 = scalar_select 0, %s31, %s29
  $region1: #{tpu_custom_call.1} parent=0
    #allocation2 [shape = 'u8[512]{0}', space=vmem, size = 0x400, scoped, tag = 'input window, operand 1, single buffered']
    #allocation3 [shape = 's32[1]{0}', space=sflag, size = 0x4, scoped, tag = 'scoped memory for tpu_custom_call.1']
    #allocation4 [shape = 'u8[4096]{0}', space=vmem, size = 0x1000, scoped, tag = 'input window, operand 3, single buffered']
    #allocation5 [shape = 's32[1]{0}', space=sflag, size = 0x4, scoped, tag = 'scoped memory for tpu_custom_call.1']
    #allocation6 [shape = 'u8[512]{0}', space=vmem, size = 0x400, scoped, tag = 'input window, operand 4, single buffered']
    #allocation7 [shape = 'u8[512]{0}', space=vmem, size = 0x400, scoped, tag = 'input window, operand 6, single buffered']
    #allocation8 [shape = 's32[1]{0}', space=sflag, size = 0x4, scoped, tag = 'scoped memory for tpu_custom_call.1']
    %33 = vsyncpa [#allocation3], 0
    %34 = vsyncpa [#allocation5], 0
    %35 = vsyncpa [#allocation8], 0
    // Predicated region
    $region2: #{tpu_custom_call.1} parent=1 // pred_check
      _
    $region3: #{tpu_custom_call.1} parent=1 // pred_check_branch
      %37 = sbr.rel (0) target = $region5
    $region4: #{tpu_custom_call.1} parent=1 // pred_region
      _
    $region5: #{tpu_custom_call.1} parent=1 // pred_fallthru
      _
    // Predicated region
    $region6: #{tpu_custom_call.1} parent=1 // pred_check
      _
    $region7: #{tpu_custom_call.1} parent=1 // pred_check_branch
      %39 = sbr.rel (0) target = $region9
    $region8: #{tpu_custom_call.1} parent=1 // pred_region
      %s41 = ssub.s32 16, 16
      %42 = vsyncadd [#allocation3], %s41
      %s44 = sshll.u32 [#allocation2], 4
      %s45 = int_to_ptr.vmem [resolvable:$true] %s44
      %47 = dma.hbm_to_vmem [thread:$0]  %s1, 16, %s45, [#allocation3]
    $region9: #{tpu_custom_call.1} parent=1 // pred_fallthru
      _
    // Predicated region
    $region10: #{tpu_custom_call.1} parent=1 // pred_check
      _
    $region11: #{tpu_custom_call.1} parent=1 // pred_check_branch
      %49 = sbr.rel (0) target = $region13
    $region12: #{tpu_custom_call.1} parent=1 // pred_region
      _
    $region13: #{tpu_custom_call.1} parent=1 // pred_fallthru
      _
    // Predicated region
    $region14: #{tpu_custom_call.1} parent=1 // pred_check
      _
    $region15: #{tpu_custom_call.1} parent=1 // pred_check_branch
      %51 = sbr.rel (0) target = $region17
    $region16: #{tpu_custom_call.1} parent=1 // pred_region
      %s53 = ssub.s32 128, 128
      %54 = vsyncadd [#allocation5], %s53
      %s56 = sshll.u32 [#allocation4], 4
      %s57 = int_to_ptr.vmem [resolvable:$true] %s56
      %59 = dma.hbm_to_vmem [thread:$0]  %s3, 128, %s57, [#allocation5]
    $region17: #{tpu_custom_call.1} parent=1 // pred_fallthru
      _
    // Predicated region
    $region18: #{tpu_custom_call.1} parent=1 // pred_check
      _
    $region19: #{tpu_custom_call.1} parent=1 // pred_check_branch
      %61 = sbr.rel (0) target = $region21
    $region20: #{tpu_custom_call.1} parent=1 // pred_region
      %s63 = ssub.s32 16, 16
      %64 = vsyncadd [#allocation5], %s63
      %s66 = sshll.u32 [#allocation6], 4
      %s67 = int_to_ptr.vmem [resolvable:$true] %s66
      %69 = dma.hbm_to_vmem [thread:$0]  %s4, 16, %s67, [#allocation5]
    $region21: #{tpu_custom_call.1} parent=1 // pred_fallthru
      _
    // Predicated region
    $region22: #{tpu_custom_call.1} parent=1 // pred_check
      _
    $region23: #{tpu_custom_call.1} parent=1 // pred_check_branch
      %71 = sbr.rel (0) target = $region25
    $region24: #{tpu_custom_call.1} parent=1 // pred_region
      _
    $region25: #{tpu_custom_call.1} parent=1 // pred_fallthru
      _
    // Predicated region
    $region26: #{tpu_custom_call.1} parent=1 // pred_check
      _
    $region27: #{tpu_custom_call.1} parent=1 // pred_check_branch
      %73 = sbr.rel (0) target = $region29
    $region28: #{tpu_custom_call.1} parent=1 // pred_region
      %s75 = ssub.s32 16, 16
      %76 = vsyncadd [#allocation8], %s75
      %s78 = sshll.u32 [#allocation7], 4
      %s79 = int_to_ptr.vmem [resolvable:$true] %s78
      %81 = dma.hbm_to_vmem [thread:$0]  %s6, 16, %s79, [#allocation8]
    $region29: #{tpu_custom_call.1} parent=1 // pred_fallthru
      _
    // Predicated region
    $region30: #{tpu_custom_call.1} parent=1 // pred_check
      _
    $region31: #{tpu_custom_call.1} parent=1 // pred_check_branch
      %83 = sbr.rel (0) target = $region33
    $region32: #{tpu_custom_call.1} parent=1 // pred_region
      _
    $region33: #{tpu_custom_call.1} parent=1 // pred_fallthru
      _
    // Predicated region
    $region34: #{tpu_custom_call.1} parent=1 // pred_check
      _
    $region35: #{tpu_custom_call.1} parent=1 // pred_check_branch
      %85 = sbr.rel (0) target = $region37
    $region36: #{tpu_custom_call.1} parent=1 // pred_region
      _
    $region37: #{tpu_custom_call.1} parent=1 // pred_fallthru
      _
    // Predicated region
    $region38: #{tpu_custom_call.1} parent=1 // pred_check
      _
    $region39: #{tpu_custom_call.1} parent=1 // pred_check_branch
      %87 = sbr.rel (0) target = $region41
    $region40: #{tpu_custom_call.1} parent=1 // pred_region
      _
    $region41: #{tpu_custom_call.1} parent=1 // pred_fallthru
      _
    // Predicated region
    $region42: #{tpu_custom_call.1} parent=1 // pred_check
      _
    $region43: #{tpu_custom_call.1} parent=1 // pred_check_branch
      %89 = sbr.rel (0) target = $region45
    $region44: #{tpu_custom_call.1} parent=1 // pred_region
      _
    $region45: #{tpu_custom_call.1} parent=1 // pred_fallthru
      _
    // Predicated region
    $region46: #{tpu_custom_call.1} parent=1 // pred_check
      _
    $region47: #{tpu_custom_call.1} parent=1 // pred_check_branch
      %91 = sbr.rel (0) target = $region49
    $region48: #{tpu_custom_call.1} parent=1 // pred_region
      _
    $region49: #{tpu_custom_call.1} parent=1 // pred_fallthru
      _
    // Predicated region
    $region50: #{tpu_custom_call.1} parent=1 // pred_check
      _
    $region51: #{tpu_custom_call.1} parent=1 // pred_check_branch
      %93 = sbr.rel (0) target = $region53
    $region52: #{tpu_custom_call.1} parent=1 // pred_region
      _
    $region53: #{tpu_custom_call.1} parent=1 // pred_fallthru
      _
    // Predicated region
    $region54: #{tpu_custom_call.1} parent=1 // pred_check
      _
    $region55: #{tpu_custom_call.1} parent=1 // pred_check_branch
      %95 = sbr.rel (0) target = $region57
    $region56: #{tpu_custom_call.1} parent=1 // pred_region
      _
    $region57: #{tpu_custom_call.1} parent=1 // pred_fallthru
      _
    // Predicated region
    $region58: #{tpu_custom_call.1} parent=1 // pred_check
      _
    $region59: #{tpu_custom_call.1} parent=1 // pred_check_branch
      %97 = sbr.rel (0) target = $region61
    $region60: #{tpu_custom_call.1} parent=1 // pred_region
      _
    $region61: #{tpu_custom_call.1} parent=1 // pred_fallthru
      _
    // Predicated region
    $region62: #{tpu_custom_call.1} parent=1 // pred_check
      _
    $region63: #{tpu_custom_call.1} parent=1 // pred_check_branch
      %99 = sbr.rel (0) target = $region65
    $region64: #{tpu_custom_call.1} parent=1 // pred_region
      _
    $region65: #{tpu_custom_call.1} parent=1 // pred_fallthru
      _
    // Predicated region
    $region66: #{tpu_custom_call.1} parent=1 // pred_check
      _
    $region67: #{tpu_custom_call.1} parent=1 // pred_check_branch
      %101 = sbr.rel (0) target = $region69
    $region68: #{tpu_custom_call.1} parent=1 // pred_region
      _
    $region69: #{tpu_custom_call.1} parent=1 // pred_fallthru
      _
    // Predicated region
    $region70: #{tpu_custom_call.1} parent=1 // pred_check
      _
    $region71: #{tpu_custom_call.1} parent=1 // pred_check_branch
      %103 = sbr.rel (0) target = $region73
    $region72: #{tpu_custom_call.1} parent=1 // pred_region
      _
    $region73: #{tpu_custom_call.1} parent=1 // pred_fallthru
      _
    // Predicated region
    $region74: #{tpu_custom_call.1} parent=1 // pred_check
      _
    $region75: #{tpu_custom_call.1} parent=1 // pred_check_branch
      %105 = sbr.rel (0) target = $region77
    $region76: #{tpu_custom_call.1} parent=1 // pred_region
      _
    $region77: #{tpu_custom_call.1} parent=1 // pred_fallthru
      _
    // Predicated region
    $region78: #{tpu_custom_call.1} parent=1 // pred_check
      _
    $region79: #{tpu_custom_call.1} parent=1 // pred_check_branch
      %107 = sbr.rel (0) target = $region81
    $region80: #{tpu_custom_call.1} parent=1 // pred_region
      _
    $region81: #{tpu_custom_call.1} parent=1 // pred_fallthru
      _
    // Predicated region
    $region82: #{tpu_custom_call.1} parent=1 // pred_check
      _
    $region83: #{tpu_custom_call.1} parent=1 // pred_check_branch
      %109 = sbr.rel (0) target = $region85
    $region84: #{tpu_custom_call.1} parent=1 // pred_region
      _
    $region85: #{tpu_custom_call.1} parent=1 // pred_fallthru
      _
    // Predicated region
    $region86: #{tpu_custom_call.1} parent=1 // pred_check
      _
    $region87: #{tpu_custom_call.1} parent=1 // pred_check_branch
      %111 = sbr.rel (0) target = $region89
    $region88: #{tpu_custom_call.1} parent=1 // pred_region
      _
    $region89: #{tpu_custom_call.1} parent=1 // pred_fallthru
      _
    // Predicated region
    $region90: #{tpu_custom_call.1} parent=1 // pred_check
      _
    $region91: #{tpu_custom_call.1} parent=1 // pred_check_branch
      %113 = sbr.rel (0) target = $region93
    $region92: #{tpu_custom_call.1} parent=1 // pred_region
      _
    $region93: #{tpu_custom_call.1} parent=1 // pred_fallthru
      _
    // Predicated region
    $region94: #{tpu_custom_call.1} parent=1 // pred_check
      _
    $region95: #{tpu_custom_call.1} parent=1 // pred_check_branch
      %115 = sbr.rel (0) target = $region97
    $region96: #{tpu_custom_call.1} parent=1 // pred_region
      _
    $region97: #{tpu_custom_call.1} parent=1 // pred_fallthru
      _
    // Predicated region
    $region98: #{tpu_custom_call.1} parent=1 // pred_check
      _
    $region99: #{tpu_custom_call.1} parent=1 // pred_check_branch
      %117 = sbr.rel (0) target = $region101
    $region100: #{tpu_custom_call.1} parent=1 // pred_region
      _
    $region101: #{tpu_custom_call.1} parent=1 // pred_fallthru
      _
    // Predicated region
    $region102: #{tpu_custom_call.1} parent=1 // pred_check
      _
    $region103: #{tpu_custom_call.1} parent=1 // pred_check_branch
      %119 = sbr.rel (0) target = $region105
    $region104: #{tpu_custom_call.1} parent=1 // pred_region
      _
    $region105: #{tpu_custom_call.1} parent=1 // pred_fallthru
      _
    // Predicated region
    $region106: #{tpu_custom_call.1} parent=1 // pred_check
      _
    $region107: #{tpu_custom_call.1} parent=1 // pred_check_branch
      %121 = sbr.rel (0) target = $region109
    $region108: #{tpu_custom_call.1} parent=1 // pred_region
      _
    $region109: #{tpu_custom_call.1} parent=1 // pred_fallthru
      _
    // Predicated region
    $region110: #{tpu_custom_call.1} parent=1 // pred_check
      _
    $region111: #{tpu_custom_call.1} parent=1 // pred_check_branch
      %123 = sbr.rel (0) target = $region113
    $region112: #{tpu_custom_call.1} parent=1 // pred_region
      _
    $region113: #{tpu_custom_call.1} parent=1 // pred_fallthru
      _
    // Predicated region
    $region114: #{tpu_custom_call.1} parent=1 // pred_check
      _
    $region115: #{tpu_custom_call.1} parent=1 // pred_check_branch
      %125 = sbr.rel (0) target = $region117
    $region116: #{tpu_custom_call.1} parent=1 // pred_region
      %126 = dma.done [#allocation3], 16
    $region117: #{tpu_custom_call.1} parent=1 // pred_fallthru
      _
    // Predicated region
    $region118: #{tpu_custom_call.1} parent=1 // pred_check
      _
    $region119: #{tpu_custom_call.1} parent=1 // pred_check_branch
      %128 = sbr.rel (0) target = $region121
    $region120: #{tpu_custom_call.1} parent=1 // pred_region
      %129 = dma.done [#allocation5], 128
    $region121: #{tpu_custom_call.1} parent=1 // pred_fallthru
      _
    // Predicated region
    $region122: #{tpu_custom_call.1} parent=1 // pred_check
      _
    $region123: #{tpu_custom_call.1} parent=1 // pred_check_branch
      %131 = sbr.rel (0) target = $region125
    $region124: #{tpu_custom_call.1} parent=1 // pred_region
      %132 = dma.done [#allocation5], 16
    $region125: #{tpu_custom_call.1} parent=1 // pred_fallthru
      _
    // Predicated region
    $region126: #{tpu_custom_call.1} parent=1 // pred_check
      _
    $region127: #{tpu_custom_call.1} parent=1 // pred_check_branch
      %134 = sbr.rel (0) target = $region129
    $region128: #{tpu_custom_call.1} parent=1 // pred_region
      %135 = dma.done [#allocation8], 16
    $region129: #{tpu_custom_call.1} parent=1 // pred_fallthru
      _
    %v136 = vld [vmem:[%s0] sm:$0xff]
    %v137 = vld [vmem:[%s0 + $0x8] sm:$0xff]
    %v138 = vld [vmem:[#allocation4] sm:$0xff]
    %v139 = vld [vmem:[#allocation6] sm:$0x1]
    %v141 = vlaneseq
    %v142 = vshrl.u32 %v141, 7
    %v143 = vsub.s32 0, %v142
    %v144 = vrot.slane %v139, %v143
    %vm146 = vcmask 64512
    %v148 = vsel %vm146, %v136, 0
    %v151 = vsel %vm146, %v137, 0
    %153 = vmatprep.subr.mxu0 0.0
    %154 = vmatpush1.msra.mxu0 %v138
    %155 = vmatprep.subr.mxu0 0.0
    %156 = vmatpush1.msra.mxu0 0.0
    %157 = vmatprep.subr.mxu0 0.0
    %158 = vmatpush1.msra.mxu0 0.0
    %159 = vmatprep.subr.mxu0 0.0
    %160 = vmatpush1.msra.mxu0 0.0
    %161 = vmatprep.subr.mxu0 0.0
    %162 = vmatpush1.msra.mxu0 0.0
    %163 = vmatprep.subr.mxu0 0.0
    %164 = vmatpush1.msra.mxu0 0.0
    %165 = vmatprep.subr.mxu0 0.0
    %166 = vmatpush1.msra.mxu0 0.0
    %167 = vmatprep.subr.mxu0 0.0
    %168 = vmatpush1.msra.mxu0 0.0
    %169 = vmatprep.subr.mxu0 0.0
    %170 = vmatpush1.msra.mxu0 0.0
    %171 = vmatprep.subr.mxu0 0.0
    %172 = vmatpush1.msra.mxu0 0.0
    %173 = vmatprep.subr.mxu0 0.0
    %174 = vmatpush1.msra.mxu0 0.0
    %175 = vmatprep.subr.mxu0 0.0
    %176 = vmatpush1.msra.mxu0 0.0
    %177 = vmatprep.subr.mxu0 0.0
    %178 = vmatpush1.msra.mxu0 0.0
    %179 = vmatprep.subr.mxu0 0.0
    %180 = vmatpush1.msra.mxu0 0.0
    %181 = vmatprep.subr.mxu0 0.0
    %182 = vmatpush1.msra.mxu0 0.0
    %183 = vmatprep.subr.mxu0 0.0
    %184 = vmatpush1.msra.mxu0 0.0
    %185 = vmatprep.subr.mxu0 0.0
    %186 = vmatpush1.msra.mxu0 0.0
    %187 = vmatprep.subr.mxu0 0.0
    %188 = vmatpush1.msra.mxu0 0.0
    %189 = vmatprep.subr.mxu0 0.0
    %190 = vmatpush1.msra.mxu0 0.0
    %191 = vmatprep.subr.mxu0 0.0
    %192 = vmatpush1.msra.mxu0 0.0
    %193 = vmatprep.subr.mxu0 0.0
    %194 = vmatpush1.msra.mxu0 0.0
    %195 = vmatprep.subr.mxu0 0.0
    %196 = vmatpush1.msra.mxu0 0.0
    %197 = vmatprep.subr.mxu0 0.0
    %198 = vmatpush1.msra.mxu0 0.0
    %199 = vmatprep.subr.mxu0 0.0
    %200 = vmatpush1.msra.mxu0 0.0
    %201 = vmatprep.subr.mxu0 0.0
    %202 = vmatpush1.msra.mxu0 0.0
    %203 = vmatprep.subr.mxu0 0.0
    %204 = vmatpush1.msra.mxu0 0.0
    %205 = vmatprep.subr.mxu0 0.0
    %206 = vmatpush1.msra.mxu0 0.0
    %207 = vmatprep.subr.mxu0 0.0
    %208 = vmatpush1.msra.mxu0 0.0
    %209 = vmatprep.subr.mxu0 0.0
    %210 = vmatpush1.msra.mxu0 0.0
    %211 = vmatprep.subr.mxu0 0.0
    %212 = vmatpush1.msra.mxu0 0.0
    %213 = vmatprep.subr.mxu0 0.0
    %214 = vmatpush1.msra.mxu0 0.0
    %215 = vmatprep.subr.mxu0 0.0
    %216 = vmatpush1.msra.mxu0 0.0
    %217 = vmatprep.mubr.f32.mxu0 0.0
    %218 = vmatmul.mubr.f32.gmra.mrb[0].mxu0 %v148
    %v219 = vpop.f32.mrb[0].mxu0
    %v220 = vadd.f32 %v144, %v219
    %v221 = vpop.f32.mrb[0].mxu0
    %222 = vmatprep.mubr.f32.mxu0 0.0
    %223 = vmatmul.mubr.f32.gmra.mrb[0].mxu0 %v151
    %v224 = vpop.f32.mrb[0].mxu0
    %v225 = vadd.f32 %v144, %v224
    %v226 = vpop.f32.mrb[0].mxu0
    %227 = vdwg.mxu0
    %v228 = vld [vmem:[%s5] sm:$0x1]
    %v229 = vld [vmem:[#allocation7] sm:$0x1]
    %vm230 = vcmask 130048
    %v231 = vsel %vm230, %v220, 0.0
    %232 = vadd.xlane.f32.xlu0 %v231
    %v233 = vpop.xlane.xlu0 %232
    %v234 = vsel %vm230, %v225, 0.0
    %235 = vadd.xlane.f32.xlu0 %v234
    %v236 = vpop.xlane.xlu0 %235
    %v237 = vrcp.pop 16.0
    %v238 = vmul.f32 %v233, %v237
    %v239 = vmul.f32 %v236, %v237
    %v240 = vsub.f32 %v220, %v238
    %v241 = vsub.f32 %v225, %v239
    %v242 = vmul.f32 %v240, %v240
    %v243 = vmul.f32 %v241, %v241
    %v244 = vsel %vm230, %v242, 0.0
    %245 = vadd.xlane.f32.xlu0 %v244
    %v246 = vpop.xlane.xlu0 %245
    %v247 = vsel %vm230, %v243, 0.0
    %248 = vadd.xlane.f32.xlu0 %v247
    %v249 = vpop.xlane.xlu0 %248
    %v250 = vmul.f32 %v246, %v237
    %v251 = vmul.f32 %v249, %v237
    %v252 = vadd.f32 %v250, 1e-05
    %v253 = vadd.f32 %v251, 1e-05
    %v254 = vrsqrt.pop %v252
    %v255 = vrsqrt.pop %v253
    %v256 = vmul.f32 %v240, %v254
    %v257 = vmul.f32 %v241, %v255
    %v259 = vlaneseq
    %v260 = vshrl.u32 %v259, 7
    %v261 = vsub.s32 0, %v260
    %v262 = vrot.slane %v228, %v261
    %v264 = vmul.f32 %v256, %v262
    %v265 = vmul.f32 %v257, %v262
    %v267 = vlaneseq
    %v268 = vshrl.u32 %v267, 7
    %v269 = vsub.s32 0, %v268
    %v270 = vrot.slane %v229, %v269
    %v272 = vadd.f32 %v264, %v270
    %v273 = vadd.f32 %v265, %v270
    %vm274 = vcmp.ge.f32.partialorder %v272, 0.0
    %vm275 = vcmp.ge.f32.partialorder %v273, 0.0
    %v276 = vld [vmem:[%s2] sm:$0xff]
    %v277 = vld [vmem:[%s2 + $0x8] sm:$0xff]
    %279 = vset.pattern.permute.xlu0 0
    %280 = vperm.xlu0 %279, %v276
    %v281 = vpop.permute.xlu0 %280
    %284 = vset.pattern.permute.xlu0 0
    %285 = vperm.xlu0 %284, %v277
    %v286 = vpop.permute.xlu0 %285
    %v288 = vmul.f32 %v281, %v272
    %v289 = vmul.f32 %v286, %v273
    %v290 = vsel %vm274, %v272, %v288
    %v291 = vsel %vm275, %v273, %v289
    %v292 = vld [vmem:[%s7] sm:$0xff]
    %v293 = vld [vmem:[%s7 + $0x8] sm:$0xff]
    %v294 = vld [vmem:[%s8] sm:$0x1]
    %v296 = vlaneseq
    %v297 = vshrl.u32 %v296, 7
    %v298 = vsub.s32 0, %v297
    %v299 = vrot.slane %v294, %v298
    %v302 = vsel %vm230, %v290, 0
    %v305 = vsel %vm230, %v291, 0
    %307 = vmatprep.subr.mxu0 0.0
    %308 = vmatpush1.msra.mxu0 %v292
    %309 = vmatprep.subr.mxu0 0.0
    %310 = vmatpush1.msra.mxu0 %v293
    %311 = vmatprep.subr.mxu0 0.0
    %312 = vmatpush1.msra.mxu0 0.0
    %313 = vmatprep.subr.mxu0 0.0
    %314 = vmatpush1.msra.mxu0 0.0
    %315 = vmatprep.subr.mxu0 0.0
    %316 = vmatpush1.msra.mxu0 0.0
    %317 = vmatprep.subr.mxu0 0.0
    %318 = vmatpush1.msra.mxu0 0.0
    %319 = vmatprep.subr.mxu0 0.0
    %320 = vmatpush1.msra.mxu0 0.0
    %321 = vmatprep.subr.mxu0 0.0
    %322 = vmatpush1.msra.mxu0 0.0
    %323 = vmatprep.subr.mxu0 0.0
    %324 = vmatpush1.msra.mxu0 0.0
    %325 = vmatprep.subr.mxu0 0.0
    %326 = vmatpush1.msra.mxu0 0.0
    %327 = vmatprep.subr.mxu0 0.0
    %328 = vmatpush1.msra.mxu0 0.0
    %329 = vmatprep.subr.mxu0 0.0
    %330 = vmatpush1.msra.mxu0 0.0
    %331 = vmatprep.subr.mxu0 0.0
    %332 = vmatpush1.msra.mxu0 0.0
    %333 = vmatprep.subr.mxu0 0.0
    %334 = vmatpush1.msra.mxu0 0.0
    %335 = vmatprep.subr.mxu0 0.0
    %336 = vmatpush1.msra.mxu0 0.0
    %337 = vmatprep.subr.mxu0 0.0
    %338 = vmatpush1.msra.mxu0 0.0
    %339 = vmatprep.subr.mxu0 0.0
    %340 = vmatpush1.msra.mxu0 0.0
    %341 = vmatprep.subr.mxu0 0.0
    %342 = vmatpush1.msra.mxu0 0.0
    %343 = vmatprep.subr.mxu0 0.0
    %344 = vmatpush1.msra.mxu0 0.0
    %345 = vmatprep.subr.mxu0 0.0
    %346 = vmatpush1.msra.mxu0 0.0
    %347 = vmatprep.subr.mxu0 0.0
    %348 = vmatpush1.msra.mxu0 0.0
    %349 = vmatprep.subr.mxu0 0.0
    %350 = vmatpush1.msra.mxu0 0.0
    %351 = vmatprep.subr.mxu0 0.0
    %352 = vmatpush1.msra.mxu0 0.0
    %353 = vmatprep.subr.mxu0 0.0
    %354 = vmatpush1.msra.mxu0 0.0
    %355 = vmatprep.subr.mxu0 0.0
    %356 = vmatpush1.msra.mxu0 0.0
    %357 = vmatprep.subr.mxu0 0.0
    %358 = vmatpush1.msra.mxu0 0.0
    %359 = vmatprep.subr.mxu0 0.0
    %360 = vmatpush1.msra.mxu0 0.0
    %361 = vmatprep.subr.mxu0 0.0
    %362 = vmatpush1.msra.mxu0 0.0
    %363 = vmatprep.subr.mxu0 0.0
    %364 = vmatpush1.msra.mxu0 0.0
    %365 = vmatprep.subr.mxu0 0.0
    %366 = vmatpush1.msra.mxu0 0.0
    %367 = vmatprep.subr.mxu0 0.0
    %368 = vmatpush1.msra.mxu0 0.0
    %369 = vmatprep.subr.mxu0 0.0
    %370 = vmatpush1.msra.mxu0 0.0
    %371 = vmatprep.mubr.f32.mxu0 0.0
    %372 = vmatmul.mubr.f32.gmra.mrb[0].mxu0 %v302
    %v373 = vpop.f32.mrb[0].mxu0
    %v374 = vadd.f32 %v299, %v373
    %v375 = vpop.f32.mrb[0].mxu0
    %376 = vmatprep.mubr.f32.mxu0 0.0
    %377 = vmatmul.mubr.f32.gmra.mrb[0].mxu0 %v305
    %v378 = vpop.f32.mrb[0].mxu0
    %v379 = vadd.f32 %v299, %v378
    %v380 = vpop.f32.mrb[0].mxu0
    %381 = vdwg.mxu0
    %v382 = vmul.f32 %v374, 4.0
    %v383 = vmul.f32 %v379, 4.0
    %v384 = vld [vmem:[#allocation2] sm:$0x1]
    %v386 = vlaneseq
    %v387 = vshrl.u32 %v386, 7
    %v388 = vsub.s32 0, %v387
    %v389 = vrot.slane %v384, %v388
    %v391 = vadd.f32 %v382, %v389
    %v392 = vadd.f32 %v383, %v389
    %v393 = vld [vmem:[%s9] sm:$0xff]
    %v394 = vld [vmem:[%s9 + $0x8] sm:$0xff]
    %v395 = vld [vmem:[%s10] sm:$0x1]
    %v397 = vlaneseq
    %v398 = vshrl.u32 %v397, 7
    %v399 = vsub.s32 0, %v398
    %v400 = vrot.slane %v395, %v399
    %v403 = vsel %vm230, %v391, 0
    %v406 = vsel %vm230, %v392, 0
    %408 = vmatprep.subr.mxu0 0.0
    %409 = vmatpush1.msra.mxu0 %v393
    %410 = vmatprep.subr.mxu0 0.0
    %411 = vmatpush1.msra.mxu0 %v394
    %412 = vmatprep.subr.mxu0 0.0
    %413 = vmatpush1.msra.mxu0 0.0
    %414 = vmatprep.subr.mxu0 0.0
    %415 = vmatpush1.msra.mxu0 0.0
    %416 = vmatprep.subr.mxu0 0.0
    %417 = vmatpush1.msra.mxu0 0.0
    %418 = vmatprep.subr.mxu0 0.0
    %419 = vmatpush1.msra.mxu0 0.0
    %420 = vmatprep.subr.mxu0 0.0
    %421 = vmatpush1.msra.mxu0 0.0
    %422 = vmatprep.subr.mxu0 0.0
    %423 = vmatpush1.msra.mxu0 0.0
    %424 = vmatprep.subr.mxu0 0.0
    %425 = vmatpush1.msra.mxu0 0.0
    %426 = vmatprep.subr.mxu0 0.0
    %427 = vmatpush1.msra.mxu0 0.0
    %428 = vmatprep.subr.mxu0 0.0
    %429 = vmatpush1.msra.mxu0 0.0
    %430 = vmatprep.subr.mxu0 0.0
    %431 = vmatpush1.msra.mxu0 0.0
    %432 = vmatprep.subr.mxu0 0.0
    %433 = vmatpush1.msra.mxu0 0.0
    %434 = vmatprep.subr.mxu0 0.0
    %435 = vmatpush1.msra.mxu0 0.0
    %436 = vmatprep.subr.mxu0 0.0
    %437 = vmatpush1.msra.mxu0 0.0
    %438 = vmatprep.subr.mxu0 0.0
    %439 = vmatpush1.msra.mxu0 0.0
    %440 = vmatprep.subr.mxu0 0.0
    %441 = vmatpush1.msra.mxu0 0.0
    %442 = vmatprep.subr.mxu0 0.0
    %443 = vmatpush1.msra.mxu0 0.0
    %444 = vmatprep.subr.mxu0 0.0
    %445 = vmatpush1.msra.mxu0 0.0
    %446 = vmatprep.subr.mxu0 0.0
    %447 = vmatpush1.msra.mxu0 0.0
    %448 = vmatprep.subr.mxu0 0.0
    %449 = vmatpush1.msra.mxu0 0.0
    %450 = vmatprep.subr.mxu0 0.0
    %451 = vmatpush1.msra.mxu0 0.0
    %452 = vmatprep.subr.mxu0 0.0
    %453 = vmatpush1.msra.mxu0 0.0
    %454 = vmatprep.subr.mxu0 0.0
    %455 = vmatpush1.msra.mxu0 0.0
    %456 = vmatprep.subr.mxu0 0.0
    %457 = vmatpush1.msra.mxu0 0.0
    %458 = vmatprep.subr.mxu0 0.0
    %459 = vmatpush1.msra.mxu0 0.0
    %460 = vmatprep.subr.mxu0 0.0
    %461 = vmatpush1.msra.mxu0 0.0
    %462 = vmatprep.subr.mxu0 0.0
    %463 = vmatpush1.msra.mxu0 0.0
    %464 = vmatprep.subr.mxu0 0.0
    %465 = vmatpush1.msra.mxu0 0.0
    %466 = vmatprep.subr.mxu0 0.0
    %467 = vmatpush1.msra.mxu0 0.0
    %468 = vmatprep.subr.mxu0 0.0
    %469 = vmatpush1.msra.mxu0 0.0
    %470 = vmatprep.subr.mxu0 0.0
    %471 = vmatpush1.msra.mxu0 0.0
    %472 = vmatprep.mubr.f32.mxu0 0.0
    %473 = vmatmul.mubr.f32.gmra.mrb[0].mxu0 %v403
    %v474 = vpop.f32.mrb[0].mxu0
    %v475 = vadd.f32 %v400, %v474
    %v476 = vpop.f32.mrb[0].mxu0
    %477 = vmatprep.mubr.f32.mxu0 0.0
    %478 = vmatmul.mubr.f32.gmra.mrb[0].mxu0 %v406
    %v479 = vpop.f32.mrb[0].mxu0
    %v480 = vadd.f32 %v400, %v479
    %v481 = vpop.f32.mrb[0].mxu0
    %482 = vdwg.mxu0
    %485 = vrot.lane.b32.xlu0 %v475, 112
    %v486 = vpop.permute.xlu0 %485
    %487 = vrot.lane.b32.xlu0 %v480, 112
    %v488 = vpop.permute.xlu0 %487
    %vm489 = vcmask 31744
    %v490 = vsel %vm489, %v475, 0
    %v492 = vsel %vm489, %v480, 0
    %v494 = vsel %vm489, %v486, 0
    %v496 = vsel %vm489, %v488, 0
    %498 = vmatprep.subr.mxu0 0.0
    %499 = vmatpush1.xpose.msra.mxu0 %v494
    %500 = vmatprep.subr.mxu0 0.0
    %501 = vmatpush1.xpose.msra.mxu0 %v496
    %502 = vmatprep.subr.mxu0 0.0
    %503 = vmatpush1.xpose.msra.mxu0 0.0
    %504 = vmatprep.subr.mxu0 0.0
    %505 = vmatpush1.xpose.msra.mxu0 0.0
    %506 = vmatprep.subr.mxu0 0.0
    %507 = vmatpush1.xpose.msra.mxu0 0.0
    %508 = vmatprep.subr.mxu0 0.0
    %509 = vmatpush1.xpose.msra.mxu0 0.0
    %510 = vmatprep.subr.mxu0 0.0
    %511 = vmatpush1.xpose.msra.mxu0 0.0
    %512 = vmatprep.subr.mxu0 0.0
    %513 = vmatpush1.xpose.msra.mxu0 0.0
    %514 = vmatprep.subr.mxu0 0.0
    %515 = vmatpush1.xpose.msra.mxu0 0.0
    %516 = vmatprep.subr.mxu0 0.0
    %517 = vmatpush1.xpose.msra.mxu0 0.0
    %518 = vmatprep.subr.mxu0 0.0
    %519 = vmatpush1.xpose.msra.mxu0 0.0
    %520 = vmatprep.subr.mxu0 0.0
    %521 = vmatpush1.xpose.msra.mxu0 0.0
    %522 = vmatprep.subr.mxu0 0.0
    %523 = vmatpush1.xpose.msra.mxu0 0.0
    %524 = vmatprep.subr.mxu0 0.0
    %525 = vmatpush1.xpose.msra.mxu0 0.0
    %526 = vmatprep.subr.mxu0 0.0
    %527 = vmatpush1.xpose.msra.mxu0 0.0
    %528 = vmatprep.subr.mxu0 0.0
    %529 = vmatpush1.xpose.msra.mxu0 0.0
    %530 = vmatprep.subr.mxu0 0.0
    %531 = vmatpush1.xpose.msra.mxu0 0.0
    %532 = vmatprep.subr.mxu0 0.0
    %533 = vmatpush1.xpose.msra.mxu0 0.0
    %534 = vmatprep.subr.mxu0 0.0
    %535 = vmatpush1.xpose.msra.mxu0 0.0
    %536 = vmatprep.subr.mxu0 0.0
    %537 = vmatpush1.xpose.msra.mxu0 0.0
    %538 = vmatprep.subr.mxu0 0.0
    %539 = vmatpush1.xpose.msra.mxu0 0.0
    %540 = vmatprep.subr.mxu0 0.0
    %541 = vmatpush1.xpose.msra.mxu0 0.0
    %542 = vmatprep.subr.mxu0 0.0
    %543 = vmatpush1.xpose.msra.mxu0 0.0
    %544 = vmatprep.subr.mxu0 0.0
    %545 = vmatpush1.xpose.msra.mxu0 0.0
    %546 = vmatprep.subr.mxu0 0.0
    %547 = vmatpush1.xpose.msra.mxu0 0.0
    %548 = vmatprep.subr.mxu0 0.0
    %549 = vmatpush1.xpose.msra.mxu0 0.0
    %550 = vmatprep.subr.mxu0 0.0
    %551 = vmatpush1.xpose.msra.mxu0 0.0
    %552 = vmatprep.subr.mxu0 0.0
    %553 = vmatpush1.xpose.msra.mxu0 0.0
    %554 = vmatprep.subr.mxu0 0.0
    %555 = vmatpush1.xpose.msra.mxu0 0.0
    %556 = vmatprep.subr.mxu0 0.0
    %557 = vmatpush1.xpose.msra.mxu0 0.0
    %558 = vmatprep.subr.mxu0 0.0
    %559 = vmatpush1.xpose.msra.mxu0 0.0
    %560 = vmatprep.subr.mxu0 0.0
    %561 = vmatpush1.xpose.msra.mxu0 0.0
    %562 = vmatprep.mubr.f32.mxu0 0.0
    %563 = vmatmul.mubr.f32.gmra.mrb[0].mxu0 %v490
    %v564 = vpop.f32.mrb[0].mxu0
    %v565 = vadd.f32 0.0, %v564
    %v566 = vpop.f32.mrb[0].mxu0
    %567 = vmatprep.mubr.f32.mxu0 0.0
    %568 = vmatmul.mubr.f32.gmra.mrb[0].mxu0 %v492
    %v569 = vpop.f32.mrb[0].mxu0
    %v570 = vadd.f32 0.0, %v569
    %v571 = vpop.f32.mrb[0].mxu0
    %572 = vdwg.mxu0
    %v573 = vmul.f32 %v565, 0.5
    %v574 = vmul.f32 %v570, 0.5
    %v575 = vsel %vm230, %v573, -inf
    %576 = vmax.xlane.f32.xlu0 %v575
    %v577 = vpop.xlane.xlu0 %576
    %v578 = vsel %vm230, %v574, -inf
    %579 = vmax.xlane.f32.xlu0 %v578
    %v580 = vpop.xlane.xlu0 %579
    %v581 = vsub.f32 %v573, %v577
    %v582 = vsub.f32 %v574, %v580
    %v583 = vmul.f32 %v581, 1.442695
    %v584 = vpow.pop %v583
    %v585 = vmul.f32 %v582, 1.442695
    %v586 = vpow.pop %v585
    %v587 = vsel %vm230, %v584, 0.0
    %588 = vadd.xlane.f32.xlu0 %v587
    %v589 = vpop.xlane.xlu0 %588
    %v590 = vsel %vm230, %v586, 0.0
    %591 = vadd.xlane.f32.xlu0 %v590
    %v592 = vpop.xlane.xlu0 %591
    %v593 = vrcp.pop %v589
    %v594 = vmul.f32 %v584, %v593
    %v595 = vrcp.pop %v592
    %v596 = vmul.f32 %v586, %v595
    %597 = vrot.lane.b32.xlu0 %v475, 96
    %v598 = vpop.permute.xlu0 %597
    %599 = vrot.lane.b32.xlu0 %v480, 96
    %v600 = vpop.permute.xlu0 %599
    %v604 = vsel %vm230, %v594, 0
    %v607 = vsel %vm230, %v596, 0
    %609 = vmatprep.subr.mxu0 0.0
    %610 = vmatpush1.msra.mxu0 %v598
    %611 = vmatprep.subr.mxu0 0.0
    %612 = vmatpush1.msra.mxu0 %v600
    %613 = vmatprep.subr.mxu0 0.0
    %614 = vmatpush1.msra.mxu0 0.0
    %615 = vmatprep.subr.mxu0 0.0
    %616 = vmatpush1.msra.mxu0 0.0
    %617 = vmatprep.subr.mxu0 0.0
    %618 = vmatpush1.msra.mxu0 0.0
    %619 = vmatprep.subr.mxu0 0.0
    %620 = vmatpush1.msra.mxu0 0.0
    %621 = vmatprep.subr.mxu0 0.0
    %622 = vmatpush1.msra.mxu0 0.0
    %623 = vmatprep.subr.mxu0 0.0
    %624 = vmatpush1.msra.mxu0 0.0
    %625 = vmatprep.subr.mxu0 0.0
    %626 = vmatpush1.msra.mxu0 0.0
    %627 = vmatprep.subr.mxu0 0.0
    %628 = vmatpush1.msra.mxu0 0.0
    %629 = vmatprep.subr.mxu0 0.0
    %630 = vmatpush1.msra.mxu0 0.0
    %631 = vmatprep.subr.mxu0 0.0
    %632 = vmatpush1.msra.mxu0 0.0
    %633 = vmatprep.subr.mxu0 0.0
    %634 = vmatpush1.msra.mxu0 0.0
    %635 = vmatprep.subr.mxu0 0.0
    %636 = vmatpush1.msra.mxu0 0.0
    %637 = vmatprep.subr.mxu0 0.0
    %638 = vmatpush1.msra.mxu0 0.0
    %639 = vmatprep.subr.mxu0 0.0
    %640 = vmatpush1.msra.mxu0 0.0
    %641 = vmatprep.subr.mxu0 0.0
    %642 = vmatpush1.msra.mxu0 0.0
    %643 = vmatprep.subr.mxu0 0.0
    %644 = vmatpush1.msra.mxu0 0.0
    %645 = vmatprep.subr.mxu0 0.0
    %646 = vmatpush1.msra.mxu0 0.0
    %647 = vmatprep.subr.mxu0 0.0
    %648 = vmatpush1.msra.mxu0 0.0
    %649 = vmatprep.subr.mxu0 0.0
    %650 = vmatpush1.msra.mxu0 0.0
    %651 = vmatprep.subr.mxu0 0.0
    %652 = vmatpush1.msra.mxu0 0.0
    %653 = vmatprep.subr.mxu0 0.0
    %654 = vmatpush1.msra.mxu0 0.0
    %655 = vmatprep.subr.mxu0 0.0
    %656 = vmatpush1.msra.mxu0 0.0
    %657 = vmatprep.subr.mxu0 0.0
    %658 = vmatpush1.msra.mxu0 0.0
    %659 = vmatprep.subr.mxu0 0.0
    %660 = vmatpush1.msra.mxu0 0.0
    %661 = vmatprep.subr.mxu0 0.0
    %662 = vmatpush1.msra.mxu0 0.0
    %663 = vmatprep.subr.mxu0 0.0
    %664 = vmatpush1.msra.mxu0 0.0
    %665 = vmatprep.subr.mxu0 0.0
    %666 = vmatpush1.msra.mxu0 0.0
    %667 = vmatprep.subr.mxu0 0.0
    %668 = vmatpush1.msra.mxu0 0.0
    %669 = vmatprep.subr.mxu0 0.0
    %670 = vmatpush1.msra.mxu0 0.0
    %671 = vmatprep.subr.mxu0 0.0
    %672 = vmatpush1.msra.mxu0 0.0
    %673 = vmatprep.mubr.f32.mxu0 0.0
    %674 = vmatmul.mubr.f32.gmra.mrb[0].mxu0 %v604
    %v675 = vpop.f32.mrb[0].mxu0
    %v676 = vadd.f32 0.0, %v675
    %v677 = vpop.f32.mrb[0].mxu0
    %678 = vmatprep.mubr.f32.mxu0 0.0
    %679 = vmatmul.mubr.f32.gmra.mrb[0].mxu0 %v607
    %v680 = vpop.f32.mrb[0].mxu0
    %v681 = vadd.f32 0.0, %v680
    %v682 = vpop.f32.mrb[0].mxu0
    %683 = vdwg.mxu0
    %684 = vrot.lane.b32.xlu0 %v475, 124
    %v685 = vpop.permute.xlu0 %684
    %686 = vrot.lane.b32.xlu0 %v480, 124
    %v687 = vpop.permute.xlu0 %686
    %688 = vrot.lane.b32.xlu0 %v475, 108
    %v689 = vpop.permute.xlu0 %688
    %690 = vrot.lane.b32.xlu0 %v480, 108
    %v691 = vpop.permute.xlu0 %690
    %v692 = vsel %vm489, %v685, 0
    %v694 = vsel %vm489, %v687, 0
    %v696 = vsel %vm489, %v689, 0
    %v698 = vsel %vm489, %v691, 0
    %700 = vmatprep.subr.mxu0 0.0
    %701 = vmatpush1.xpose.msra.mxu0 %v696
    %702 = vmatprep.subr.mxu0 0.0
    %703 = vmatpush1.xpose.msra.mxu0 %v698
    %704 = vmatprep.subr.mxu0 0.0
    %705 = vmatpush1.xpose.msra.mxu0 0.0
    %706 = vmatprep.subr.mxu0 0.0
    %707 = vmatpush1.xpose.msra.mxu0 0.0
    %708 = vmatprep.subr.mxu0 0.0
    %709 = vmatpush1.xpose.msra.mxu0 0.0
    %710 = vmatprep.subr.mxu0 0.0
    %711 = vmatpush1.xpose.msra.mxu0 0.0
    %712 = vmatprep.subr.mxu0 0.0
    %713 = vmatpush1.xpose.msra.mxu0 0.0
    %714 = vmatprep.subr.mxu0 0.0
    %715 = vmatpush1.xpose.msra.mxu0 0.0
    %716 = vmatprep.subr.mxu0 0.0
    %717 = vmatpush1.xpose.msra.mxu0 0.0
    %718 = vmatprep.subr.mxu0 0.0
    %719 = vmatpush1.xpose.msra.mxu0 0.0
    %720 = vmatprep.subr.mxu0 0.0
    %721 = vmatpush1.xpose.msra.mxu0 0.0
    %722 = vmatprep.subr.mxu0 0.0
    %723 = vmatpush1.xpose.msra.mxu0 0.0
    %724 = vmatprep.subr.mxu0 0.0
    %725 = vmatpush1.xpose.msra.mxu0 0.0
    %726 = vmatprep.subr.mxu0 0.0
    %727 = vmatpush1.xpose.msra.mxu0 0.0
    %728 = vmatprep.subr.mxu0 0.0
    %729 = vmatpush1.xpose.msra.mxu0 0.0
    %730 = vmatprep.subr.mxu0 0.0
    %731 = vmatpush1.xpose.msra.mxu0 0.0
    %732 = vmatprep.subr.mxu0 0.0
    %733 = vmatpush1.xpose.msra.mxu0 0.0
    %734 = vmatprep.subr.mxu0 0.0
    %735 = vmatpush1.xpose.msra.mxu0 0.0
    %736 = vmatprep.subr.mxu0 0.0
    %737 = vmatpush1.xpose.msra.mxu0 0.0
    %738 = vmatprep.subr.mxu0 0.0
    %739 = vmatpush1.xpose.msra.mxu0 0.0
    %740 = vmatprep.subr.mxu0 0.0
    %741 = vmatpush1.xpose.msra.mxu0 0.0
    %742 = vmatprep.subr.mxu0 0.0
    %743 = vmatpush1.xpose.msra.mxu0 0.0
    %744 = vmatprep.subr.mxu0 0.0
    %745 = vmatpush1.xpose.msra.mxu0 0.0
    %746 = vmatprep.subr.mxu0 0.0
    %747 = vmatpush1.xpose.msra.mxu0 0.0
    %748 = vmatprep.subr.mxu0 0.0
    %749 = vmatpush1.xpose.msra.mxu0 0.0
    %750 = vmatprep.subr.mxu0 0.0
    %751 = vmatpush1.xpose.msra.mxu0 0.0
    %752 = vmatprep.subr.mxu0 0.0
    %753 = vmatpush1.xpose.msra.mxu0 0.0
    %754 = vmatprep.subr.mxu0 0.0
    %755 = vmatpush1.xpose.msra.mxu0 0.0
    %756 = vmatprep.subr.mxu0 0.0
    %757 = vmatpush1.xpose.msra.mxu0 0.0
    %758 = vmatprep.subr.mxu0 0.0
    %759 = vmatpush1.xpose.msra.mxu0 0.0
    %760 = vmatprep.subr.mxu0 0.0
    %761 = vmatpush1.xpose.msra.mxu0 0.0
    %762 = vmatprep.subr.mxu0 0.0
    %763 = vmatpush1.xpose.msra.mxu0 0.0
    %764 = vmatprep.mubr.f32.mxu0 0.0
    %765 = vmatmul.mubr.f32.gmra.mrb[0].mxu0 %v692
    %v766 = vpop.f32.mrb[0].mxu0
    %v767 = vadd.f32 0.0, %v766
    %v768 = vpop.f32.mrb[0].mxu0
    %769 = vmatprep.mubr.f32.mxu0 0.0
    %770 = vmatmul.mubr.f32.gmra.mrb[0].mxu0 %v694
    %v771 = vpop.f32.mrb[0].mxu0
    %v772 = vadd.f32 0.0, %v771
    %v773 = vpop.f32.mrb[0].mxu0
    %774 = vdwg.mxu0
    %v775 = vmul.f32 %v767, 0.5
    %v776 = vmul.f32 %v772, 0.5
    %v777 = vsel %vm230, %v775, -inf
    %778 = vmax.xlane.f32.xlu0 %v777
    %v779 = vpop.xlane.xlu0 %778
    %v780 = vsel %vm230, %v776, -inf
    %781 = vmax.xlane.f32.xlu0 %v780
    %v782 = vpop.xlane.xlu0 %781
    %v783 = vsub.f32 %v775, %v779
    %v784 = vsub.f32 %v776, %v782
    %v785 = vmul.f32 %v783, 1.442695
    %v786 = vpow.pop %v785
    %v787 = vmul.f32 %v784, 1.442695
    %v788 = vpow.pop %v787
    %v789 = vsel %vm230, %v786, 0.0
    %790 = vadd.xlane.f32.xlu0 %v789
    %v791 = vpop.xlane.xlu0 %790
    %v792 = vsel %vm230, %v788, 0.0
    %793 = vadd.xlane.f32.xlu0 %v792
    %v794 = vpop.xlane.xlu0 %793
    %v795 = vrcp.pop %v791
    %v796 = vmul.f32 %v786, %v795
    %v797 = vrcp.pop %v794
    %v798 = vmul.f32 %v788, %v797
    %799 = vrot.lane.b32.xlu0 %v475, 92
    %v800 = vpop.permute.xlu0 %799
    %801 = vrot.lane.b32.xlu0 %v480, 92
    %v802 = vpop.permute.xlu0 %801
    %v806 = vsel %vm230, %v796, 0
    %v809 = vsel %vm230, %v798, 0
    %811 = vmatprep.subr.mxu0 0.0
    %812 = vmatpush1.msra.mxu0 %v800
    %813 = vmatprep.subr.mxu0 0.0
    %814 = vmatpush1.msra.mxu0 %v802
    %815 = vmatprep.subr.mxu0 0.0
    %816 = vmatpush1.msra.mxu0 0.0
    %817 = vmatprep.subr.mxu0 0.0
    %818 = vmatpush1.msra.mxu0 0.0
    %819 = vmatprep.subr.mxu0 0.0
    %820 = vmatpush1.msra.mxu0 0.0
    %821 = vmatprep.subr.mxu0 0.0
    %822 = vmatpush1.msra.mxu0 0.0
    %823 = vmatprep.subr.mxu0 0.0
    %824 = vmatpush1.msra.mxu0 0.0
    %825 = vmatprep.subr.mxu0 0.0
    %826 = vmatpush1.msra.mxu0 0.0
    %827 = vmatprep.subr.mxu0 0.0
    %828 = vmatpush1.msra.mxu0 0.0
    %829 = vmatprep.subr.mxu0 0.0
    %830 = vmatpush1.msra.mxu0 0.0
    %831 = vmatprep.subr.mxu0 0.0
    %832 = vmatpush1.msra.mxu0 0.0
    %833 = vmatprep.subr.mxu0 0.0
    %834 = vmatpush1.msra.mxu0 0.0
    %835 = vmatprep.subr.mxu0 0.0
    %836 = vmatpush1.msra.mxu0 0.0
    %837 = vmatprep.subr.mxu0 0.0
    %838 = vmatpush1.msra.mxu0 0.0
    %839 = vmatprep.subr.mxu0 0.0
    %840 = vmatpush1.msra.mxu0 0.0
    %841 = vmatprep.subr.mxu0 0.0
    %842 = vmatpush1.msra.mxu0 0.0
    %843 = vmatprep.subr.mxu0 0.0
    %844 = vmatpush1.msra.mxu0 0.0
    %845 = vmatprep.subr.mxu0 0.0
    %846 = vmatpush1.msra.mxu0 0.0
    %847 = vmatprep.subr.mxu0 0.0
    %848 = vmatpush1.msra.mxu0 0.0
    %849 = vmatprep.subr.mxu0 0.0
    %850 = vmatpush1.msra.mxu0 0.0
    %851 = vmatprep.subr.mxu0 0.0
    %852 = vmatpush1.msra.mxu0 0.0
    %853 = vmatprep.subr.mxu0 0.0
    %854 = vmatpush1.msra.mxu0 0.0
    %855 = vmatprep.subr.mxu0 0.0
    %856 = vmatpush1.msra.mxu0 0.0
    %857 = vmatprep.subr.mxu0 0.0
    %858 = vmatpush1.msra.mxu0 0.0
    %859 = vmatprep.subr.mxu0 0.0
    %860 = vmatpush1.msra.mxu0 0.0
    %861 = vmatprep.subr.mxu0 0.0
    %862 = vmatpush1.msra.mxu0 0.0
    %863 = vmatprep.subr.mxu0 0.0
    %864 = vmatpush1.msra.mxu0 0.0
    %865 = vmatprep.subr.mxu0 0.0
    %866 = vmatpush1.msra.mxu0 0.0
    %867 = vmatprep.subr.mxu0 0.0
    %868 = vmatpush1.msra.mxu0 0.0
    %869 = vmatprep.subr.mxu0 0.0
    %870 = vmatpush1.msra.mxu0 0.0
    %871 = vmatprep.subr.mxu0 0.0
    %872 = vmatpush1.msra.mxu0 0.0
    %873 = vmatprep.subr.mxu0 0.0
    %874 = vmatpush1.msra.mxu0 0.0
    %875 = vmatprep.mubr.f32.mxu0 0.0
    %876 = vmatmul.mubr.f32.gmra.mrb[0].mxu0 %v806
    %v877 = vpop.f32.mrb[0].mxu0
    %v878 = vadd.f32 0.0, %v877
    %v879 = vpop.f32.mrb[0].mxu0
    %880 = vmatprep.mubr.f32.mxu0 0.0
    %881 = vmatmul.mubr.f32.gmra.mrb[0].mxu0 %v809
    %v882 = vpop.f32.mrb[0].mxu0
    %v883 = vadd.f32 0.0, %v882
    %v884 = vpop.f32.mrb[0].mxu0
    %885 = vdwg.mxu0
    %886 = vrot.lane.b32.xlu0 %v475, 120
    %v887 = vpop.permute.xlu0 %886
    %888 = vrot.lane.b32.xlu0 %v480, 120
    %v889 = vpop.permute.xlu0 %888
    %890 = vrot.lane.b32.xlu0 %v475, 104
    %v891 = vpop.permute.xlu0 %890
    %892 = vrot.lane.b32.xlu0 %v480, 104
    %v893 = vpop.permute.xlu0 %892
    %v894 = vsel %vm489, %v887, 0
    %v896 = vsel %vm489, %v889, 0
    %v898 = vsel %vm489, %v891, 0
    %v900 = vsel %vm489, %v893, 0
    %902 = vmatprep.subr.mxu0 0.0
    %903 = vmatpush1.xpose.msra.mxu0 %v898
    %904 = vmatprep.subr.mxu0 0.0
    %905 = vmatpush1.xpose.msra.mxu0 %v900
    %906 = vmatprep.subr.mxu0 0.0
    %907 = vmatpush1.xpose.msra.mxu0 0.0
    %908 = vmatprep.subr.mxu0 0.0
    %909 = vmatpush1.xpose.msra.mxu0 0.0
    %910 = vmatprep.subr.mxu0 0.0
    %911 = vmatpush1.xpose.msra.mxu0 0.0
    %912 = vmatprep.subr.mxu0 0.0
    %913 = vmatpush1.xpose.msra.mxu0 0.0
    %914 = vmatprep.subr.mxu0 0.0
    %915 = vmatpush1.xpose.msra.mxu0 0.0
    %916 = vmatprep.subr.mxu0 0.0
    %917 = vmatpush1.xpose.msra.mxu0 0.0
    %918 = vmatprep.subr.mxu0 0.0
    %919 = vmatpush1.xpose.msra.mxu0 0.0
    %920 = vmatprep.subr.mxu0 0.0
    %921 = vmatpush1.xpose.msra.mxu0 0.0
    %922 = vmatprep.subr.mxu0 0.0
    %923 = vmatpush1.xpose.msra.mxu0 0.0
    %924 = vmatprep.subr.mxu0 0.0
    %925 = vmatpush1.xpose.msra.mxu0 0.0
    %926 = vmatprep.subr.mxu0 0.0
    %927 = vmatpush1.xpose.msra.mxu0 0.0
    %928 = vmatprep.subr.mxu0 0.0
    %929 = vmatpush1.xpose.msra.mxu0 0.0
    %930 = vmatprep.subr.mxu0 0.0
    %931 = vmatpush1.xpose.msra.mxu0 0.0
    %932 = vmatprep.subr.mxu0 0.0
    %933 = vmatpush1.xpose.msra.mxu0 0.0
    %934 = vmatprep.subr.mxu0 0.0
    %935 = vmatpush1.xpose.msra.mxu0 0.0
    %936 = vmatprep.subr.mxu0 0.0
    %937 = vmatpush1.xpose.msra.mxu0 0.0
    %938 = vmatprep.subr.mxu0 0.0
    %939 = vmatpush1.xpose.msra.mxu0 0.0
    %940 = vmatprep.subr.mxu0 0.0
    %941 = vmatpush1.xpose.msra.mxu0 0.0
    %942 = vmatprep.subr.mxu0 0.0
    %943 = vmatpush1.xpose.msra.mxu0 0.0
    %944 = vmatprep.subr.mxu0 0.0
    %945 = vmatpush1.xpose.msra.mxu0 0.0
    %946 = vmatprep.subr.mxu0 0.0
    %947 = vmatpush1.xpose.msra.mxu0 0.0
    %948 = vmatprep.subr.mxu0 0.0
    %949 = vmatpush1.xpose.msra.mxu0 0.0
    %950 = vmatprep.subr.mxu0 0.0
    %951 = vmatpush1.xpose.msra.mxu0 0.0
    %952 = vmatprep.subr.mxu0 0.0
    %953 = vmatpush1.xpose.msra.mxu0 0.0
    %954 = vmatprep.subr.mxu0 0.0
    %955 = vmatpush1.xpose.msra.mxu0 0.0
    %956 = vmatprep.subr.mxu0 0.0
    %957 = vmatpush1.xpose.msra.mxu0 0.0
    %958 = vmatprep.subr.mxu0 0.0
    %959 = vmatpush1.xpose.msra.mxu0 0.0
    %960 = vmatprep.subr.mxu0 0.0
    %961 = vmatpush1.xpose.msra.mxu0 0.0
    %962 = vmatprep.subr.mxu0 0.0
    %963 = vmatpush1.xpose.msra.mxu0 0.0
    %964 = vmatprep.subr.mxu0 0.0
    %965 = vmatpush1.xpose.msra.mxu0 0.0
    %966 = vmatprep.mubr.f32.mxu0 0.0
    %967 = vmatmul.mubr.f32.gmra.mrb[0].mxu0 %v894
    %v968 = vpop.f32.mrb[0].mxu0
    %v969 = vadd.f32 0.0, %v968
    %v970 = vpop.f32.mrb[0].mxu0
    %971 = vmatprep.mubr.f32.mxu0 0.0
    %972 = vmatmul.mubr.f32.gmra.mrb[0].mxu0 %v896
    %v973 = vpop.f32.mrb[0].mxu0
    %v974 = vadd.f32 0.0, %v973
    %v975 = vpop.f32.mrb[0].mxu0
    %976 = vdwg.mxu0
    %v977 = vmul.f32 %v969, 0.5
    %v978 = vmul.f32 %v974, 0.5
    %v979 = vsel %vm230, %v977, -inf
    %980 = vmax.xlane.f32.xlu0 %v979
    %v981 = vpop.xlane.xlu0 %980
    %v982 = vsel %vm230, %v978, -inf
    %983 = vmax.xlane.f32.xlu0 %v982
    %v984 = vpop.xlane.xlu0 %983
    %v985 = vsub.f32 %v977, %v981
    %v986 = vsub.f32 %v978, %v984
    %v987 = vmul.f32 %v985, 1.442695
    %v988 = vpow.pop %v987
    %v989 = vmul.f32 %v986, 1.442695
    %v990 = vpow.pop %v989
    %v991 = vsel %vm230, %v988, 0.0
    %992 = vadd.xlane.f32.xlu0 %v991
    %v993 = vpop.xlane.xlu0 %992
    %v994 = vsel %vm230, %v990, 0.0
    %995 = vadd.xlane.f32.xlu0 %v994
    %v996 = vpop.xlane.xlu0 %995
    %v997 = vrcp.pop %v993
    %v998 = vmul.f32 %v988, %v997
    %v999 = vrcp.pop %v996
    %v1000 = vmul.f32 %v990, %v999
    %1001 = vrot.lane.b32.xlu0 %v475, 88
    %v1002 = vpop.permute.xlu0 %1001
    %1003 = vrot.lane.b32.xlu0 %v480, 88
    %v1004 = vpop.permute.xlu0 %1003
    %v1008 = vsel %vm230, %v998, 0
    %v1011 = vsel %vm230, %v1000, 0
    %1013 = vmatprep.subr.mxu0 0.0
    %1014 = vmatpush1.msra.mxu0 %v1002
    %1015 = vmatprep.subr.mxu0 0.0
    %1016 = vmatpush1.msra.mxu0 %v1004
    %1017 = vmatprep.subr.mxu0 0.0
    %1018 = vmatpush1.msra.mxu0 0.0
    %1019 = vmatprep.subr.mxu0 0.0
    %1020 = vmatpush1.msra.mxu0 0.0
    %1021 = vmatprep.subr.mxu0 0.0
    %1022 = vmatpush1.msra.mxu0 0.0
    %1023 = vmatprep.subr.mxu0 0.0
    %1024 = vmatpush1.msra.mxu0 0.0
    %1025 = vmatprep.subr.mxu0 0.0
    %1026 = vmatpush1.msra.mxu0 0.0
    %1027 = vmatprep.subr.mxu0 0.0
    %1028 = vmatpush1.msra.mxu0 0.0
    %1029 = vmatprep.subr.mxu0 0.0
    %1030 = vmatpush1.msra.mxu0 0.0
    %1031 = vmatprep.subr.mxu0 0.0
    %1032 = vmatpush1.msra.mxu0 0.0
    %1033 = vmatprep.subr.mxu0 0.0
    %1034 = vmatpush1.msra.mxu0 0.0
    %1035 = vmatprep.subr.mxu0 0.0
    %1036 = vmatpush1.msra.mxu0 0.0
    %1037 = vmatprep.subr.mxu0 0.0
    %1038 = vmatpush1.msra.mxu0 0.0
    %1039 = vmatprep.subr.mxu0 0.0
    %1040 = vmatpush1.msra.mxu0 0.0
    %1041 = vmatprep.subr.mxu0 0.0
    %1042 = vmatpush1.msra.mxu0 0.0
    %1043 = vmatprep.subr.mxu0 0.0
    %1044 = vmatpush1.msra.mxu0 0.0
    %1045 = vmatprep.subr.mxu0 0.0
    %1046 = vmatpush1.msra.mxu0 0.0
    %1047 = vmatprep.subr.mxu0 0.0
    %1048 = vmatpush1.msra.mxu0 0.0
    %1049 = vmatprep.subr.mxu0 0.0
    %1050 = vmatpush1.msra.mxu0 0.0
    %1051 = vmatprep.subr.mxu0 0.0
    %1052 = vmatpush1.msra.mxu0 0.0
    %1053 = vmatprep.subr.mxu0 0.0
    %1054 = vmatpush1.msra.mxu0 0.0
    %1055 = vmatprep.subr.mxu0 0.0
    %1056 = vmatpush1.msra.mxu0 0.0
    %1057 = vmatprep.subr.mxu0 0.0
    %1058 = vmatpush1.msra.mxu0 0.0
    %1059 = vmatprep.subr.mxu0 0.0
    %1060 = vmatpush1.msra.mxu0 0.0
    %1061 = vmatprep.subr.mxu0 0.0
    %1062 = vmatpush1.msra.mxu0 0.0
    %1063 = vmatprep.subr.mxu0 0.0
    %1064 = vmatpush1.msra.mxu0 0.0
    %1065 = vmatprep.subr.mxu0 0.0
    %1066 = vmatpush1.msra.mxu0 0.0
    %1067 = vmatprep.subr.mxu0 0.0
    %1068 = vmatpush1.msra.mxu0 0.0
    %1069 = vmatprep.subr.mxu0 0.0
    %1070 = vmatpush1.msra.mxu0 0.0
    %1071 = vmatprep.subr.mxu0 0.0
    %1072 = vmatpush1.msra.mxu0 0.0
    %1073 = vmatprep.subr.mxu0 0.0
    %1074 = vmatpush1.msra.mxu0 0.0
    %1075 = vmatprep.subr.mxu0 0.0
    %1076 = vmatpush1.msra.mxu0 0.0
    %1077 = vmatprep.mubr.f32.mxu0 0.0
    %1078 = vmatmul.mubr.f32.gmra.mrb[0].mxu0 %v1008
    %v1079 = vpop.f32.mrb[0].mxu0
    %v1080 = vadd.f32 0.0, %v1079
    %v1081 = vpop.f32.mrb[0].mxu0
    %1082 = vmatprep.mubr.f32.mxu0 0.0
    %1083 = vmatmul.mubr.f32.gmra.mrb[0].mxu0 %v1011
    %v1084 = vpop.f32.mrb[0].mxu0
    %v1085 = vadd.f32 0.0, %v1084
    %v1086 = vpop.f32.mrb[0].mxu0
    %1087 = vdwg.mxu0
    %1088 = vrot.lane.b32.xlu0 %v475, 116
    %v1089 = vpop.permute.xlu0 %1088
    %1090 = vrot.lane.b32.xlu0 %v480, 116
    %v1091 = vpop.permute.xlu0 %1090
    %1092 = vrot.lane.b32.xlu0 %v475, 100
    %v1093 = vpop.permute.xlu0 %1092
    %1094 = vrot.lane.b32.xlu0 %v480, 100
    %v1095 = vpop.permute.xlu0 %1094
    %v1096 = vsel %vm489, %v1089, 0
    %v1098 = vsel %vm489, %v1091, 0
    %v1100 = vsel %vm489, %v1093, 0
    %v1102 = vsel %vm489, %v1095, 0
    %1104 = vmatprep.subr.mxu0 0.0
    %1105 = vmatpush1.xpose.msra.mxu0 %v1100
    %1106 = vmatprep.subr.mxu0 0.0
    %1107 = vmatpush1.xpose.msra.mxu0 %v1102
    %1108 = vmatprep.subr.mxu0 0.0
    %1109 = vmatpush1.xpose.msra.mxu0 0.0
    %1110 = vmatprep.subr.mxu0 0.0
    %1111 = vmatpush1.xpose.msra.mxu0 0.0
    %1112 = vmatprep.subr.mxu0 0.0
    %1113 = vmatpush1.xpose.msra.mxu0 0.0
    %1114 = vmatprep.subr.mxu0 0.0
    %1115 = vmatpush1.xpose.msra.mxu0 0.0
    %1116 = vmatprep.subr.mxu0 0.0
    %1117 = vmatpush1.xpose.msra.mxu0 0.0
    %1118 = vmatprep.subr.mxu0 0.0
    %1119 = vmatpush1.xpose.msra.mxu0 0.0
    %1120 = vmatprep.subr.mxu0 0.0
    %1121 = vmatpush1.xpose.msra.mxu0 0.0
    %1122 = vmatprep.subr.mxu0 0.0
    %1123 = vmatpush1.xpose.msra.mxu0 0.0
    %1124 = vmatprep.subr.mxu0 0.0
    %1125 = vmatpush1.xpose.msra.mxu0 0.0
    %1126 = vmatprep.subr.mxu0 0.0
    %1127 = vmatpush1.xpose.msra.mxu0 0.0
    %1128 = vmatprep.subr.mxu0 0.0
    %1129 = vmatpush1.xpose.msra.mxu0 0.0
    %1130 = vmatprep.subr.mxu0 0.0
    %1131 = vmatpush1.xpose.msra.mxu0 0.0
    %1132 = vmatprep.subr.mxu0 0.0
    %1133 = vmatpush1.xpose.msra.mxu0 0.0
    %1134 = vmatprep.subr.mxu0 0.0
    %1135 = vmatpush1.xpose.msra.mxu0 0.0
    %1136 = vmatprep.subr.mxu0 0.0
    %1137 = vmatpush1.xpose.msra.mxu0 0.0
    %1138 = vmatprep.subr.mxu0 0.0
    %1139 = vmatpush1.xpose.msra.mxu0 0.0
    %1140 = vmatprep.subr.mxu0 0.0
    %1141 = vmatpush1.xpose.msra.mxu0 0.0
    %1142 = vmatprep.subr.mxu0 0.0
    %1143 = vmatpush1.xpose.msra.mxu0 0.0
    %1144 = vmatprep.subr.mxu0 0.0
    %1145 = vmatpush1.xpose.msra.mxu0 0.0
    %1146 = vmatprep.subr.mxu0 0.0
    %1147 = vmatpush1.xpose.msra.mxu0 0.0
    %1148 = vmatprep.subr.mxu0 0.0
    %1149 = vmatpush1.xpose.msra.mxu0 0.0
    %1150 = vmatprep.subr.mxu0 0.0
    %1151 = vmatpush1.xpose.msra.mxu0 0.0
    %1152 = vmatprep.subr.mxu0 0.0
    %1153 = vmatpush1.xpose.msra.mxu0 0.0
    %1154 = vmatprep.subr.mxu0 0.0
    %1155 = vmatpush1.xpose.msra.mxu0 0.0
    %1156 = vmatprep.subr.mxu0 0.0
    %1157 = vmatpush1.xpose.msra.mxu0 0.0
    %1158 = vmatprep.subr.mxu0 0.0
    %1159 = vmatpush1.xpose.msra.mxu0 0.0
    %1160 = vmatprep.subr.mxu0 0.0
    %1161 = vmatpush1.xpose.msra.mxu0 0.0
    %1162 = vmatprep.subr.mxu0 0.0
    %1163 = vmatpush1.xpose.msra.mxu0 0.0
    %1164 = vmatprep.subr.mxu0 0.0
    %1165 = vmatpush1.xpose.msra.mxu0 0.0
    %1166 = vmatprep.subr.mxu0 0.0
    %1167 = vmatpush1.xpose.msra.mxu0 0.0
    %1168 = vmatprep.mubr.f32.mxu0 0.0
    %1169 = vmatmul.mubr.f32.gmra.mrb[0].mxu0 %v1096
    %v1170 = vpop.f32.mrb[0].mxu0
    %v1171 = vadd.f32 0.0, %v1170
    %v1172 = vpop.f32.mrb[0].mxu0
    %1173 = vmatprep.mubr.f32.mxu0 0.0
    %1174 = vmatmul.mubr.f32.gmra.mrb[0].mxu0 %v1098
    %v1175 = vpop.f32.mrb[0].mxu0
    %v1176 = vadd.f32 0.0, %v1175
    %v1177 = vpop.f32.mrb[0].mxu0
    %1178 = vdwg.mxu0
    %v1179 = vmul.f32 %v1171, 0.5
    %v1180 = vmul.f32 %v1176, 0.5
    %v1181 = vsel %vm230, %v1179, -inf
    %1182 = vmax.xlane.f32.xlu0 %v1181
    %v1183 = vpop.xlane.xlu0 %1182
    %v1184 = vsel %vm230, %v1180, -inf
    %1185 = vmax.xlane.f32.xlu0 %v1184
    %v1186 = vpop.xlane.xlu0 %1185
    %v1187 = vsub.f32 %v1179, %v1183
    %v1188 = vsub.f32 %v1180, %v1186
    %v1189 = vmul.f32 %v1187, 1.442695
    %v1190 = vpow.pop %v1189
    %v1191 = vmul.f32 %v1188, 1.442695
    %v1192 = vpow.pop %v1191
    %v1193 = vsel %vm230, %v1190, 0.0
    %1194 = vadd.xlane.f32.xlu0 %v1193
    %v1195 = vpop.xlane.xlu0 %1194
    %v1196 = vsel %vm230, %v1192, 0.0
    %1197 = vadd.xlane.f32.xlu0 %v1196
    %v1198 = vpop.xlane.xlu0 %1197
    %v1199 = vrcp.pop %v1195
    %v1200 = vmul.f32 %v1190, %v1199
    %v1201 = vrcp.pop %v1198
    %v1202 = vmul.f32 %v1192, %v1201
    %1203 = vrot.lane.b32.xlu0 %v475, 84
    %v1204 = vpop.permute.xlu0 %1203
    %1205 = vrot.lane.b32.xlu0 %v480, 84
    %v1206 = vpop.permute.xlu0 %1205
    %v1210 = vsel %vm230, %v1200, 0
    %v1213 = vsel %vm230, %v1202, 0
    %1215 = vmatprep.subr.mxu0 0.0
    %1216 = vmatpush1.msra.mxu0 %v1204
    %1217 = vmatprep.subr.mxu0 0.0
    %1218 = vmatpush1.msra.mxu0 %v1206
    %1219 = vmatprep.subr.mxu0 0.0
    %1220 = vmatpush1.msra.mxu0 0.0
    %1221 = vmatprep.subr.mxu0 0.0
    %1222 = vmatpush1.msra.mxu0 0.0
    %1223 = vmatprep.subr.mxu0 0.0
    %1224 = vmatpush1.msra.mxu0 0.0
    %1225 = vmatprep.subr.mxu0 0.0
    %1226 = vmatpush1.msra.mxu0 0.0
    %1227 = vmatprep.subr.mxu0 0.0
    %1228 = vmatpush1.msra.mxu0 0.0
    %1229 = vmatprep.subr.mxu0 0.0
    %1230 = vmatpush1.msra.mxu0 0.0
    %1231 = vmatprep.subr.mxu0 0.0
    %1232 = vmatpush1.msra.mxu0 0.0
    %1233 = vmatprep.subr.mxu0 0.0
    %1234 = vmatpush1.msra.mxu0 0.0
    %1235 = vmatprep.subr.mxu0 0.0
    %1236 = vmatpush1.msra.mxu0 0.0
    %1237 = vmatprep.subr.mxu0 0.0
    %1238 = vmatpush1.msra.mxu0 0.0
    %1239 = vmatprep.subr.mxu0 0.0
    %1240 = vmatpush1.msra.mxu0 0.0
    %1241 = vmatprep.subr.mxu0 0.0
    %1242 = vmatpush1.msra.mxu0 0.0
    %1243 = vmatprep.subr.mxu0 0.0
    %1244 = vmatpush1.msra.mxu0 0.0
    %1245 = vmatprep.subr.mxu0 0.0
    %1246 = vmatpush1.msra.mxu0 0.0
    %1247 = vmatprep.subr.mxu0 0.0
    %1248 = vmatpush1.msra.mxu0 0.0
    %1249 = vmatprep.subr.mxu0 0.0
    %1250 = vmatpush1.msra.mxu0 0.0
    %1251 = vmatprep.subr.mxu0 0.0
    %1252 = vmatpush1.msra.mxu0 0.0
    %1253 = vmatprep.subr.mxu0 0.0
    %1254 = vmatpush1.msra.mxu0 0.0
    %1255 = vmatprep.subr.mxu0 0.0
    %1256 = vmatpush1.msra.mxu0 0.0
    %1257 = vmatprep.subr.mxu0 0.0
    %1258 = vmatpush1.msra.mxu0 0.0
    %1259 = vmatprep.subr.mxu0 0.0
    %1260 = vmatpush1.msra.mxu0 0.0
    %1261 = vmatprep.subr.mxu0 0.0
    %1262 = vmatpush1.msra.mxu0 0.0
    %1263 = vmatprep.subr.mxu0 0.0
    %1264 = vmatpush1.msra.mxu0 0.0
    %1265 = vmatprep.subr.mxu0 0.0
    %1266 = vmatpush1.msra.mxu0 0.0
    %1267 = vmatprep.subr.mxu0 0.0
    %1268 = vmatpush1.msra.mxu0 0.0
    %1269 = vmatprep.subr.mxu0 0.0
    %1270 = vmatpush1.msra.mxu0 0.0
    %1271 = vmatprep.subr.mxu0 0.0
    %1272 = vmatpush1.msra.mxu0 0.0
    %1273 = vmatprep.subr.mxu0 0.0
    %1274 = vmatpush1.msra.mxu0 0.0
    %1275 = vmatprep.subr.mxu0 0.0
    %1276 = vmatpush1.msra.mxu0 0.0
    %1277 = vmatprep.subr.mxu0 0.0
    %1278 = vmatpush1.msra.mxu0 0.0
    %1279 = vmatprep.mubr.f32.mxu0 0.0
    %1280 = vmatmul.mubr.f32.gmra.mrb[0].mxu0 %v1210
    %v1281 = vpop.f32.mrb[0].mxu0
    %v1282 = vadd.f32 0.0, %v1281
    %v1283 = vpop.f32.mrb[0].mxu0
    %1284 = vmatprep.mubr.f32.mxu0 0.0
    %1285 = vmatmul.mubr.f32.gmra.mrb[0].mxu0 %v1213
    %v1286 = vpop.f32.mrb[0].mxu0
    %v1287 = vadd.f32 0.0, %v1286
    %v1288 = vpop.f32.mrb[0].mxu0
    %1289 = vdwg.mxu0
    %1292 = vrot.lane.b32.xlu0 %v878, 4
    %v1293 = vpop.permute.xlu0 %1292
    %1294 = vrot.lane.b32.xlu0 %v883, 4
    %v1295 = vpop.permute.xlu0 %1294
    %1300 = vrot.lane.b32.xlu0 %v1080, 8
    %v1301 = vpop.permute.xlu0 %1300
    %1302 = vrot.lane.b32.xlu0 %v1085, 8
    %v1303 = vpop.permute.xlu0 %1302
    %1308 = vrot.lane.b32.xlu0 %v1282, 12
    %v1309 = vpop.permute.xlu0 %1308
    %1310 = vrot.lane.b32.xlu0 %v1287, 12
    %v1311 = vpop.permute.xlu0 %1310
    %v1314 = vsel %vm489, %v676, %v1293
    %v1315 = vsel %vm489, %v681, %v1295
    %v1316 = vsel %vm146, %v1314, %v1301
    %v1317 = vsel %vm146, %v1315, %v1303
    %vm1318 = vcmask 97280
    %v1319 = vsel %vm1318, %v1316, %v1309
    %v1320 = vsel %vm1318, %v1317, %v1311
    %v1321 = vld [vmem:[%s11] sm:$0xff]
    %v1322 = vld [vmem:[%s11 + $0x8] sm:$0xff]
    %v1323 = vld [vmem:[%s12] sm:$0x1]
    %v1325 = vlaneseq
    %v1326 = vshrl.u32 %v1325, 7
    %v1327 = vsub.s32 0, %v1326
    %v1328 = vrot.slane %v1323, %v1327
    %v1331 = vsel %vm230, %v1319, 0
    %v1334 = vsel %vm230, %v1320, 0
    %1336 = vmatprep.subr.mxu0 0.0
    %1337 = vmatpush1.msra.mxu0 %v1321
    %1338 = vmatprep.subr.mxu0 0.0
    %1339 = vmatpush1.msra.mxu0 %v1322
    %1340 = vmatprep.subr.mxu0 0.0
    %1341 = vmatpush1.msra.mxu0 0.0
    %1342 = vmatprep.subr.mxu0 0.0
    %1343 = vmatpush1.msra.mxu0 0.0
    %1344 = vmatprep.subr.mxu0 0.0
    %1345 = vmatpush1.msra.mxu0 0.0
    %1346 = vmatprep.subr.mxu0 0.0
    %1347 = vmatpush1.msra.mxu0 0.0
    %1348 = vmatprep.subr.mxu0 0.0
    %1349 = vmatpush1.msra.mxu0 0.0
    %1350 = vmatprep.subr.mxu0 0.0
    %1351 = vmatpush1.msra.mxu0 0.0
    %1352 = vmatprep.subr.mxu0 0.0
    %1353 = vmatpush1.msra.mxu0 0.0
    %1354 = vmatprep.subr.mxu0 0.0
    %1355 = vmatpush1.msra.mxu0 0.0
    %1356 = vmatprep.subr.mxu0 0.0
    %1357 = vmatpush1.msra.mxu0 0.0
    %1358 = vmatprep.subr.mxu0 0.0
    %1359 = vmatpush1.msra.mxu0 0.0
    %1360 = vmatprep.subr.mxu0 0.0
    %1361 = vmatpush1.msra.mxu0 0.0
    %1362 = vmatprep.subr.mxu0 0.0
    %1363 = vmatpush1.msra.mxu0 0.0
    %1364 = vmatprep.subr.mxu0 0.0
    %1365 = vmatpush1.msra.mxu0 0.0
    %1366 = vmatprep.subr.mxu0 0.0
    %1367 = vmatpush1.msra.mxu0 0.0
    %1368 = vmatprep.subr.mxu0 0.0
    %1369 = vmatpush1.msra.mxu0 0.0
    %1370 = vmatprep.subr.mxu0 0.0
    %1371 = vmatpush1.msra.mxu0 0.0
    %1372 = vmatprep.subr.mxu0 0.0
    %1373 = vmatpush1.msra.mxu0 0.0
    %1374 = vmatprep.subr.mxu0 0.0
    %1375 = vmatpush1.msra.mxu0 0.0
    %1376 = vmatprep.subr.mxu0 0.0
    %1377 = vmatpush1.msra.mxu0 0.0
    %1378 = vmatprep.subr.mxu0 0.0
    %1379 = vmatpush1.msra.mxu0 0.0
    %1380 = vmatprep.subr.mxu0 0.0
    %1381 = vmatpush1.msra.mxu0 0.0
    %1382 = vmatprep.subr.mxu0 0.0
    %1383 = vmatpush1.msra.mxu0 0.0
    %1384 = vmatprep.subr.mxu0 0.0
    %1385 = vmatpush1.msra.mxu0 0.0
    %1386 = vmatprep.subr.mxu0 0.0
    %1387 = vmatpush1.msra.mxu0 0.0
    %1388 = vmatprep.subr.mxu0 0.0
    %1389 = vmatpush1.msra.mxu0 0.0
    %1390 = vmatprep.subr.mxu0 0.0
    %1391 = vmatpush1.msra.mxu0 0.0
    %1392 = vmatprep.subr.mxu0 0.0
    %1393 = vmatpush1.msra.mxu0 0.0
    %1394 = vmatprep.subr.mxu0 0.0
    %1395 = vmatpush1.msra.mxu0 0.0
    %1396 = vmatprep.subr.mxu0 0.0
    %1397 = vmatpush1.msra.mxu0 0.0
    %1398 = vmatprep.subr.mxu0 0.0
    %1399 = vmatpush1.msra.mxu0 0.0
    %1400 = vmatprep.mubr.f32.mxu0 0.0
    %1401 = vmatmul.mubr.f32.gmra.mrb[0].mxu0 %v1331
    %v1402 = vpop.f32.mrb[0].mxu0
    %v1403 = vadd.f32 %v1328, %v1402
    %v1404 = vpop.f32.mrb[0].mxu0
    %1405 = vmatprep.mubr.f32.mxu0 0.0
    %1406 = vmatmul.mubr.f32.gmra.mrb[0].mxu0 %v1334
    %v1407 = vpop.f32.mrb[0].mxu0
    %v1408 = vadd.f32 %v1328, %v1407
    %v1409 = vpop.f32.mrb[0].mxu0
    %1410 = vdwg.mxu0
    %v1411 = vadd.f32 %v391, %v1403
    %v1412 = vadd.f32 %v392, %v1408
    %v1413 = vld [vmem:[%s13] sm:$0x1]
    %v1414 = vld [vmem:[%s14] sm:$0x1]
    %v1415 = vsel %vm230, %v1411, 0.0
    %1416 = vadd.xlane.f32.xlu0 %v1415
    %v1417 = vpop.xlane.xlu0 %1416
    %v1418 = vsel %vm230, %v1412, 0.0
    %1419 = vadd.xlane.f32.xlu0 %v1418
    %v1420 = vpop.xlane.xlu0 %1419
    %v1421 = vmul.f32 %v1417, %v237
    %v1422 = vmul.f32 %v1420, %v237
    %v1423 = vsub.f32 %v1411, %v1421
    %v1424 = vsub.f32 %v1412, %v1422
    %v1425 = vmul.f32 %v1423, %v1423
    %v1426 = vmul.f32 %v1424, %v1424
    %v1427 = vsel %vm230, %v1425, 0.0
    %1428 = vadd.xlane.f32.xlu0 %v1427
    %v1429 = vpop.xlane.xlu0 %1428
    %v1430 = vsel %vm230, %v1426, 0.0
    %1431 = vadd.xlane.f32.xlu0 %v1430
    %v1432 = vpop.xlane.xlu0 %1431
    %v1433 = vmul.f32 %v1429, %v237
    %v1434 = vmul.f32 %v1432, %v237
    %v1435 = vadd.f32 %v1433, 1e-05
    %v1436 = vadd.f32 %v1434, 1e-05
    %v1437 = vrsqrt.pop %v1435
    %v1438 = vrsqrt.pop %v1436
    %v1439 = vmul.f32 %v1423, %v1437
    %v1440 = vmul.f32 %v1424, %v1438
    %v1442 = vlaneseq
    %v1443 = vshrl.u32 %v1442, 7
    %v1444 = vsub.s32 0, %v1443
    %v1445 = vrot.slane %v1413, %v1444
    %v1447 = vmul.f32 %v1439, %v1445
    %v1448 = vmul.f32 %v1440, %v1445
    %v1450 = vlaneseq
    %v1451 = vshrl.u32 %v1450, 7
    %v1452 = vsub.s32 0, %v1451
    %v1453 = vrot.slane %v1414, %v1452
    %v1455 = vadd.f32 %v1447, %v1453
    %v1456 = vadd.f32 %v1448, %v1453
    %v1457 = vld [vmem:[%s15] sm:$0xff]
    %v1458 = vld [vmem:[%s15 + $0x8] sm:$0xff]
    %v1459 = vld [vmem:[%s16] sm:$0x1]
    %v1461 = vlaneseq
    %v1462 = vshrl.u32 %v1461, 7
    %v1463 = vsub.s32 0, %v1462
    %v1464 = vrot.slane %v1459, %v1463
    %v1467 = vsel %vm230, %v1455, 0
    %v1470 = vsel %vm230, %v1456, 0
    %1472 = vmatprep.subr.mxu0 0.0
    %1473 = vmatpush1.msra.mxu0 %v1457
    %1474 = vmatprep.subr.mxu0 0.0
    %1475 = vmatpush1.msra.mxu0 %v1458
    %1476 = vmatprep.subr.mxu0 0.0
    %1477 = vmatpush1.msra.mxu0 0.0
    %1478 = vmatprep.subr.mxu0 0.0
    %1479 = vmatpush1.msra.mxu0 0.0
    %1480 = vmatprep.subr.mxu0 0.0
    %1481 = vmatpush1.msra.mxu0 0.0
    %1482 = vmatprep.subr.mxu0 0.0
    %1483 = vmatpush1.msra.mxu0 0.0
    %1484 = vmatprep.subr.mxu0 0.0
    %1485 = vmatpush1.msra.mxu0 0.0
    %1486 = vmatprep.subr.mxu0 0.0
    %1487 = vmatpush1.msra.mxu0 0.0
    %1488 = vmatprep.subr.mxu0 0.0
    %1489 = vmatpush1.msra.mxu0 0.0
    %1490 = vmatprep.subr.mxu0 0.0
    %1491 = vmatpush1.msra.mxu0 0.0
    %1492 = vmatprep.subr.mxu0 0.0
    %1493 = vmatpush1.msra.mxu0 0.0
    %1494 = vmatprep.subr.mxu0 0.0
    %1495 = vmatpush1.msra.mxu0 0.0
    %1496 = vmatprep.subr.mxu0 0.0
    %1497 = vmatpush1.msra.mxu0 0.0
    %1498 = vmatprep.subr.mxu0 0.0
    %1499 = vmatpush1.msra.mxu0 0.0
    %1500 = vmatprep.subr.mxu0 0.0
    %1501 = vmatpush1.msra.mxu0 0.0
    %1502 = vmatprep.subr.mxu0 0.0
    %1503 = vmatpush1.msra.mxu0 0.0
    %1504 = vmatprep.subr.mxu0 0.0
    %1505 = vmatpush1.msra.mxu0 0.0
    %1506 = vmatprep.subr.mxu0 0.0
    %1507 = vmatpush1.msra.mxu0 0.0
    %1508 = vmatprep.subr.mxu0 0.0
    %1509 = vmatpush1.msra.mxu0 0.0
    %1510 = vmatprep.subr.mxu0 0.0
    %1511 = vmatpush1.msra.mxu0 0.0
    %1512 = vmatprep.subr.mxu0 0.0
    %1513 = vmatpush1.msra.mxu0 0.0
    %1514 = vmatprep.subr.mxu0 0.0
    %1515 = vmatpush1.msra.mxu0 0.0
    %1516 = vmatprep.subr.mxu0 0.0
    %1517 = vmatpush1.msra.mxu0 0.0
    %1518 = vmatprep.subr.mxu0 0.0
    %1519 = vmatpush1.msra.mxu0 0.0
    %1520 = vmatprep.subr.mxu0 0.0
    %1521 = vmatpush1.msra.mxu0 0.0
    %1522 = vmatprep.subr.mxu0 0.0
    %1523 = vmatpush1.msra.mxu0 0.0
    %1524 = vmatprep.subr.mxu0 0.0
    %1525 = vmatpush1.msra.mxu0 0.0
    %1526 = vmatprep.subr.mxu0 0.0
    %1527 = vmatpush1.msra.mxu0 0.0
    %1528 = vmatprep.subr.mxu0 0.0
    %1529 = vmatpush1.msra.mxu0 0.0
    %1530 = vmatprep.subr.mxu0 0.0
    %1531 = vmatpush1.msra.mxu0 0.0
    %1532 = vmatprep.subr.mxu0 0.0
    %1533 = vmatpush1.msra.mxu0 0.0
    %1534 = vmatprep.subr.mxu0 0.0
    %1535 = vmatpush1.msra.mxu0 0.0
    %1536 = vmatprep.mubr.f32.mxu0 0.0
    %1537 = vmatmul.mubr.f32.gmra.mrb[0].mxu0 %v1467
    %v1538 = vpop.f32.mrb[0].mxu0
    %v1539 = vadd.f32 %v1464, %v1538
    %v1540 = vpop.f32.mrb[0].mxu0
    %1541 = vmatprep.mubr.f32.mxu0 0.0
    %1542 = vmatmul.mubr.f32.gmra.mrb[0].mxu0 %v1470
    %v1543 = vpop.f32.mrb[0].mxu0
    %v1544 = vadd.f32 %v1464, %v1543
    %v1545 = vpop.f32.mrb[0].mxu0
    %1546 = vdwg.mxu0
    %v1547 = vmax.f32 %v1539, 0.0
    %v1548 = vmax.f32 %v1544, 0.0
    %v1549 = vld [vmem:[%s17] sm:$0xff]
    %v1550 = vld [vmem:[%s17 + $0x8] sm:$0xff]
    %v1551 = vld [vmem:[%s17 + $0x10] sm:$0xff]
    %v1552 = vld [vmem:[%s17 + $0x18] sm:$0xff]
    %v1553 = vld [vmem:[%s18] sm:$0x1]
    %v1555 = vlaneseq
    %v1556 = vshrl.u32 %v1555, 7
    %v1557 = vsub.s32 0, %v1556
    %v1558 = vrot.slane %v1553, %v1557
    %vm1560 = vcmask 261120
    %v1562 = vsel %vm1560, %v1547, 0
    %v1565 = vsel %vm1560, %v1548, 0
    %1567 = vmatprep.subr.mxu0 0.0
    %1568 = vmatpush1.msra.mxu0 %v1549
    %1569 = vmatprep.subr.mxu0 0.0
    %1570 = vmatpush1.msra.mxu0 %v1550
    %1571 = vmatprep.subr.mxu0 0.0
    %1572 = vmatpush1.msra.mxu0 %v1551
    %1573 = vmatprep.subr.mxu0 0.0
    %1574 = vmatpush1.msra.mxu0 %v1552
    %1575 = vmatprep.subr.mxu0 0.0
    %1576 = vmatpush1.msra.mxu0 0.0
    %1577 = vmatprep.subr.mxu0 0.0
    %1578 = vmatpush1.msra.mxu0 0.0
    %1579 = vmatprep.subr.mxu0 0.0
    %1580 = vmatpush1.msra.mxu0 0.0
    %1581 = vmatprep.subr.mxu0 0.0
    %1582 = vmatpush1.msra.mxu0 0.0
    %1583 = vmatprep.subr.mxu0 0.0
    %1584 = vmatpush1.msra.mxu0 0.0
    %1585 = vmatprep.subr.mxu0 0.0
    %1586 = vmatpush1.msra.mxu0 0.0
    %1587 = vmatprep.subr.mxu0 0.0
    %1588 = vmatpush1.msra.mxu0 0.0
    %1589 = vmatprep.subr.mxu0 0.0
    %1590 = vmatpush1.msra.mxu0 0.0
    %1591 = vmatprep.subr.mxu0 0.0
    %1592 = vmatpush1.msra.mxu0 0.0
    %1593 = vmatprep.subr.mxu0 0.0
    %1594 = vmatpush1.msra.mxu0 0.0
    %1595 = vmatprep.subr.mxu0 0.0
    %1596 = vmatpush1.msra.mxu0 0.0
    %1597 = vmatprep.subr.mxu0 0.0
    %1598 = vmatpush1.msra.mxu0 0.0
    %1599 = vmatprep.subr.mxu0 0.0
    %1600 = vmatpush1.msra.mxu0 0.0
    %1601 = vmatprep.subr.mxu0 0.0
    %1602 = vmatpush1.msra.mxu0 0.0
    %1603 = vmatprep.subr.mxu0 0.0
    %1604 = vmatpush1.msra.mxu0 0.0
    %1605 = vmatprep.subr.mxu0 0.0
    %1606 = vmatpush1.msra.mxu0 0.0
    %1607 = vmatprep.subr.mxu0 0.0
    %1608 = vmatpush1.msra.mxu0 0.0
    %1609 = vmatprep.subr.mxu0 0.0
    %1610 = vmatpush1.msra.mxu0 0.0
    %1611 = vmatprep.subr.mxu0 0.0
    %1612 = vmatpush1.msra.mxu0 0.0
    %1613 = vmatprep.subr.mxu0 0.0
    %1614 = vmatpush1.msra.mxu0 0.0
    %1615 = vmatprep.subr.mxu0 0.0
    %1616 = vmatpush1.msra.mxu0 0.0
    %1617 = vmatprep.subr.mxu0 0.0
    %1618 = vmatpush1.msra.mxu0 0.0
    %1619 = vmatprep.subr.mxu0 0.0
    %1620 = vmatpush1.msra.mxu0 0.0
    %1621 = vmatprep.subr.mxu0 0.0
    %1622 = vmatpush1.msra.mxu0 0.0
    %1623 = vmatprep.subr.mxu0 0.0
    %1624 = vmatpush1.msra.mxu0 0.0
    %1625 = vmatprep.subr.mxu0 0.0
    %1626 = vmatpush1.msra.mxu0 0.0
    %1627 = vmatprep.subr.mxu0 0.0
    %1628 = vmatpush1.msra.mxu0 0.0
    %1629 = vmatprep.subr.mxu0 0.0
    %1630 = vmatpush1.msra.mxu0 0.0
    %1631 = vmatprep.mubr.f32.mxu0 0.0
    %1632 = vmatmul.mubr.f32.gmra.mrb[0].mxu0 %v1562
    %v1633 = vpop.f32.mrb[0].mxu0
    %v1634 = vadd.f32 %v1558, %v1633
    %v1635 = vpop.f32.mrb[0].mxu0
    %1636 = vmatprep.mubr.f32.mxu0 0.0
    %1637 = vmatmul.mubr.f32.gmra.mrb[0].mxu0 %v1565
    %v1638 = vpop.f32.mrb[0].mxu0
    %v1639 = vadd.f32 %v1558, %v1638
    %v1640 = vpop.f32.mrb[0].mxu0
    %1641 = vdwg.mxu0
    %v1642 = vadd.f32 %v1455, %v1634
    %v1643 = vadd.f32 %v1456, %v1639
    %v1644 = vld [vmem:[%s19] sm:$0x1]
    %v1645 = vld [vmem:[%s20] sm:$0x1]
    %v1646 = vsel %vm230, %v1642, 0.0
    %1647 = vadd.xlane.f32.xlu0 %v1646
    %v1648 = vpop.xlane.xlu0 %1647
    %v1649 = vsel %vm230, %v1643, 0.0
    %1650 = vadd.xlane.f32.xlu0 %v1649
    %v1651 = vpop.xlane.xlu0 %1650
    %v1652 = vmul.f32 %v1648, %v237
    %v1653 = vmul.f32 %v1651, %v237
    %v1654 = vsub.f32 %v1642, %v1652
    %v1655 = vsub.f32 %v1643, %v1653
    %v1656 = vmul.f32 %v1654, %v1654
    %v1657 = vmul.f32 %v1655, %v1655
    %v1658 = vsel %vm230, %v1656, 0.0
    %1659 = vadd.xlane.f32.xlu0 %v1658
    %v1660 = vpop.xlane.xlu0 %1659
    %v1661 = vsel %vm230, %v1657, 0.0
    %1662 = vadd.xlane.f32.xlu0 %v1661
    %v1663 = vpop.xlane.xlu0 %1662
    %v1664 = vmul.f32 %v1660, %v237
    %v1665 = vmul.f32 %v1663, %v237
    %v1666 = vadd.f32 %v1664, 1e-05
    %v1667 = vadd.f32 %v1665, 1e-05
    %v1668 = vrsqrt.pop %v1666
    %v1669 = vrsqrt.pop %v1667
    %v1670 = vmul.f32 %v1654, %v1668
    %v1671 = vmul.f32 %v1655, %v1669
    %v1673 = vlaneseq
    %v1674 = vshrl.u32 %v1673, 7
    %v1675 = vsub.s32 0, %v1674
    %v1676 = vrot.slane %v1644, %v1675
    %v1678 = vmul.f32 %v1670, %v1676
    %v1679 = vmul.f32 %v1671, %v1676
    %v1681 = vlaneseq
    %v1682 = vshrl.u32 %v1681, 7
    %v1683 = vsub.s32 0, %v1682
    %v1684 = vrot.slane %v1645, %v1683
    %v1686 = vadd.f32 %v1678, %v1684
    %v1687 = vadd.f32 %v1679, %v1684
    %s1688 = scalar_lea.vmem %s9, 16
    %v1689 = vld [vmem:[%s1688] sm:$0xff]
    %v1690 = vld [vmem:[%s1688 + $0x8] sm:$0xff]
    %s1691 = scalar_lea.vmem %s10, 1
    %v1692 = vld [vmem:[%s1691] sm:$0x1]
    %v1694 = vlaneseq
    %v1695 = vshrl.u32 %v1694, 7
    %v1696 = vsub.s32 0, %v1695
    %v1697 = vrot.slane %v1692, %v1696
    %v1700 = vsel %vm230, %v1686, 0
    %v1703 = vsel %vm230, %v1687, 0
    %1705 = vmatprep.subr.mxu0 0.0
    %1706 = vmatpush1.msra.mxu0 %v1689
    %1707 = vmatprep.subr.mxu0 0.0
    %1708 = vmatpush1.msra.mxu0 %v1690
    %1709 = vmatprep.subr.mxu0 0.0
    %1710 = vmatpush1.msra.mxu0 0.0
    %1711 = vmatprep.subr.mxu0 0.0
    %1712 = vmatpush1.msra.mxu0 0.0
    %1713 = vmatprep.subr.mxu0 0.0
    %1714 = vmatpush1.msra.mxu0 0.0
    %1715 = vmatprep.subr.mxu0 0.0
    %1716 = vmatpush1.msra.mxu0 0.0
    %1717 = vmatprep.subr.mxu0 0.0
    %1718 = vmatpush1.msra.mxu0 0.0
    %1719 = vmatprep.subr.mxu0 0.0
    %1720 = vmatpush1.msra.mxu0 0.0
    %1721 = vmatprep.subr.mxu0 0.0
    %1722 = vmatpush1.msra.mxu0 0.0
    %1723 = vmatprep.subr.mxu0 0.0
    %1724 = vmatpush1.msra.mxu0 0.0
    %1725 = vmatprep.subr.mxu0 0.0
    %1726 = vmatpush1.msra.mxu0 0.0
    %1727 = vmatprep.subr.mxu0 0.0
    %1728 = vmatpush1.msra.mxu0 0.0
    %1729 = vmatprep.subr.mxu0 0.0
    %1730 = vmatpush1.msra.mxu0 0.0
    %1731 = vmatprep.subr.mxu0 0.0
    %1732 = vmatpush1.msra.mxu0 0.0
    %1733 = vmatprep.subr.mxu0 0.0
    %1734 = vmatpush1.msra.mxu0 0.0
    %1735 = vmatprep.subr.mxu0 0.0
    %1736 = vmatpush1.msra.mxu0 0.0
    %1737 = vmatprep.subr.mxu0 0.0
    %1738 = vmatpush1.msra.mxu0 0.0
    %1739 = vmatprep.subr.mxu0 0.0
    %1740 = vmatpush1.msra.mxu0 0.0
    %1741 = vmatprep.subr.mxu0 0.0
    %1742 = vmatpush1.msra.mxu0 0.0
    %1743 = vmatprep.subr.mxu0 0.0
    %1744 = vmatpush1.msra.mxu0 0.0
    %1745 = vmatprep.subr.mxu0 0.0
    %1746 = vmatpush1.msra.mxu0 0.0
    %1747 = vmatprep.subr.mxu0 0.0
    %1748 = vmatpush1.msra.mxu0 0.0
    %1749 = vmatprep.subr.mxu0 0.0
    %1750 = vmatpush1.msra.mxu0 0.0
    %1751 = vmatprep.subr.mxu0 0.0
    %1752 = vmatpush1.msra.mxu0 0.0
    %1753 = vmatprep.subr.mxu0 0.0
    %1754 = vmatpush1.msra.mxu0 0.0
    %1755 = vmatprep.subr.mxu0 0.0
    %1756 = vmatpush1.msra.mxu0 0.0
    %1757 = vmatprep.subr.mxu0 0.0
    %1758 = vmatpush1.msra.mxu0 0.0
    %1759 = vmatprep.subr.mxu0 0.0
    %1760 = vmatpush1.msra.mxu0 0.0
    %1761 = vmatprep.subr.mxu0 0.0
    %1762 = vmatpush1.msra.mxu0 0.0
    %1763 = vmatprep.subr.mxu0 0.0
    %1764 = vmatpush1.msra.mxu0 0.0
    %1765 = vmatprep.subr.mxu0 0.0
    %1766 = vmatpush1.msra.mxu0 0.0
    %1767 = vmatprep.subr.mxu0 0.0
    %1768 = vmatpush1.msra.mxu0 0.0
    %1769 = vmatprep.mubr.f32.mxu0 0.0
    %1770 = vmatmul.mubr.f32.gmra.mrb[0].mxu0 %v1700
    %v1771 = vpop.f32.mrb[0].mxu0
    %v1772 = vadd.f32 %v1697, %v1771
    %v1773 = vpop.f32.mrb[0].mxu0
    %1774 = vmatprep.mubr.f32.mxu0 0.0
    %1775 = vmatmul.mubr.f32.gmra.mrb[0].mxu0 %v1703
    %v1776 = vpop.f32.mrb[0].mxu0
    %v1777 = vadd.f32 %v1697, %v1776
    %v1778 = vpop.f32.mrb[0].mxu0
    %1779 = vdwg.mxu0
    %1782 = vrot.lane.b32.xlu0 %v1772, 112
    %v1783 = vpop.permute.xlu0 %1782
    %1784 = vrot.lane.b32.xlu0 %v1777, 112
    %v1785 = vpop.permute.xlu0 %1784
    %v1786 = vsel %vm489, %v1772, 0
    %v1788 = vsel %vm489, %v1777, 0
    %v1790 = vsel %vm489, %v1783, 0
    %v1792 = vsel %vm489, %v1785, 0
    %1794 = vmatprep.subr.mxu0 0.0
    %1795 = vmatpush1.xpose.msra.mxu0 %v1790
    %1796 = vmatprep.subr.mxu0 0.0
    %1797 = vmatpush1.xpose.msra.mxu0 %v1792
    %1798 = vmatprep.subr.mxu0 0.0
    %1799 = vmatpush1.xpose.msra.mxu0 0.0
    %1800 = vmatprep.subr.mxu0 0.0
    %1801 = vmatpush1.xpose.msra.mxu0 0.0
    %1802 = vmatprep.subr.mxu0 0.0
    %1803 = vmatpush1.xpose.msra.mxu0 0.0
    %1804 = vmatprep.subr.mxu0 0.0
    %1805 = vmatpush1.xpose.msra.mxu0 0.0
    %1806 = vmatprep.subr.mxu0 0.0
    %1807 = vmatpush1.xpose.msra.mxu0 0.0
    %1808 = vmatprep.subr.mxu0 0.0
    %1809 = vmatpush1.xpose.msra.mxu0 0.0
    %1810 = vmatprep.subr.mxu0 0.0
    %1811 = vmatpush1.xpose.msra.mxu0 0.0
    %1812 = vmatprep.subr.mxu0 0.0
    %1813 = vmatpush1.xpose.msra.mxu0 0.0
    %1814 = vmatprep.subr.mxu0 0.0
    %1815 = vmatpush1.xpose.msra.mxu0 0.0
    %1816 = vmatprep.subr.mxu0 0.0
    %1817 = vmatpush1.xpose.msra.mxu0 0.0
    %1818 = vmatprep.subr.mxu0 0.0
    %1819 = vmatpush1.xpose.msra.mxu0 0.0
    %1820 = vmatprep.subr.mxu0 0.0
    %1821 = vmatpush1.xpose.msra.mxu0 0.0
    %1822 = vmatprep.subr.mxu0 0.0
    %1823 = vmatpush1.xpose.msra.mxu0 0.0
    %1824 = vmatprep.subr.mxu0 0.0
    %1825 = vmatpush1.xpose.msra.mxu0 0.0
    %1826 = vmatprep.subr.mxu0 0.0
    %1827 = vmatpush1.xpose.msra.mxu0 0.0
    %1828 = vmatprep.subr.mxu0 0.0
    %1829 = vmatpush1.xpose.msra.mxu0 0.0
    %1830 = vmatprep.subr.mxu0 0.0
    %1831 = vmatpush1.xpose.msra.mxu0 0.0
    %1832 = vmatprep.subr.mxu0 0.0
    %1833 = vmatpush1.xpose.msra.mxu0 0.0
    %1834 = vmatprep.subr.mxu0 0.0
    %1835 = vmatpush1.xpose.msra.mxu0 0.0
    %1836 = vmatprep.subr.mxu0 0.0
    %1837 = vmatpush1.xpose.msra.mxu0 0.0
    %1838 = vmatprep.subr.mxu0 0.0
    %1839 = vmatpush1.xpose.msra.mxu0 0.0
    %1840 = vmatprep.subr.mxu0 0.0
    %1841 = vmatpush1.xpose.msra.mxu0 0.0
    %1842 = vmatprep.subr.mxu0 0.0
    %1843 = vmatpush1.xpose.msra.mxu0 0.0
    %1844 = vmatprep.subr.mxu0 0.0
    %1845 = vmatpush1.xpose.msra.mxu0 0.0
    %1846 = vmatprep.subr.mxu0 0.0
    %1847 = vmatpush1.xpose.msra.mxu0 0.0
    %1848 = vmatprep.subr.mxu0 0.0
    %1849 = vmatpush1.xpose.msra.mxu0 0.0
    %1850 = vmatprep.subr.mxu0 0.0
    %1851 = vmatpush1.xpose.msra.mxu0 0.0
    %1852 = vmatprep.subr.mxu0 0.0
    %1853 = vmatpush1.xpose.msra.mxu0 0.0
    %1854 = vmatprep.subr.mxu0 0.0
    %1855 = vmatpush1.xpose.msra.mxu0 0.0
    %1856 = vmatprep.subr.mxu0 0.0
    %1857 = vmatpush1.xpose.msra.mxu0 0.0
    %1858 = vmatprep.mubr.f32.mxu0 0.0
    %1859 = vmatmul.mubr.f32.gmra.mrb[0].mxu0 %v1786
    %v1860 = vpop.f32.mrb[0].mxu0
    %v1861 = vadd.f32 0.0, %v1860
    %v1862 = vpop.f32.mrb[0].mxu0
    %1863 = vmatprep.mubr.f32.mxu0 0.0
    %1864 = vmatmul.mubr.f32.gmra.mrb[0].mxu0 %v1788
    %v1865 = vpop.f32.mrb[0].mxu0
    %v1866 = vadd.f32 0.0, %v1865
    %v1867 = vpop.f32.mrb[0].mxu0
    %1868 = vdwg.mxu0
    %v1869 = vmul.f32 %v1861, 0.5
    %v1870 = vmul.f32 %v1866, 0.5
    %v1871 = vsel %vm230, %v1869, -inf
    %1872 = vmax.xlane.f32.xlu0 %v1871
    %v1873 = vpop.xlane.xlu0 %1872
    %v1874 = vsel %vm230, %v1870, -inf
    %1875 = vmax.xlane.f32.xlu0 %v1874
    %v1876 = vpop.xlane.xlu0 %1875
    %v1877 = vsub.f32 %v1869, %v1873
    %v1878 = vsub.f32 %v1870, %v1876
    %v1879 = vmul.f32 %v1877, 1.442695
    %v1880 = vpow.pop %v1879
    %v1881 = vmul.f32 %v1878, 1.442695
    %v1882 = vpow.pop %v1881
    %v1883 = vsel %vm230, %v1880, 0.0
    %1884 = vadd.xlane.f32.xlu0 %v1883
    %v1885 = vpop.xlane.xlu0 %1884
    %v1886 = vsel %vm230, %v1882, 0.0
    %1887 = vadd.xlane.f32.xlu0 %v1886
    %v1888 = vpop.xlane.xlu0 %1887
    %v1889 = vrcp.pop %v1885
    %v1890 = vmul.f32 %v1880, %v1889
    %v1891 = vrcp.pop %v1888
    %v1892 = vmul.f32 %v1882, %v1891
    %1893 = vrot.lane.b32.xlu0 %v1772, 96
    %v1894 = vpop.permute.xlu0 %1893
    %1895 = vrot.lane.b32.xlu0 %v1777, 96
    %v1896 = vpop.permute.xlu0 %1895
    %v1900 = vsel %vm230, %v1890, 0
    %v1903 = vsel %vm230, %v1892, 0
    %1905 = vmatprep.subr.mxu0 0.0
    %1906 = vmatpush1.msra.mxu0 %v1894
    %1907 = vmatprep.subr.mxu0 0.0
    %1908 = vmatpush1.msra.mxu0 %v1896
    %1909 = vmatprep.subr.mxu0 0.0
    %1910 = vmatpush1.msra.mxu0 0.0
    %1911 = vmatprep.subr.mxu0 0.0
    %1912 = vmatpush1.msra.mxu0 0.0
    %1913 = vmatprep.subr.mxu0 0.0
    %1914 = vmatpush1.msra.mxu0 0.0
    %1915 = vmatprep.subr.mxu0 0.0
    %1916 = vmatpush1.msra.mxu0 0.0
    %1917 = vmatprep.subr.mxu0 0.0
    %1918 = vmatpush1.msra.mxu0 0.0
    %1919 = vmatprep.subr.mxu0 0.0
    %1920 = vmatpush1.msra.mxu0 0.0
    %1921 = vmatprep.subr.mxu0 0.0
    %1922 = vmatpush1.msra.mxu0 0.0
    %1923 = vmatprep.subr.mxu0 0.0
    %1924 = vmatpush1.msra.mxu0 0.0
    %1925 = vmatprep.subr.mxu0 0.0
    %1926 = vmatpush1.msra.mxu0 0.0
    %1927 = vmatprep.subr.mxu0 0.0
    %1928 = vmatpush1.msra.mxu0 0.0
    %1929 = vmatprep.subr.mxu0 0.0
    %1930 = vmatpush1.msra.mxu0 0.0
    %1931 = vmatprep.subr.mxu0 0.0
    %1932 = vmatpush1.msra.mxu0 0.0
    %1933 = vmatprep.subr.mxu0 0.0
    %1934 = vmatpush1.msra.mxu0 0.0
    %1935 = vmatprep.subr.mxu0 0.0
    %1936 = vmatpush1.msra.mxu0 0.0
    %1937 = vmatprep.subr.mxu0 0.0
    %1938 = vmatpush1.msra.mxu0 0.0
    %1939 = vmatprep.subr.mxu0 0.0
    %1940 = vmatpush1.msra.mxu0 0.0
    %1941 = vmatprep.subr.mxu0 0.0
    %1942 = vmatpush1.msra.mxu0 0.0
    %1943 = vmatprep.subr.mxu0 0.0
    %1944 = vmatpush1.msra.mxu0 0.0
    %1945 = vmatprep.subr.mxu0 0.0
    %1946 = vmatpush1.msra.mxu0 0.0
    %1947 = vmatprep.subr.mxu0 0.0
    %1948 = vmatpush1.msra.mxu0 0.0
    %1949 = vmatprep.subr.mxu0 0.0
    %1950 = vmatpush1.msra.mxu0 0.0
    %1951 = vmatprep.subr.mxu0 0.0
    %1952 = vmatpush1.msra.mxu0 0.0
    %1953 = vmatprep.subr.mxu0 0.0
    %1954 = vmatpush1.msra.mxu0 0.0
    %1955 = vmatprep.subr.mxu0 0.0
    %1956 = vmatpush1.msra.mxu0 0.0
    %1957 = vmatprep.subr.mxu0 0.0
    %1958 = vmatpush1.msra.mxu0 0.0
    %1959 = vmatprep.subr.mxu0 0.0
    %1960 = vmatpush1.msra.mxu0 0.0
    %1961 = vmatprep.subr.mxu0 0.0
    %1962 = vmatpush1.msra.mxu0 0.0
    %1963 = vmatprep.subr.mxu0 0.0
    %1964 = vmatpush1.msra.mxu0 0.0
    %1965 = vmatprep.subr.mxu0 0.0
    %1966 = vmatpush1.msra.mxu0 0.0
    %1967 = vmatprep.subr.mxu0 0.0
    %1968 = vmatpush1.msra.mxu0 0.0
    %1969 = vmatprep.mubr.f32.mxu0 0.0
    %1970 = vmatmul.mubr.f32.gmra.mrb[0].mxu0 %v1900
    %v1971 = vpop.f32.mrb[0].mxu0
    %v1972 = vadd.f32 0.0, %v1971
    %v1973 = vpop.f32.mrb[0].mxu0
    %1974 = vmatprep.mubr.f32.mxu0 0.0
    %1975 = vmatmul.mubr.f32.gmra.mrb[0].mxu0 %v1903
    %v1976 = vpop.f32.mrb[0].mxu0
    %v1977 = vadd.f32 0.0, %v1976
    %v1978 = vpop.f32.mrb[0].mxu0
    %1979 = vdwg.mxu0
    %1980 = vrot.lane.b32.xlu0 %v1772, 124
    %v1981 = vpop.permute.xlu0 %1980
    %1982 = vrot.lane.b32.xlu0 %v1777, 124
    %v1983 = vpop.permute.xlu0 %1982
    %1984 = vrot.lane.b32.xlu0 %v1772, 108
    %v1985 = vpop.permute.xlu0 %1984
    %1986 = vrot.lane.b32.xlu0 %v1777, 108
    %v1987 = vpop.permute.xlu0 %1986
    %v1988 = vsel %vm489, %v1981, 0
    %v1990 = vsel %vm489, %v1983, 0
    %v1992 = vsel %vm489, %v1985, 0
    %v1994 = vsel %vm489, %v1987, 0
    %1996 = vmatprep.subr.mxu0 0.0
    %1997 = vmatpush1.xpose.msra.mxu0 %v1992
    %1998 = vmatprep.subr.mxu0 0.0
    %1999 = vmatpush1.xpose.msra.mxu0 %v1994
    %2000 = vmatprep.subr.mxu0 0.0
    %2001 = vmatpush1.xpose.msra.mxu0 0.0
    %2002 = vmatprep.subr.mxu0 0.0
    %2003 = vmatpush1.xpose.msra.mxu0 0.0
    %2004 = vmatprep.subr.mxu0 0.0
    %2005 = vmatpush1.xpose.msra.mxu0 0.0
    %2006 = vmatprep.subr.mxu0 0.0
    %2007 = vmatpush1.xpose.msra.mxu0 0.0
    %2008 = vmatprep.subr.mxu0 0.0
    %2009 = vmatpush1.xpose.msra.mxu0 0.0
    %2010 = vmatprep.subr.mxu0 0.0
    %2011 = vmatpush1.xpose.msra.mxu0 0.0
    %2012 = vmatprep.subr.mxu0 0.0
    %2013 = vmatpush1.xpose.msra.mxu0 0.0
    %2014 = vmatprep.subr.mxu0 0.0
    %2015 = vmatpush1.xpose.msra.mxu0 0.0
    %2016 = vmatprep.subr.mxu0 0.0
    %2017 = vmatpush1.xpose.msra.mxu0 0.0
    %2018 = vmatprep.subr.mxu0 0.0
    %2019 = vmatpush1.xpose.msra.mxu0 0.0
    %2020 = vmatprep.subr.mxu0 0.0
    %2021 = vmatpush1.xpose.msra.mxu0 0.0
    %2022 = vmatprep.subr.mxu0 0.0
    %2023 = vmatpush1.xpose.msra.mxu0 0.0
    %2024 = vmatprep.subr.mxu0 0.0
    %2025 = vmatpush1.xpose.msra.mxu0 0.0
    %2026 = vmatprep.subr.mxu0 0.0
    %2027 = vmatpush1.xpose.msra.mxu0 0.0
    %2028 = vmatprep.subr.mxu0 0.0
    %2029 = vmatpush1.xpose.msra.mxu0 0.0
    %2030 = vmatprep.subr.mxu0 0.0
    %2031 = vmatpush1.xpose.msra.mxu0 0.0
    %2032 = vmatprep.subr.mxu0 0.0
    %2033 = vmatpush1.xpose.msra.mxu0 0.0
    %2034 = vmatprep.subr.mxu0 0.0
    %2035 = vmatpush1.xpose.msra.mxu0 0.0
    %2036 = vmatprep.subr.mxu0 0.0
    %2037 = vmatpush1.xpose.msra.mxu0 0.0
    %2038 = vmatprep.subr.mxu0 0.0
    %2039 = vmatpush1.xpose.msra.mxu0 0.0
    %2040 = vmatprep.subr.mxu0 0.0
    %2041 = vmatpush1.xpose.msra.mxu0 0.0
    %2042 = vmatprep.subr.mxu0 0.0
    %2043 = vmatpush1.xpose.msra.mxu0 0.0
    %2044 = vmatprep.subr.mxu0 0.0
    %2045 = vmatpush1.xpose.msra.mxu0 0.0
    %2046 = vmatprep.subr.mxu0 0.0
    %2047 = vmatpush1.xpose.msra.mxu0 0.0
    %2048 = vmatprep.subr.mxu0 0.0
    %2049 = vmatpush1.xpose.msra.mxu0 0.0
    %2050 = vmatprep.subr.mxu0 0.0
    %2051 = vmatpush1.xpose.msra.mxu0 0.0
    %2052 = vmatprep.subr.mxu0 0.0
    %2053 = vmatpush1.xpose.msra.mxu0 0.0
    %2054 = vmatprep.subr.mxu0 0.0
    %2055 = vmatpush1.xpose.msra.mxu0 0.0
    %2056 = vmatprep.subr.mxu0 0.0
    %2057 = vmatpush1.xpose.msra.mxu0 0.0
    %2058 = vmatprep.subr.mxu0 0.0
    %2059 = vmatpush1.xpose.msra.mxu0 0.0
    %2060 = vmatprep.mubr.f32.mxu0 0.0
    %2061 = vmatmul.mubr.f32.gmra.mrb[0].mxu0 %v1988
    %v2062 = vpop.f32.mrb[0].mxu0
    %v2063 = vadd.f32 0.0, %v2062
    %v2064 = vpop.f32.mrb[0].mxu0
    %2065 = vmatprep.mubr.f32.mxu0 0.0
    %2066 = vmatmul.mubr.f32.gmra.mrb[0].mxu0 %v1990
    %v2067 = vpop.f32.mrb[0].mxu0
    %v2068 = vadd.f32 0.0, %v2067
    %v2069 = vpop.f32.mrb[0].mxu0
    %2070 = vdwg.mxu0
    %v2071 = vmul.f32 %v2063, 0.5
    %v2072 = vmul.f32 %v2068, 0.5
    %v2073 = vsel %vm230, %v2071, -inf
    %2074 = vmax.xlane.f32.xlu0 %v2073
    %v2075 = vpop.xlane.xlu0 %2074
    %v2076 = vsel %vm230, %v2072, -inf
    %2077 = vmax.xlane.f32.xlu0 %v2076
    %v2078 = vpop.xlane.xlu0 %2077
    %v2079 = vsub.f32 %v2071, %v2075
    %v2080 = vsub.f32 %v2072, %v2078
    %v2081 = vmul.f32 %v2079, 1.442695
    %v2082 = vpow.pop %v2081
    %v2083 = vmul.f32 %v2080, 1.442695
    %v2084 = vpow.pop %v2083
    %v2085 = vsel %vm230, %v2082, 0.0
    %2086 = vadd.xlane.f32.xlu0 %v2085
    %v2087 = vpop.xlane.xlu0 %2086
    %v2088 = vsel %vm230, %v2084, 0.0
    %2089 = vadd.xlane.f32.xlu0 %v2088
    %v2090 = vpop.xlane.xlu0 %2089
    %v2091 = vrcp.pop %v2087
    %v2092 = vmul.f32 %v2082, %v2091
    %v2093 = vrcp.pop %v2090
    %v2094 = vmul.f32 %v2084, %v2093
    %2095 = vrot.lane.b32.xlu0 %v1772, 92
    %v2096 = vpop.permute.xlu0 %2095
    %2097 = vrot.lane.b32.xlu0 %v1777, 92
    %v2098 = vpop.permute.xlu0 %2097
    %v2102 = vsel %vm230, %v2092, 0
    %v2105 = vsel %vm230, %v2094, 0
    %2107 = vmatprep.subr.mxu0 0.0
    %2108 = vmatpush1.msra.mxu0 %v2096
    %2109 = vmatprep.subr.mxu0 0.0
    %2110 = vmatpush1.msra.mxu0 %v2098
    %2111 = vmatprep.subr.mxu0 0.0
    %2112 = vmatpush1.msra.mxu0 0.0
    %2113 = vmatprep.subr.mxu0 0.0
    %2114 = vmatpush1.msra.mxu0 0.0
    %2115 = vmatprep.subr.mxu0 0.0
    %2116 = vmatpush1.msra.mxu0 0.0
    %2117 = vmatprep.subr.mxu0 0.0
    %2118 = vmatpush1.msra.mxu0 0.0
    %2119 = vmatprep.subr.mxu0 0.0
    %2120 = vmatpush1.msra.mxu0 0.0
    %2121 = vmatprep.subr.mxu0 0.0
    %2122 = vmatpush1.msra.mxu0 0.0
    %2123 = vmatprep.subr.mxu0 0.0
    %2124 = vmatpush1.msra.mxu0 0.0
    %2125 = vmatprep.subr.mxu0 0.0
    %2126 = vmatpush1.msra.mxu0 0.0
    %2127 = vmatprep.subr.mxu0 0.0
    %2128 = vmatpush1.msra.mxu0 0.0
    %2129 = vmatprep.subr.mxu0 0.0
    %2130 = vmatpush1.msra.mxu0 0.0
    %2131 = vmatprep.subr.mxu0 0.0
    %2132 = vmatpush1.msra.mxu0 0.0
    %2133 = vmatprep.subr.mxu0 0.0
    %2134 = vmatpush1.msra.mxu0 0.0
    %2135 = vmatprep.subr.mxu0 0.0
    %2136 = vmatpush1.msra.mxu0 0.0
    %2137 = vmatprep.subr.mxu0 0.0
    %2138 = vmatpush1.msra.mxu0 0.0
    %2139 = vmatprep.subr.mxu0 0.0
    %2140 = vmatpush1.msra.mxu0 0.0
    %2141 = vmatprep.subr.mxu0 0.0
    %2142 = vmatpush1.msra.mxu0 0.0
    %2143 = vmatprep.subr.mxu0 0.0
    %2144 = vmatpush1.msra.mxu0 0.0
    %2145 = vmatprep.subr.mxu0 0.0
    %2146 = vmatpush1.msra.mxu0 0.0
    %2147 = vmatprep.subr.mxu0 0.0
    %2148 = vmatpush1.msra.mxu0 0.0
    %2149 = vmatprep.subr.mxu0 0.0
    %2150 = vmatpush1.msra.mxu0 0.0
    %2151 = vmatprep.subr.mxu0 0.0
    %2152 = vmatpush1.msra.mxu0 0.0
    %2153 = vmatprep.subr.mxu0 0.0
    %2154 = vmatpush1.msra.mxu0 0.0
    %2155 = vmatprep.subr.mxu0 0.0
    %2156 = vmatpush1.msra.mxu0 0.0
    %2157 = vmatprep.subr.mxu0 0.0
    %2158 = vmatpush1.msra.mxu0 0.0
    %2159 = vmatprep.subr.mxu0 0.0
    %2160 = vmatpush1.msra.mxu0 0.0
    %2161 = vmatprep.subr.mxu0 0.0
    %2162 = vmatpush1.msra.mxu0 0.0
    %2163 = vmatprep.subr.mxu0 0.0
    %2164 = vmatpush1.msra.mxu0 0.0
    %2165 = vmatprep.subr.mxu0 0.0
    %2166 = vmatpush1.msra.mxu0 0.0
    %2167 = vmatprep.subr.mxu0 0.0
    %2168 = vmatpush1.msra.mxu0 0.0
    %2169 = vmatprep.subr.mxu0 0.0
    %2170 = vmatpush1.msra.mxu0 0.0
    %2171 = vmatprep.mubr.f32.mxu0 0.0
    %2172 = vmatmul.mubr.f32.gmra.mrb[0].mxu0 %v2102
    %v2173 = vpop.f32.mrb[0].mxu0
    %v2174 = vadd.f32 0.0, %v2173
    %v2175 = vpop.f32.mrb[0].mxu0
    %2176 = vmatprep.mubr.f32.mxu0 0.0
    %2177 = vmatmul.mubr.f32.gmra.mrb[0].mxu0 %v2105
    %v2178 = vpop.f32.mrb[0].mxu0
    %v2179 = vadd.f32 0.0, %v2178
    %v2180 = vpop.f32.mrb[0].mxu0
    %2181 = vdwg.mxu0
    %2182 = vrot.lane.b32.xlu0 %v1772, 120
    %v2183 = vpop.permute.xlu0 %2182
    %2184 = vrot.lane.b32.xlu0 %v1777, 120
    %v2185 = vpop.permute.xlu0 %2184
    %2186 = vrot.lane.b32.xlu0 %v1772, 104
    %v2187 = vpop.permute.xlu0 %2186
    %2188 = vrot.lane.b32.xlu0 %v1777, 104
    %v2189 = vpop.permute.xlu0 %2188
    %v2190 = vsel %vm489, %v2183, 0
    %v2192 = vsel %vm489, %v2185, 0
    %v2194 = vsel %vm489, %v2187, 0
    %v2196 = vsel %vm489, %v2189, 0
    %2198 = vmatprep.subr.mxu0 0.0
    %2199 = vmatpush1.xpose.msra.mxu0 %v2194
    %2200 = vmatprep.subr.mxu0 0.0
    %2201 = vmatpush1.xpose.msra.mxu0 %v2196
    %2202 = vmatprep.subr.mxu0 0.0
    %2203 = vmatpush1.xpose.msra.mxu0 0.0
    %2204 = vmatprep.subr.mxu0 0.0
    %2205 = vmatpush1.xpose.msra.mxu0 0.0
    %2206 = vmatprep.subr.mxu0 0.0
    %2207 = vmatpush1.xpose.msra.mxu0 0.0
    %2208 = vmatprep.subr.mxu0 0.0
    %2209 = vmatpush1.xpose.msra.mxu0 0.0
    %2210 = vmatprep.subr.mxu0 0.0
    %2211 = vmatpush1.xpose.msra.mxu0 0.0
    %2212 = vmatprep.subr.mxu0 0.0
    %2213 = vmatpush1.xpose.msra.mxu0 0.0
    %2214 = vmatprep.subr.mxu0 0.0
    %2215 = vmatpush1.xpose.msra.mxu0 0.0
    %2216 = vmatprep.subr.mxu0 0.0
    %2217 = vmatpush1.xpose.msra.mxu0 0.0
    %2218 = vmatprep.subr.mxu0 0.0
    %2219 = vmatpush1.xpose.msra.mxu0 0.0
    %2220 = vmatprep.subr.mxu0 0.0
    %2221 = vmatpush1.xpose.msra.mxu0 0.0
    %2222 = vmatprep.subr.mxu0 0.0
    %2223 = vmatpush1.xpose.msra.mxu0 0.0
    %2224 = vmatprep.subr.mxu0 0.0
    %2225 = vmatpush1.xpose.msra.mxu0 0.0
    %2226 = vmatprep.subr.mxu0 0.0
    %2227 = vmatpush1.xpose.msra.mxu0 0.0
    %2228 = vmatprep.subr.mxu0 0.0
    %2229 = vmatpush1.xpose.msra.mxu0 0.0
    %2230 = vmatprep.subr.mxu0 0.0
    %2231 = vmatpush1.xpose.msra.mxu0 0.0
    %2232 = vmatprep.subr.mxu0 0.0
    %2233 = vmatpush1.xpose.msra.mxu0 0.0
    %2234 = vmatprep.subr.mxu0 0.0
    %2235 = vmatpush1.xpose.msra.mxu0 0.0
    %2236 = vmatprep.subr.mxu0 0.0
    %2237 = vmatpush1.xpose.msra.mxu0 0.0
    %2238 = vmatprep.subr.mxu0 0.0
    %2239 = vmatpush1.xpose.msra.mxu0 0.0
    %2240 = vmatprep.subr.mxu0 0.0
    %2241 = vmatpush1.xpose.msra.mxu0 0.0
    %2242 = vmatprep.subr.mxu0 0.0
    %2243 = vmatpush1.xpose.msra.mxu0 0.0
    %2244 = vmatprep.subr.mxu0 0.0
    %2245 = vmatpush1.xpose.msra.mxu0 0.0
    %2246 = vmatprep.subr.mxu0 0.0
    %2247 = vmatpush1.xpose.msra.mxu0 0.0
    %2248 = vmatprep.subr.mxu0 0.0
    %2249 = vmatpush1.xpose.msra.mxu0 0.0
    %2250 = vmatprep.subr.mxu0 0.0
    %2251 = vmatpush1.xpose.msra.mxu0 0.0
    %2252 = vmatprep.subr.mxu0 0.0
    %2253 = vmatpush1.xpose.msra.mxu0 0.0
    %2254 = vmatprep.subr.mxu0 0.0
    %2255 = vmatpush1.xpose.msra.mxu0 0.0
    %2256 = vmatprep.subr.mxu0 0.0
    %2257 = vmatpush1.xpose.msra.mxu0 0.0
    %2258 = vmatprep.subr.mxu0 0.0
    %2259 = vmatpush1.xpose.msra.mxu0 0.0
    %2260 = vmatprep.subr.mxu0 0.0
    %2261 = vmatpush1.xpose.msra.mxu0 0.0
    %2262 = vmatprep.mubr.f32.mxu0 0.0
    %2263 = vmatmul.mubr.f32.gmra.mrb[0].mxu0 %v2190
    %v2264 = vpop.f32.mrb[0].mxu0
    %v2265 = vadd.f32 0.0, %v2264
    %v2266 = vpop.f32.mrb[0].mxu0
    %2267 = vmatprep.mubr.f32.mxu0 0.0
    %2268 = vmatmul.mubr.f32.gmra.mrb[0].mxu0 %v2192
    %v2269 = vpop.f32.mrb[0].mxu0
    %v2270 = vadd.f32 0.0, %v2269
    %v2271 = vpop.f32.mrb[0].mxu0
    %2272 = vdwg.mxu0
    %v2273 = vmul.f32 %v2265, 0.5
    %v2274 = vmul.f32 %v2270, 0.5
    %v2275 = vsel %vm230, %v2273, -inf
    %2276 = vmax.xlane.f32.xlu0 %v2275
    %v2277 = vpop.xlane.xlu0 %2276
    %v2278 = vsel %vm230, %v2274, -inf
    %2279 = vmax.xlane.f32.xlu0 %v2278
    %v2280 = vpop.xlane.xlu0 %2279
    %v2281 = vsub.f32 %v2273, %v2277
    %v2282 = vsub.f32 %v2274, %v2280
    %v2283 = vmul.f32 %v2281, 1.442695
    %v2284 = vpow.pop %v2283
    %v2285 = vmul.f32 %v2282, 1.442695
    %v2286 = vpow.pop %v2285
    %v2287 = vsel %vm230, %v2284, 0.0
    %2288 = vadd.xlane.f32.xlu0 %v2287
    %v2289 = vpop.xlane.xlu0 %2288
    %v2290 = vsel %vm230, %v2286, 0.0
    %2291 = vadd.xlane.f32.xlu0 %v2290
    %v2292 = vpop.xlane.xlu0 %2291
    %v2293 = vrcp.pop %v2289
    %v2294 = vmul.f32 %v2284, %v2293
    %v2295 = vrcp.pop %v2292
    %v2296 = vmul.f32 %v2286, %v2295
    %2297 = vrot.lane.b32.xlu0 %v1772, 88
    %v2298 = vpop.permute.xlu0 %2297
    %2299 = vrot.lane.b32.xlu0 %v1777, 88
    %v2300 = vpop.permute.xlu0 %2299
    %v2304 = vsel %vm230, %v2294, 0
    %v2307 = vsel %vm230, %v2296, 0
    %2309 = vmatprep.subr.mxu0 0.0
    %2310 = vmatpush1.msra.mxu0 %v2298
    %2311 = vmatprep.subr.mxu0 0.0
    %2312 = vmatpush1.msra.mxu0 %v2300
    %2313 = vmatprep.subr.mxu0 0.0
    %2314 = vmatpush1.msra.mxu0 0.0
    %2315 = vmatprep.subr.mxu0 0.0
    %2316 = vmatpush1.msra.mxu0 0.0
    %2317 = vmatprep.subr.mxu0 0.0
    %2318 = vmatpush1.msra.mxu0 0.0
    %2319 = vmatprep.subr.mxu0 0.0
    %2320 = vmatpush1.msra.mxu0 0.0
    %2321 = vmatprep.subr.mxu0 0.0
    %2322 = vmatpush1.msra.mxu0 0.0
    %2323 = vmatprep.subr.mxu0 0.0
    %2324 = vmatpush1.msra.mxu0 0.0
    %2325 = vmatprep.subr.mxu0 0.0
    %2326 = vmatpush1.msra.mxu0 0.0
    %2327 = vmatprep.subr.mxu0 0.0
    %2328 = vmatpush1.msra.mxu0 0.0
    %2329 = vmatprep.subr.mxu0 0.0
    %2330 = vmatpush1.msra.mxu0 0.0
    %2331 = vmatprep.subr.mxu0 0.0
    %2332 = vmatpush1.msra.mxu0 0.0
    %2333 = vmatprep.subr.mxu0 0.0
    %2334 = vmatpush1.msra.mxu0 0.0
    %2335 = vmatprep.subr.mxu0 0.0
    %2336 = vmatpush1.msra.mxu0 0.0
    %2337 = vmatprep.subr.mxu0 0.0
    %2338 = vmatpush1.msra.mxu0 0.0
    %2339 = vmatprep.subr.mxu0 0.0
    %2340 = vmatpush1.msra.mxu0 0.0
    %2341 = vmatprep.subr.mxu0 0.0
    %2342 = vmatpush1.msra.mxu0 0.0
    %2343 = vmatprep.subr.mxu0 0.0
    %2344 = vmatpush1.msra.mxu0 0.0
    %2345 = vmatprep.subr.mxu0 0.0
    %2346 = vmatpush1.msra.mxu0 0.0
    %2347 = vmatprep.subr.mxu0 0.0
    %2348 = vmatpush1.msra.mxu0 0.0
    %2349 = vmatprep.subr.mxu0 0.0
    %2350 = vmatpush1.msra.mxu0 0.0
    %2351 = vmatprep.subr.mxu0 0.0
    %2352 = vmatpush1.msra.mxu0 0.0
    %2353 = vmatprep.subr.mxu0 0.0
    %2354 = vmatpush1.msra.mxu0 0.0
    %2355 = vmatprep.subr.mxu0 0.0
    %2356 = vmatpush1.msra.mxu0 0.0
    %2357 = vmatprep.subr.mxu0 0.0
    %2358 = vmatpush1.msra.mxu0 0.0
    %2359 = vmatprep.subr.mxu0 0.0
    %2360 = vmatpush1.msra.mxu0 0.0
    %2361 = vmatprep.subr.mxu0 0.0
    %2362 = vmatpush1.msra.mxu0 0.0
    %2363 = vmatprep.subr.mxu0 0.0
    %2364 = vmatpush1.msra.mxu0 0.0
    %2365 = vmatprep.subr.mxu0 0.0
    %2366 = vmatpush1.msra.mxu0 0.0
    %2367 = vmatprep.subr.mxu0 0.0
    %2368 = vmatpush1.msra.mxu0 0.0
    %2369 = vmatprep.subr.mxu0 0.0
    %2370 = vmatpush1.msra.mxu0 0.0
    %2371 = vmatprep.subr.mxu0 0.0
    %2372 = vmatpush1.msra.mxu0 0.0
    %2373 = vmatprep.mubr.f32.mxu0 0.0
    %2374 = vmatmul.mubr.f32.gmra.mrb[0].mxu0 %v2304
    %v2375 = vpop.f32.mrb[0].mxu0
    %v2376 = vadd.f32 0.0, %v2375
    %v2377 = vpop.f32.mrb[0].mxu0
    %2378 = vmatprep.mubr.f32.mxu0 0.0
    %2379 = vmatmul.mubr.f32.gmra.mrb[0].mxu0 %v2307
    %v2380 = vpop.f32.mrb[0].mxu0
    %v2381 = vadd.f32 0.0, %v2380
    %v2382 = vpop.f32.mrb[0].mxu0
    %2383 = vdwg.mxu0
    %2384 = vrot.lane.b32.xlu0 %v1772, 116
    %v2385 = vpop.permute.xlu0 %2384
    %2386 = vrot.lane.b32.xlu0 %v1777, 116
    %v2387 = vpop.permute.xlu0 %2386
    %2388 = vrot.lane.b32.xlu0 %v1772, 100
    %v2389 = vpop.permute.xlu0 %2388
    %2390 = vrot.lane.b32.xlu0 %v1777, 100
    %v2391 = vpop.permute.xlu0 %2390
    %v2392 = vsel %vm489, %v2385, 0
    %v2394 = vsel %vm489, %v2387, 0
    %v2396 = vsel %vm489, %v2389, 0
    %v2398 = vsel %vm489, %v2391, 0
    %2400 = vmatprep.subr.mxu0 0.0
    %2401 = vmatpush1.xpose.msra.mxu0 %v2396
    %2402 = vmatprep.subr.mxu0 0.0
    %2403 = vmatpush1.xpose.msra.mxu0 %v2398
    %2404 = vmatprep.subr.mxu0 0.0
    %2405 = vmatpush1.xpose.msra.mxu0 0.0
    %2406 = vmatprep.subr.mxu0 0.0
    %2407 = vmatpush1.xpose.msra.mxu0 0.0
    %2408 = vmatprep.subr.mxu0 0.0
    %2409 = vmatpush1.xpose.msra.mxu0 0.0
    %2410 = vmatprep.subr.mxu0 0.0
    %2411 = vmatpush1.xpose.msra.mxu0 0.0
    %2412 = vmatprep.subr.mxu0 0.0
    %2413 = vmatpush1.xpose.msra.mxu0 0.0
    %2414 = vmatprep.subr.mxu0 0.0
    %2415 = vmatpush1.xpose.msra.mxu0 0.0
    %2416 = vmatprep.subr.mxu0 0.0
    %2417 = vmatpush1.xpose.msra.mxu0 0.0
    %2418 = vmatprep.subr.mxu0 0.0
    %2419 = vmatpush1.xpose.msra.mxu0 0.0
    %2420 = vmatprep.subr.mxu0 0.0
    %2421 = vmatpush1.xpose.msra.mxu0 0.0
    %2422 = vmatprep.subr.mxu0 0.0
    %2423 = vmatpush1.xpose.msra.mxu0 0.0
    %2424 = vmatprep.subr.mxu0 0.0
    %2425 = vmatpush1.xpose.msra.mxu0 0.0
    %2426 = vmatprep.subr.mxu0 0.0
    %2427 = vmatpush1.xpose.msra.mxu0 0.0
    %2428 = vmatprep.subr.mxu0 0.0
    %2429 = vmatpush1.xpose.msra.mxu0 0.0
    %2430 = vmatprep.subr.mxu0 0.0
    %2431 = vmatpush1.xpose.msra.mxu0 0.0
    %2432 = vmatprep.subr.mxu0 0.0
    %2433 = vmatpush1.xpose.msra.mxu0 0.0
    %2434 = vmatprep.subr.mxu0 0.0
    %2435 = vmatpush1.xpose.msra.mxu0 0.0
    %2436 = vmatprep.subr.mxu0 0.0
    %2437 = vmatpush1.xpose.msra.mxu0 0.0
    %2438 = vmatprep.subr.mxu0 0.0
    %2439 = vmatpush1.xpose.msra.mxu0 0.0
    %2440 = vmatprep.subr.mxu0 0.0
    %2441 = vmatpush1.xpose.msra.mxu0 0.0
    %2442 = vmatprep.subr.mxu0 0.0
    %2443 = vmatpush1.xpose.msra.mxu0 0.0
    %2444 = vmatprep.subr.mxu0 0.0
    %2445 = vmatpush1.xpose.msra.mxu0 0.0
    %2446 = vmatprep.subr.mxu0 0.0
    %2447 = vmatpush1.xpose.msra.mxu0 0.0
    %2448 = vmatprep.subr.mxu0 0.0
    %2449 = vmatpush1.xpose.msra.mxu0 0.0
    %2450 = vmatprep.subr.mxu0 0.0
    %2451 = vmatpush1.xpose.msra.mxu0 0.0
    %2452 = vmatprep.subr.mxu0 0.0
    %2453 = vmatpush1.xpose.msra.mxu0 0.0
    %2454 = vmatprep.subr.mxu0 0.0
    %2455 = vmatpush1.xpose.msra.mxu0 0.0
    %2456 = vmatprep.subr.mxu0 0.0
    %2457 = vmatpush1.xpose.msra.mxu0 0.0
    %2458 = vmatprep.subr.mxu0 0.0
    %2459 = vmatpush1.xpose.msra.mxu0 0.0
    %2460 = vmatprep.subr.mxu0 0.0
    %2461 = vmatpush1.xpose.msra.mxu0 0.0
    %2462 = vmatprep.subr.mxu0 0.0
    %2463 = vmatpush1.xpose.msra.mxu0 0.0
    %2464 = vmatprep.mubr.f32.mxu0 0.0
    %2465 = vmatmul.mubr.f32.gmra.mrb[0].mxu0 %v2392
    %v2466 = vpop.f32.mrb[0].mxu0
    %v2467 = vadd.f32 0.0, %v2466
    %v2468 = vpop.f32.mrb[0].mxu0
    %2469 = vmatprep.mubr.f32.mxu0 0.0
    %2470 = vmatmul.mubr.f32.gmra.mrb[0].mxu0 %v2394
    %v2471 = vpop.f32.mrb[0].mxu0
    %v2472 = vadd.f32 0.0, %v2471
    %v2473 = vpop.f32.mrb[0].mxu0
    %2474 = vdwg.mxu0
    %v2475 = vmul.f32 %v2467, 0.5
    %v2476 = vmul.f32 %v2472, 0.5
    %v2477 = vsel %vm230, %v2475, -inf
    %2478 = vmax.xlane.f32.xlu0 %v2477
    %v2479 = vpop.xlane.xlu0 %2478
    %v2480 = vsel %vm230, %v2476, -inf
    %2481 = vmax.xlane.f32.xlu0 %v2480
    %v2482 = vpop.xlane.xlu0 %2481
    %v2483 = vsub.f32 %v2475, %v2479
    %v2484 = vsub.f32 %v2476, %v2482
    %v2485 = vmul.f32 %v2483, 1.442695
    %v2486 = vpow.pop %v2485
    %v2487 = vmul.f32 %v2484, 1.442695
    %v2488 = vpow.pop %v2487
    %v2489 = vsel %vm230, %v2486, 0.0
    %2490 = vadd.xlane.f32.xlu0 %v2489
    %v2491 = vpop.xlane.xlu0 %2490
    %v2492 = vsel %vm230, %v2488, 0.0
    %2493 = vadd.xlane.f32.xlu0 %v2492
    %v2494 = vpop.xlane.xlu0 %2493
    %v2495 = vrcp.pop %v2491
    %v2496 = vmul.f32 %v2486, %v2495
    %v2497 = vrcp.pop %v2494
    %v2498 = vmul.f32 %v2488, %v2497
    %2499 = vrot.lane.b32.xlu0 %v1772, 84
    %v2500 = vpop.permute.xlu0 %2499
    %2501 = vrot.lane.b32.xlu0 %v1777, 84
    %v2502 = vpop.permute.xlu0 %2501
    %v2506 = vsel %vm230, %v2496, 0
    %v2509 = vsel %vm230, %v2498, 0
    %2511 = vmatprep.subr.mxu0 0.0
    %2512 = vmatpush1.msra.mxu0 %v2500
    %2513 = vmatprep.subr.mxu0 0.0
    %2514 = vmatpush1.msra.mxu0 %v2502
    %2515 = vmatprep.subr.mxu0 0.0
    %2516 = vmatpush1.msra.mxu0 0.0
    %2517 = vmatprep.subr.mxu0 0.0
    %2518 = vmatpush1.msra.mxu0 0.0
    %2519 = vmatprep.subr.mxu0 0.0
    %2520 = vmatpush1.msra.mxu0 0.0
    %2521 = vmatprep.subr.mxu0 0.0
    %2522 = vmatpush1.msra.mxu0 0.0
    %2523 = vmatprep.subr.mxu0 0.0
    %2524 = vmatpush1.msra.mxu0 0.0
    %2525 = vmatprep.subr.mxu0 0.0
    %2526 = vmatpush1.msra.mxu0 0.0
    %2527 = vmatprep.subr.mxu0 0.0
    %2528 = vmatpush1.msra.mxu0 0.0
    %2529 = vmatprep.subr.mxu0 0.0
    %2530 = vmatpush1.msra.mxu0 0.0
    %2531 = vmatprep.subr.mxu0 0.0
    %2532 = vmatpush1.msra.mxu0 0.0
    %2533 = vmatprep.subr.mxu0 0.0
    %2534 = vmatpush1.msra.mxu0 0.0
    %2535 = vmatprep.subr.mxu0 0.0
    %2536 = vmatpush1.msra.mxu0 0.0
    %2537 = vmatprep.subr.mxu0 0.0
    %2538 = vmatpush1.msra.mxu0 0.0
    %2539 = vmatprep.subr.mxu0 0.0
    %2540 = vmatpush1.msra.mxu0 0.0
    %2541 = vmatprep.subr.mxu0 0.0
    %2542 = vmatpush1.msra.mxu0 0.0
    %2543 = vmatprep.subr.mxu0 0.0
    %2544 = vmatpush1.msra.mxu0 0.0
    %2545 = vmatprep.subr.mxu0 0.0
    %2546 = vmatpush1.msra.mxu0 0.0
    %2547 = vmatprep.subr.mxu0 0.0
    %2548 = vmatpush1.msra.mxu0 0.0
    %2549 = vmatprep.subr.mxu0 0.0
    %2550 = vmatpush1.msra.mxu0 0.0
    %2551 = vmatprep.subr.mxu0 0.0
    %2552 = vmatpush1.msra.mxu0 0.0
    %2553 = vmatprep.subr.mxu0 0.0
    %2554 = vmatpush1.msra.mxu0 0.0
    %2555 = vmatprep.subr.mxu0 0.0
    %2556 = vmatpush1.msra.mxu0 0.0
    %2557 = vmatprep.subr.mxu0 0.0
    %2558 = vmatpush1.msra.mxu0 0.0
    %2559 = vmatprep.subr.mxu0 0.0
    %2560 = vmatpush1.msra.mxu0 0.0
    %2561 = vmatprep.subr.mxu0 0.0
    %2562 = vmatpush1.msra.mxu0 0.0
    %2563 = vmatprep.subr.mxu0 0.0
    %2564 = vmatpush1.msra.mxu0 0.0
    %2565 = vmatprep.subr.mxu0 0.0
    %2566 = vmatpush1.msra.mxu0 0.0
    %2567 = vmatprep.subr.mxu0 0.0
    %2568 = vmatpush1.msra.mxu0 0.0
    %2569 = vmatprep.subr.mxu0 0.0
    %2570 = vmatpush1.msra.mxu0 0.0
    %2571 = vmatprep.subr.mxu0 0.0
    %2572 = vmatpush1.msra.mxu0 0.0
    %2573 = vmatprep.subr.mxu0 0.0
    %2574 = vmatpush1.msra.mxu0 0.0
    %2575 = vmatprep.mubr.f32.mxu0 0.0
    %2576 = vmatmul.mubr.f32.gmra.mrb[0].mxu0 %v2506
    %v2577 = vpop.f32.mrb[0].mxu0
    %v2578 = vadd.f32 0.0, %v2577
    %v2579 = vpop.f32.mrb[0].mxu0
    %2580 = vmatprep.mubr.f32.mxu0 0.0
    %2581 = vmatmul.mubr.f32.gmra.mrb[0].mxu0 %v2509
    %v2582 = vpop.f32.mrb[0].mxu0
    %v2583 = vadd.f32 0.0, %v2582
    %v2584 = vpop.f32.mrb[0].mxu0
    %2585 = vdwg.mxu0
    %2588 = vrot.lane.b32.xlu0 %v2174, 4
    %v2589 = vpop.permute.xlu0 %2588
    %2590 = vrot.lane.b32.xlu0 %v2179, 4
    %v2591 = vpop.permute.xlu0 %2590
    %2596 = vrot.lane.b32.xlu0 %v2376, 8
    %v2597 = vpop.permute.xlu0 %2596
    %2598 = vrot.lane.b32.xlu0 %v2381, 8
    %v2599 = vpop.permute.xlu0 %2598
    %2604 = vrot.lane.b32.xlu0 %v2578, 12
    %v2605 = vpop.permute.xlu0 %2604
    %2606 = vrot.lane.b32.xlu0 %v2583, 12
    %v2607 = vpop.permute.xlu0 %2606
    %v2610 = vsel %vm489, %v1972, %v2589
    %v2611 = vsel %vm489, %v1977, %v2591
    %v2612 = vsel %vm146, %v2610, %v2597
    %v2613 = vsel %vm146, %v2611, %v2599
    %v2614 = vsel %vm1318, %v2612, %v2605
    %v2615 = vsel %vm1318, %v2613, %v2607
    %s2616 = scalar_lea.vmem %s11, 16
    %v2617 = vld [vmem:[%s2616] sm:$0xff]
    %v2618 = vld [vmem:[%s2616 + $0x8] sm:$0xff]
    %s2619 = scalar_lea.vmem %s12, 1
    %v2620 = vld [vmem:[%s2619] sm:$0x1]
    %v2622 = vlaneseq
    %v2623 = vshrl.u32 %v2622, 7
    %v2624 = vsub.s32 0, %v2623
    %v2625 = vrot.slane %v2620, %v2624
    %v2628 = vsel %vm230, %v2614, 0
    %v2631 = vsel %vm230, %v2615, 0
    %2633 = vmatprep.subr.mxu0 0.0
    %2634 = vmatpush1.msra.mxu0 %v2617
    %2635 = vmatprep.subr.mxu0 0.0
    %2636 = vmatpush1.msra.mxu0 %v2618
    %2637 = vmatprep.subr.mxu0 0.0
    %2638 = vmatpush1.msra.mxu0 0.0
    %2639 = vmatprep.subr.mxu0 0.0
    %2640 = vmatpush1.msra.mxu0 0.0
    %2641 = vmatprep.subr.mxu0 0.0
    %2642 = vmatpush1.msra.mxu0 0.0
    %2643 = vmatprep.subr.mxu0 0.0
    %2644 = vmatpush1.msra.mxu0 0.0
    %2645 = vmatprep.subr.mxu0 0.0
    %2646 = vmatpush1.msra.mxu0 0.0
    %2647 = vmatprep.subr.mxu0 0.0
    %2648 = vmatpush1.msra.mxu0 0.0
    %2649 = vmatprep.subr.mxu0 0.0
    %2650 = vmatpush1.msra.mxu0 0.0
    %2651 = vmatprep.subr.mxu0 0.0
    %2652 = vmatpush1.msra.mxu0 0.0
    %2653 = vmatprep.subr.mxu0 0.0
    %2654 = vmatpush1.msra.mxu0 0.0
    %2655 = vmatprep.subr.mxu0 0.0
    %2656 = vmatpush1.msra.mxu0 0.0
    %2657 = vmatprep.subr.mxu0 0.0
    %2658 = vmatpush1.msra.mxu0 0.0
    %2659 = vmatprep.subr.mxu0 0.0
    %2660 = vmatpush1.msra.mxu0 0.0
    %2661 = vmatprep.subr.mxu0 0.0
    %2662 = vmatpush1.msra.mxu0 0.0
    %2663 = vmatprep.subr.mxu0 0.0
    %2664 = vmatpush1.msra.mxu0 0.0
    %2665 = vmatprep.subr.mxu0 0.0
    %2666 = vmatpush1.msra.mxu0 0.0
    %2667 = vmatprep.subr.mxu0 0.0
    %2668 = vmatpush1.msra.mxu0 0.0
    %2669 = vmatprep.subr.mxu0 0.0
    %2670 = vmatpush1.msra.mxu0 0.0
    %2671 = vmatprep.subr.mxu0 0.0
    %2672 = vmatpush1.msra.mxu0 0.0
    %2673 = vmatprep.subr.mxu0 0.0
    %2674 = vmatpush1.msra.mxu0 0.0
    %2675 = vmatprep.subr.mxu0 0.0
    %2676 = vmatpush1.msra.mxu0 0.0
    %2677 = vmatprep.subr.mxu0 0.0
    %2678 = vmatpush1.msra.mxu0 0.0
    %2679 = vmatprep.subr.mxu0 0.0
    %2680 = vmatpush1.msra.mxu0 0.0
    %2681 = vmatprep.subr.mxu0 0.0
    %2682 = vmatpush1.msra.mxu0 0.0
    %2683 = vmatprep.subr.mxu0 0.0
    %2684 = vmatpush1.msra.mxu0 0.0
    %2685 = vmatprep.subr.mxu0 0.0
    %2686 = vmatpush1.msra.mxu0 0.0
    %2687 = vmatprep.subr.mxu0 0.0
    %2688 = vmatpush1.msra.mxu0 0.0
    %2689 = vmatprep.subr.mxu0 0.0
    %2690 = vmatpush1.msra.mxu0 0.0
    %2691 = vmatprep.subr.mxu0 0.0
    %2692 = vmatpush1.msra.mxu0 0.0
    %2693 = vmatprep.subr.mxu0 0.0
    %2694 = vmatpush1.msra.mxu0 0.0
    %2695 = vmatprep.subr.mxu0 0.0
    %2696 = vmatpush1.msra.mxu0 0.0
    %2697 = vmatprep.mubr.f32.mxu0 0.0
    %2698 = vmatmul.mubr.f32.gmra.mrb[0].mxu0 %v2628
    %v2699 = vpop.f32.mrb[0].mxu0
    %v2700 = vadd.f32 %v2625, %v2699
    %v2701 = vpop.f32.mrb[0].mxu0
    %2702 = vmatprep.mubr.f32.mxu0 0.0
    %2703 = vmatmul.mubr.f32.gmra.mrb[0].mxu0 %v2631
    %v2704 = vpop.f32.mrb[0].mxu0
    %v2705 = vadd.f32 %v2625, %v2704
    %v2706 = vpop.f32.mrb[0].mxu0
    %2707 = vdwg.mxu0
    %v2708 = vadd.f32 %v1686, %v2700
    %v2709 = vadd.f32 %v1687, %v2705
    %s2710 = scalar_lea.vmem %s13, 1
    %v2711 = vld [vmem:[%s2710] sm:$0x1]
    %s2712 = scalar_lea.vmem %s14, 1
    %v2713 = vld [vmem:[%s2712] sm:$0x1]
    %v2714 = vsel %vm230, %v2708, 0.0
    %2715 = vadd.xlane.f32.xlu0 %v2714
    %v2716 = vpop.xlane.xlu0 %2715
    %v2717 = vsel %vm230, %v2709, 0.0
    %2718 = vadd.xlane.f32.xlu0 %v2717
    %v2719 = vpop.xlane.xlu0 %2718
    %v2720 = vmul.f32 %v2716, %v237
    %v2721 = vmul.f32 %v2719, %v237
    %v2722 = vsub.f32 %v2708, %v2720
    %v2723 = vsub.f32 %v2709, %v2721
    %v2724 = vmul.f32 %v2722, %v2722
    %v2725 = vmul.f32 %v2723, %v2723
    %v2726 = vsel %vm230, %v2724, 0.0
    %2727 = vadd.xlane.f32.xlu0 %v2726
    %v2728 = vpop.xlane.xlu0 %2727
    %v2729 = vsel %vm230, %v2725, 0.0
    %2730 = vadd.xlane.f32.xlu0 %v2729
    %v2731 = vpop.xlane.xlu0 %2730
    %v2732 = vmul.f32 %v2728, %v237
    %v2733 = vmul.f32 %v2731, %v237
    %v2734 = vadd.f32 %v2732, 1e-05
    %v2735 = vadd.f32 %v2733, 1e-05
    %v2736 = vrsqrt.pop %v2734
    %v2737 = vrsqrt.pop %v2735
    %v2738 = vmul.f32 %v2722, %v2736
    %v2739 = vmul.f32 %v2723, %v2737
    %v2741 = vlaneseq
    %v2742 = vshrl.u32 %v2741, 7
    %v2743 = vsub.s32 0, %v2742
    %v2744 = vrot.slane %v2711, %v2743
    %v2746 = vmul.f32 %v2738, %v2744
    %v2747 = vmul.f32 %v2739, %v2744
    %v2749 = vlaneseq
    %v2750 = vshrl.u32 %v2749, 7
    %v2751 = vsub.s32 0, %v2750
    %v2752 = vrot.slane %v2713, %v2751
    %v2754 = vadd.f32 %v2746, %v2752
    %v2755 = vadd.f32 %v2747, %v2752
    %s2756 = scalar_lea.vmem %s15, 16
    %v2757 = vld [vmem:[%s2756] sm:$0xff]
    %v2758 = vld [vmem:[%s2756 + $0x8] sm:$0xff]
    %s2759 = scalar_lea.vmem %s16, 1
    %v2760 = vld [vmem:[%s2759] sm:$0x1]
    %v2762 = vlaneseq
    %v2763 = vshrl.u32 %v2762, 7
    %v2764 = vsub.s32 0, %v2763
    %v2765 = vrot.slane %v2760, %v2764
    %v2768 = vsel %vm230, %v2754, 0
    %v2771 = vsel %vm230, %v2755, 0
    %2773 = vmatprep.subr.mxu0 0.0
    %2774 = vmatpush1.msra.mxu0 %v2757
    %2775 = vmatprep.subr.mxu0 0.0
    %2776 = vmatpush1.msra.mxu0 %v2758
    %2777 = vmatprep.subr.mxu0 0.0
    %2778 = vmatpush1.msra.mxu0 0.0
    %2779 = vmatprep.subr.mxu0 0.0
    %2780 = vmatpush1.msra.mxu0 0.0
    %2781 = vmatprep.subr.mxu0 0.0
    %2782 = vmatpush1.msra.mxu0 0.0
    %2783 = vmatprep.subr.mxu0 0.0
    %2784 = vmatpush1.msra.mxu0 0.0
    %2785 = vmatprep.subr.mxu0 0.0
    %2786 = vmatpush1.msra.mxu0 0.0
    %2787 = vmatprep.subr.mxu0 0.0
    %2788 = vmatpush1.msra.mxu0 0.0
    %2789 = vmatprep.subr.mxu0 0.0
    %2790 = vmatpush1.msra.mxu0 0.0
    %2791 = vmatprep.subr.mxu0 0.0
    %2792 = vmatpush1.msra.mxu0 0.0
    %2793 = vmatprep.subr.mxu0 0.0
    %2794 = vmatpush1.msra.mxu0 0.0
    %2795 = vmatprep.subr.mxu0 0.0
    %2796 = vmatpush1.msra.mxu0 0.0
    %2797 = vmatprep.subr.mxu0 0.0
    %2798 = vmatpush1.msra.mxu0 0.0
    %2799 = vmatprep.subr.mxu0 0.0
    %2800 = vmatpush1.msra.mxu0 0.0
    %2801 = vmatprep.subr.mxu0 0.0
    %2802 = vmatpush1.msra.mxu0 0.0
    %2803 = vmatprep.subr.mxu0 0.0
    %2804 = vmatpush1.msra.mxu0 0.0
    %2805 = vmatprep.subr.mxu0 0.0
    %2806 = vmatpush1.msra.mxu0 0.0
    %2807 = vmatprep.subr.mxu0 0.0
    %2808 = vmatpush1.msra.mxu0 0.0
    %2809 = vmatprep.subr.mxu0 0.0
    %2810 = vmatpush1.msra.mxu0 0.0
    %2811 = vmatprep.subr.mxu0 0.0
    %2812 = vmatpush1.msra.mxu0 0.0
    %2813 = vmatprep.subr.mxu0 0.0
    %2814 = vmatpush1.msra.mxu0 0.0
    %2815 = vmatprep.subr.mxu0 0.0
    %2816 = vmatpush1.msra.mxu0 0.0
    %2817 = vmatprep.subr.mxu0 0.0
    %2818 = vmatpush1.msra.mxu0 0.0
    %2819 = vmatprep.subr.mxu0 0.0
    %2820 = vmatpush1.msra.mxu0 0.0
    %2821 = vmatprep.subr.mxu0 0.0
    %2822 = vmatpush1.msra.mxu0 0.0
    %2823 = vmatprep.subr.mxu0 0.0
    %2824 = vmatpush1.msra.mxu0 0.0
    %2825 = vmatprep.subr.mxu0 0.0
    %2826 = vmatpush1.msra.mxu0 0.0
    %2827 = vmatprep.subr.mxu0 0.0
    %2828 = vmatpush1.msra.mxu0 0.0
    %2829 = vmatprep.subr.mxu0 0.0
    %2830 = vmatpush1.msra.mxu0 0.0
    %2831 = vmatprep.subr.mxu0 0.0
    %2832 = vmatpush1.msra.mxu0 0.0
    %2833 = vmatprep.subr.mxu0 0.0
    %2834 = vmatpush1.msra.mxu0 0.0
    %2835 = vmatprep.subr.mxu0 0.0
    %2836 = vmatpush1.msra.mxu0 0.0
    %2837 = vmatprep.mubr.f32.mxu0 0.0
    %2838 = vmatmul.mubr.f32.gmra.mrb[0].mxu0 %v2768
    %v2839 = vpop.f32.mrb[0].mxu0
    %v2840 = vadd.f32 %v2765, %v2839
    %v2841 = vpop.f32.mrb[0].mxu0
    %2842 = vmatprep.mubr.f32.mxu0 0.0
    %2843 = vmatmul.mubr.f32.gmra.mrb[0].mxu0 %v2771
    %v2844 = vpop.f32.mrb[0].mxu0
    %v2845 = vadd.f32 %v2765, %v2844
    %v2846 = vpop.f32.mrb[0].mxu0
    %2847 = vdwg.mxu0
    %v2848 = vmax.f32 %v2840, 0.0
    %v2849 = vmax.f32 %v2845, 0.0
    %s2850 = scalar_lea.vmem %s17, 32
    %v2851 = vld [vmem:[%s2850] sm:$0xff]
    %v2852 = vld [vmem:[%s2850 + $0x8] sm:$0xff]
    %v2853 = vld [vmem:[%s2850 + $0x10] sm:$0xff]
    %v2854 = vld [vmem:[%s2850 + $0x18] sm:$0xff]
    %s2855 = scalar_lea.vmem %s18, 1
    %v2856 = vld [vmem:[%s2855] sm:$0x1]
    %v2858 = vlaneseq
    %v2859 = vshrl.u32 %v2858, 7
    %v2860 = vsub.s32 0, %v2859
    %v2861 = vrot.slane %v2856, %v2860
    %v2864 = vsel %vm1560, %v2848, 0
    %v2867 = vsel %vm1560, %v2849, 0
    %2869 = vmatprep.subr.mxu0 0.0
    %2870 = vmatpush1.msra.mxu0 %v2851
    %2871 = vmatprep.subr.mxu0 0.0
    %2872 = vmatpush1.msra.mxu0 %v2852
    %2873 = vmatprep.subr.mxu0 0.0
    %2874 = vmatpush1.msra.mxu0 %v2853
    %2875 = vmatprep.subr.mxu0 0.0
    %2876 = vmatpush1.msra.mxu0 %v2854
    %2877 = vmatprep.subr.mxu0 0.0
    %2878 = vmatpush1.msra.mxu0 0.0
    %2879 = vmatprep.subr.mxu0 0.0
    %2880 = vmatpush1.msra.mxu0 0.0
    %2881 = vmatprep.subr.mxu0 0.0
    %2882 = vmatpush1.msra.mxu0 0.0
    %2883 = vmatprep.subr.mxu0 0.0
    %2884 = vmatpush1.msra.mxu0 0.0
    %2885 = vmatprep.subr.mxu0 0.0
    %2886 = vmatpush1.msra.mxu0 0.0
    %2887 = vmatprep.subr.mxu0 0.0
    %2888 = vmatpush1.msra.mxu0 0.0
    %2889 = vmatprep.subr.mxu0 0.0
    %2890 = vmatpush1.msra.mxu0 0.0
    %2891 = vmatprep.subr.mxu0 0.0
    %2892 = vmatpush1.msra.mxu0 0.0
    %2893 = vmatprep.subr.mxu0 0.0
    %2894 = vmatpush1.msra.mxu0 0.0
    %2895 = vmatprep.subr.mxu0 0.0
    %2896 = vmatpush1.msra.mxu0 0.0
    %2897 = vmatprep.subr.mxu0 0.0
    %2898 = vmatpush1.msra.mxu0 0.0
    %2899 = vmatprep.subr.mxu0 0.0
    %2900 = vmatpush1.msra.mxu0 0.0
    %2901 = vmatprep.subr.mxu0 0.0
    %2902 = vmatpush1.msra.mxu0 0.0
    %2903 = vmatprep.subr.mxu0 0.0
    %2904 = vmatpush1.msra.mxu0 0.0
    %2905 = vmatprep.subr.mxu0 0.0
    %2906 = vmatpush1.msra.mxu0 0.0
    %2907 = vmatprep.subr.mxu0 0.0
    %2908 = vmatpush1.msra.mxu0 0.0
    %2909 = vmatprep.subr.mxu0 0.0
    %2910 = vmatpush1.msra.mxu0 0.0
    %2911 = vmatprep.subr.mxu0 0.0
    %2912 = vmatpush1.msra.mxu0 0.0
    %2913 = vmatprep.subr.mxu0 0.0
    %2914 = vmatpush1.msra.mxu0 0.0
    %2915 = vmatprep.subr.mxu0 0.0
    %2916 = vmatpush1.msra.mxu0 0.0
    %2917 = vmatprep.subr.mxu0 0.0
    %2918 = vmatpush1.msra.mxu0 0.0
    %2919 = vmatprep.subr.mxu0 0.0
    %2920 = vmatpush1.msra.mxu0 0.0
    %2921 = vmatprep.subr.mxu0 0.0
    %2922 = vmatpush1.msra.mxu0 0.0
    %2923 = vmatprep.subr.mxu0 0.0
    %2924 = vmatpush1.msra.mxu0 0.0
    %2925 = vmatprep.subr.mxu0 0.0
    %2926 = vmatpush1.msra.mxu0 0.0
    %2927 = vmatprep.subr.mxu0 0.0
    %2928 = vmatpush1.msra.mxu0 0.0
    %2929 = vmatprep.subr.mxu0 0.0
    %2930 = vmatpush1.msra.mxu0 0.0
    %2931 = vmatprep.subr.mxu0 0.0
    %2932 = vmatpush1.msra.mxu0 0.0
    %2933 = vmatprep.mubr.f32.mxu0 0.0
    %2934 = vmatmul.mubr.f32.gmra.mrb[0].mxu0 %v2864
    %v2935 = vpop.f32.mrb[0].mxu0
    %v2936 = vadd.f32 %v2861, %v2935
    %v2937 = vpop.f32.mrb[0].mxu0
    %2938 = vmatprep.mubr.f32.mxu0 0.0
    %2939 = vmatmul.mubr.f32.gmra.mrb[0].mxu0 %v2867
    %v2940 = vpop.f32.mrb[0].mxu0
    %v2941 = vadd.f32 %v2861, %v2940
    %v2942 = vpop.f32.mrb[0].mxu0
    %2943 = vdwg.mxu0
    %v2944 = vadd.f32 %v2754, %v2936
    %v2945 = vadd.f32 %v2755, %v2941
    %s2946 = scalar_lea.vmem %s19, 1
    %v2947 = vld [vmem:[%s2946] sm:$0x1]
    %s2948 = scalar_lea.vmem %s20, 1
    %v2949 = vld [vmem:[%s2948] sm:$0x1]
    %v2950 = vsel %vm230, %v2944, 0.0
    %2951 = vadd.xlane.f32.xlu0 %v2950
    %v2952 = vpop.xlane.xlu0 %2951
    %v2953 = vsel %vm230, %v2945, 0.0
    %2954 = vadd.xlane.f32.xlu0 %v2953
    %v2955 = vpop.xlane.xlu0 %2954
    %v2956 = vmul.f32 %v2952, %v237
    %v2957 = vmul.f32 %v2955, %v237
    %v2958 = vsub.f32 %v2944, %v2956
    %v2959 = vsub.f32 %v2945, %v2957
    %v2960 = vmul.f32 %v2958, %v2958
    %v2961 = vmul.f32 %v2959, %v2959
    %v2962 = vsel %vm230, %v2960, 0.0
    %2963 = vadd.xlane.f32.xlu0 %v2962
    %v2964 = vpop.xlane.xlu0 %2963
    %v2965 = vsel %vm230, %v2961, 0.0
    %2966 = vadd.xlane.f32.xlu0 %v2965
    %v2967 = vpop.xlane.xlu0 %2966
    %v2968 = vmul.f32 %v2964, %v237
    %v2969 = vmul.f32 %v2967, %v237
    %v2970 = vadd.f32 %v2968, 1e-05
    %v2971 = vadd.f32 %v2969, 1e-05
    %v2972 = vrsqrt.pop %v2970
    %v2973 = vrsqrt.pop %v2971
    %v2974 = vmul.f32 %v2958, %v2972
    %v2975 = vmul.f32 %v2959, %v2973
    %v2977 = vlaneseq
    %v2978 = vshrl.u32 %v2977, 7
    %v2979 = vsub.s32 0, %v2978
    %v2980 = vrot.slane %v2947, %v2979
    %v2982 = vmul.f32 %v2974, %v2980
    %v2983 = vmul.f32 %v2975, %v2980
    %v2985 = vlaneseq
    %v2986 = vshrl.u32 %v2985, 7
    %v2987 = vsub.s32 0, %v2986
    %v2988 = vrot.slane %v2949, %v2987
    %v2990 = vadd.f32 %v2982, %v2988
    %v2991 = vadd.f32 %v2983, %v2988
    %v2992 = vld [vmem:[%s21] sm:$0xff]
    %v2993 = vld [vmem:[%s21 + $0x8] sm:$0xff]
    %v2994 = vld [vmem:[%s22] sm:$0x1]
    %v2996 = vlaneseq
    %v2997 = vshrl.u32 %v2996, 7
    %v2998 = vsub.s32 0, %v2997
    %v2999 = vrot.slane %v2994, %v2998
    %v3002 = vsel %vm230, %v2990, 0
    %v3005 = vsel %vm230, %v2991, 0
    %3007 = vmatprep.subr.mxu0 0.0
    %3008 = vmatpush1.msra.mxu0 %v2992
    %3009 = vmatprep.subr.mxu0 0.0
    %3010 = vmatpush1.msra.mxu0 %v2993
    %3011 = vmatprep.subr.mxu0 0.0
    %3012 = vmatpush1.msra.mxu0 0.0
    %3013 = vmatprep.subr.mxu0 0.0
    %3014 = vmatpush1.msra.mxu0 0.0
    %3015 = vmatprep.subr.mxu0 0.0
    %3016 = vmatpush1.msra.mxu0 0.0
    %3017 = vmatprep.subr.mxu0 0.0
    %3018 = vmatpush1.msra.mxu0 0.0
    %3019 = vmatprep.subr.mxu0 0.0
    %3020 = vmatpush1.msra.mxu0 0.0
    %3021 = vmatprep.subr.mxu0 0.0
    %3022 = vmatpush1.msra.mxu0 0.0
    %3023 = vmatprep.subr.mxu0 0.0
    %3024 = vmatpush1.msra.mxu0 0.0
    %3025 = vmatprep.subr.mxu0 0.0
    %3026 = vmatpush1.msra.mxu0 0.0
    %3027 = vmatprep.subr.mxu0 0.0
    %3028 = vmatpush1.msra.mxu0 0.0
    %3029 = vmatprep.subr.mxu0 0.0
    %3030 = vmatpush1.msra.mxu0 0.0
    %3031 = vmatprep.subr.mxu0 0.0
    %3032 = vmatpush1.msra.mxu0 0.0
    %3033 = vmatprep.subr.mxu0 0.0
    %3034 = vmatpush1.msra.mxu0 0.0
    %3035 = vmatprep.subr.mxu0 0.0
    %3036 = vmatpush1.msra.mxu0 0.0
    %3037 = vmatprep.subr.mxu0 0.0
    %3038 = vmatpush1.msra.mxu0 0.0
    %3039 = vmatprep.subr.mxu0 0.0
    %3040 = vmatpush1.msra.mxu0 0.0
    %3041 = vmatprep.subr.mxu0 0.0
    %3042 = vmatpush1.msra.mxu0 0.0
    %3043 = vmatprep.subr.mxu0 0.0
    %3044 = vmatpush1.msra.mxu0 0.0
    %3045 = vmatprep.subr.mxu0 0.0
    %3046 = vmatpush1.msra.mxu0 0.0
    %3047 = vmatprep.subr.mxu0 0.0
    %3048 = vmatpush1.msra.mxu0 0.0
    %3049 = vmatprep.subr.mxu0 0.0
    %3050 = vmatpush1.msra.mxu0 0.0
    %3051 = vmatprep.subr.mxu0 0.0
    %3052 = vmatpush1.msra.mxu0 0.0
    %3053 = vmatprep.subr.mxu0 0.0
    %3054 = vmatpush1.msra.mxu0 0.0
    %3055 = vmatprep.subr.mxu0 0.0
    %3056 = vmatpush1.msra.mxu0 0.0
    %3057 = vmatprep.subr.mxu0 0.0
    %3058 = vmatpush1.msra.mxu0 0.0
    %3059 = vmatprep.subr.mxu0 0.0
    %3060 = vmatpush1.msra.mxu0 0.0
    %3061 = vmatprep.subr.mxu0 0.0
    %3062 = vmatpush1.msra.mxu0 0.0
    %3063 = vmatprep.subr.mxu0 0.0
    %3064 = vmatpush1.msra.mxu0 0.0
    %3065 = vmatprep.subr.mxu0 0.0
    %3066 = vmatpush1.msra.mxu0 0.0
    %3067 = vmatprep.subr.mxu0 0.0
    %3068 = vmatpush1.msra.mxu0 0.0
    %3069 = vmatprep.subr.mxu0 0.0
    %3070 = vmatpush1.msra.mxu0 0.0
    %3071 = vmatprep.mubr.f32.mxu0 0.0
    %3072 = vmatmul.mubr.f32.gmra.mrb[0].mxu0 %v3002
    %v3073 = vpop.f32.mrb[0].mxu0
    %v3074 = vadd.f32 %v2999, %v3073
    %v3075 = vpop.f32.mrb[0].mxu0
    %3076 = vmatprep.mubr.f32.mxu0 0.0
    %3077 = vmatmul.mubr.f32.gmra.mrb[0].mxu0 %v3005
    %v3078 = vpop.f32.mrb[0].mxu0
    %v3079 = vadd.f32 %v2999, %v3078
    %v3080 = vpop.f32.mrb[0].mxu0
    %3081 = vdwg.mxu0
    %v3082 = vld [vmem:[%s23] sm:$0x1]
    %v3083 = vld [vmem:[%s24] sm:$0x1]
    %v3084 = vsel %vm230, %v3074, 0.0
    %3085 = vadd.xlane.f32.xlu0 %v3084
    %v3086 = vpop.xlane.xlu0 %3085
    %v3087 = vsel %vm230, %v3079, 0.0
    %3088 = vadd.xlane.f32.xlu0 %v3087
    %v3089 = vpop.xlane.xlu0 %3088
    %v3090 = vmul.f32 %v3086, %v237
    %v3091 = vmul.f32 %v3089, %v237
    %v3092 = vsub.f32 %v3074, %v3090
    %v3093 = vsub.f32 %v3079, %v3091
    %v3094 = vmul.f32 %v3092, %v3092
    %v3095 = vmul.f32 %v3093, %v3093
    %v3096 = vsel %vm230, %v3094, 0.0
    %3097 = vadd.xlane.f32.xlu0 %v3096
    %v3098 = vpop.xlane.xlu0 %3097
    %v3099 = vsel %vm230, %v3095, 0.0
    %3100 = vadd.xlane.f32.xlu0 %v3099
    %v3101 = vpop.xlane.xlu0 %3100
    %v3102 = vmul.f32 %v3098, %v237
    %v3103 = vmul.f32 %v3101, %v237
    %v3104 = vadd.f32 %v3102, 1e-05
    %v3105 = vadd.f32 %v3103, 1e-05
    %v3106 = vrsqrt.pop %v3104
    %v3107 = vrsqrt.pop %v3105
    %v3108 = vmul.f32 %v3092, %v3106
    %v3109 = vmul.f32 %v3093, %v3107
    %v3111 = vlaneseq
    %v3112 = vshrl.u32 %v3111, 7
    %v3113 = vsub.s32 0, %v3112
    %v3114 = vrot.slane %v3082, %v3113
    %v3116 = vmul.f32 %v3108, %v3114
    %v3117 = vmul.f32 %v3109, %v3114
    %v3119 = vlaneseq
    %v3120 = vshrl.u32 %v3119, 7
    %v3121 = vsub.s32 0, %v3120
    %v3122 = vrot.slane %v3083, %v3121
    %v3124 = vadd.f32 %v3116, %v3122
    %v3125 = vadd.f32 %v3117, %v3122
    %vm3126 = vcmp.ge.f32.partialorder %v3124, 0.0
    %vm3127 = vcmp.ge.f32.partialorder %v3125, 0.0
    %v3128 = vld [vmem:[%s25] sm:$0x1]
    %v3130 = vlaneseq
    %v3131 = vshrl.u32 %v3130, 7
    %v3132 = vsub.s32 0, %v3131
    %v3133 = vrot.slane %v3128, %v3132
    %v3135 = vmul.f32 %v3133, %v3124
    %v3136 = vmul.f32 %v3133, %v3125
    %v3137 = vsel %vm3126, %v3124, %v3135
    %v3138 = vsel %vm3127, %v3125, %v3136
    %v3139 = vld [vmem:[%s26] sm:$0xff]
    %v3140 = vld [vmem:[%s26 + $0x8] sm:$0xff]
    %v3141 = vld [vmem:[%s27] sm:$0x1]
    %v3143 = vlaneseq
    %v3144 = vshrl.u32 %v3143, 7
    %v3145 = vsub.s32 0, %v3144
    %v3146 = vrot.slane %v3141, %v3145
    %v3149 = vsel %vm230, %v3137, 0
    %v3152 = vsel %vm230, %v3138, 0
    %3154 = vmatprep.subr.mxu0 0.0
    %3155 = vmatpush1.msra.mxu0 %v3139
    %3156 = vmatprep.subr.mxu0 0.0
    %3157 = vmatpush1.msra.mxu0 %v3140
    %3158 = vmatprep.subr.mxu0 0.0
    %3159 = vmatpush1.msra.mxu0 0.0
    %3160 = vmatprep.subr.mxu0 0.0
    %3161 = vmatpush1.msra.mxu0 0.0
    %3162 = vmatprep.subr.mxu0 0.0
    %3163 = vmatpush1.msra.mxu0 0.0
    %3164 = vmatprep.subr.mxu0 0.0
    %3165 = vmatpush1.msra.mxu0 0.0
    %3166 = vmatprep.subr.mxu0 0.0
    %3167 = vmatpush1.msra.mxu0 0.0
    %3168 = vmatprep.subr.mxu0 0.0
    %3169 = vmatpush1.msra.mxu0 0.0
    %3170 = vmatprep.subr.mxu0 0.0
    %3171 = vmatpush1.msra.mxu0 0.0
    %3172 = vmatprep.subr.mxu0 0.0
    %3173 = vmatpush1.msra.mxu0 0.0
    %3174 = vmatprep.subr.mxu0 0.0
    %3175 = vmatpush1.msra.mxu0 0.0
    %3176 = vmatprep.subr.mxu0 0.0
    %3177 = vmatpush1.msra.mxu0 0.0
    %3178 = vmatprep.subr.mxu0 0.0
    %3179 = vmatpush1.msra.mxu0 0.0
    %3180 = vmatprep.subr.mxu0 0.0
    %3181 = vmatpush1.msra.mxu0 0.0
    %3182 = vmatprep.subr.mxu0 0.0
    %3183 = vmatpush1.msra.mxu0 0.0
    %3184 = vmatprep.subr.mxu0 0.0
    %3185 = vmatpush1.msra.mxu0 0.0
    %3186 = vmatprep.subr.mxu0 0.0
    %3187 = vmatpush1.msra.mxu0 0.0
    %3188 = vmatprep.subr.mxu0 0.0
    %3189 = vmatpush1.msra.mxu0 0.0
    %3190 = vmatprep.subr.mxu0 0.0
    %3191 = vmatpush1.msra.mxu0 0.0
    %3192 = vmatprep.subr.mxu0 0.0
    %3193 = vmatpush1.msra.mxu0 0.0
    %3194 = vmatprep.subr.mxu0 0.0
    %3195 = vmatpush1.msra.mxu0 0.0
    %3196 = vmatprep.subr.mxu0 0.0
    %3197 = vmatpush1.msra.mxu0 0.0
    %3198 = vmatprep.subr.mxu0 0.0
    %3199 = vmatpush1.msra.mxu0 0.0
    %3200 = vmatprep.subr.mxu0 0.0
    %3201 = vmatpush1.msra.mxu0 0.0
    %3202 = vmatprep.subr.mxu0 0.0
    %3203 = vmatpush1.msra.mxu0 0.0
    %3204 = vmatprep.subr.mxu0 0.0
    %3205 = vmatpush1.msra.mxu0 0.0
    %3206 = vmatprep.subr.mxu0 0.0
    %3207 = vmatpush1.msra.mxu0 0.0
    %3208 = vmatprep.subr.mxu0 0.0
    %3209 = vmatpush1.msra.mxu0 0.0
    %3210 = vmatprep.subr.mxu0 0.0
    %3211 = vmatpush1.msra.mxu0 0.0
    %3212 = vmatprep.subr.mxu0 0.0
    %3213 = vmatpush1.msra.mxu0 0.0
    %3214 = vmatprep.subr.mxu0 0.0
    %3215 = vmatpush1.msra.mxu0 0.0
    %3216 = vmatprep.subr.mxu0 0.0
    %3217 = vmatpush1.msra.mxu0 0.0
    %3218 = vmatprep.mubr.f32.mxu0 0.0
    %3219 = vmatmul.mubr.f32.gmra.mrb[0].mxu0 %v3149
    %v3220 = vpop.f32.mrb[0].mxu0
    %v3221 = vadd.f32 %v3146, %v3220
    %v3222 = vpop.f32.mrb[0].mxu0
    %3223 = vmatprep.mubr.f32.mxu0 0.0
    %3224 = vmatmul.mubr.f32.gmra.mrb[0].mxu0 %v3152
    %v3225 = vpop.f32.mrb[0].mxu0
    %v3226 = vadd.f32 %v3146, %v3225
    %v3227 = vpop.f32.mrb[0].mxu0
    %3228 = vdwg.mxu0
    %vm3229 = vcmask 39936
    %3230 = vst.msk [vmem:[%s28] sm:$0xff] %vm3229, %v3221
    %3231 = vst.msk [vmem:[%s28 + $0x8] sm:$0xff] %vm3229, %v3226
    // Predicated region
    $region130: #{tpu_custom_call.1} parent=1 // pred_check
      _
    $region131: #{tpu_custom_call.1} parent=1 // pred_check_branch
      %3233 = sbr.rel (0) target = $region133
    $region132: #{tpu_custom_call.1} parent=1 // pred_region
      _
    $region133: #{tpu_custom_call.1} parent=1 // pred_fallthru
      _
    // Predicated region
    $region134: #{tpu_custom_call.1} parent=1 // pred_check
      _
    $region135: #{tpu_custom_call.1} parent=1 // pred_check_branch
      %3235 = sbr.rel (0) target = $region137
    $region136: #{tpu_custom_call.1} parent=1 // pred_region
      _
    $region137: #{tpu_custom_call.1} parent=1 // pred_fallthru
      _
    %3236 = vsyncpa [#allocation3], 1
    %3237 = vsyncpa [#allocation5], 1
    %3238 = vsyncpa [#allocation8], 1

</llo_original>
